<compile_context>
chip_gen: v5e
topology: v5e:2x2
jax: 0.10.0
libtpu: 0.0.40
codegen_flags: <defaults>
</compile_context>

<pallas_src>
import functools

import numpy as np
import jax
import jax.numpy as jnp
from jax.experimental import pallas as pl
from jax.experimental.pallas import tpu as pltpu


# ----------------------------------------------------------------------------
# Host-side helpers
# ----------------------------------------------------------------------------
def _interp_matrix(in_size: int, out_size: int) -> np.ndarray:
    """(out, in) bilinear interpolation matrix, align_corners=True (PyTorch)."""
    if out_size == 1 or in_size == 1:
        a = np.zeros((out_size, in_size), np.float32)
        a[:, 0] = 1.0
        return a
    src = np.arange(out_size, dtype=np.float64) * (in_size - 1) / (out_size - 1)
    lo = np.clip(np.floor(src).astype(np.int64), 0, in_size - 1)
    hi = np.clip(lo + 1, 0, in_size - 1)
    frac = (src - lo).astype(np.float32)
    a = np.zeros((out_size, in_size), np.float32)
    rows = np.arange(out_size)
    a[rows, lo] += 1.0 - frac
    a[rows, hi] += frac
    return a


# ----------------------------------------------------------------------------
# In-kernel helper: write a (C, h, w) block into the padded scratch and zero
# only the surrounding margin bands (conv halo + F.pad margins).
# ----------------------------------------------------------------------------
def _store_padded(xp_ref, c0, data, r0, col0):
    C, h, w = data.shape
    Hp, Wp = xp_ref.shape[1], xp_ref.shape[2]
    dt = xp_ref.dtype
    # Margins are re-zeroed every grid step (cheap: O(C*(Hp+Wp))) so the kernel is
    # correct even when the batch grid axis is sharded across TensorCores.
    if r0 > 0:
        xp_ref[c0:c0 + C, :r0, :] = jnp.zeros((C, r0, Wp), dt)
    if r0 + h < Hp:
        xp_ref[c0:c0 + C, r0 + h:, :] = jnp.zeros((C, Hp - (r0 + h), Wp), dt)
    if col0 > 0:
        xp_ref[c0:c0 + C, r0:r0 + h, :col0] = jnp.zeros((C, h, col0), dt)
    if col0 + w < Wp:
        xp_ref[c0:c0 + C, r0:r0 + h, col0 + w:] = jnp.zeros((C, h, Wp - (col0 + w)), dt)
    xp_ref[c0:c0 + C, r0:r0 + h, col0:col0 + w] = data.astype(dt)


# ----------------------------------------------------------------------------
# Fused kernel: upsample(x1) + F.pad + cat([x2, x1]) + 3x3 conv + BN + ReLU
# ----------------------------------------------------------------------------
def _decoder_kernel(oy, ox, a_h_ref, a_w_ref, w_ref, b_ref, x1_ref, x2_ref,
                    o_ref, xp_ref):
    """Per-image fused Decoder forward.

    a_h_ref : (Hu, H1)       bf16  H-interpolation matrix (align_corners=True)
    a_w_ref : (W1, Wu)       bf16  W-interpolation matrix, pre-transposed
    w_ref   : (9, Cout, Cin) bf16  conv taps, BN scale folded in, Cin = [C2 | C1]
    b_ref   : (Cout, 1)      f32   folded BN bias
    x1_ref  : (1, C1, H1, W1)      feature to upsample (NCHW block)
    x2_ref  : (1, C2, Ho, Wo)      skip connection (NCHW block)
    o_ref   : (1, Cout, Ho*Wo)     lane-dense output slab
    xp_ref  : (Cin, Ho+2, Wo+2) f32 scratch: padded, channel-concatenated conv input
    """
    C1, H1, W1 = x1_ref.shape[1:]
    C2, Ho, Wo = x2_ref.shape[1:]
    Cout = o_ref.shape[1]
    Hu, Wu = 2 * H1, 2 * W1
    Cin = C1 + C2

    # ---- bilinear x2 upsample of x1: two bf16 MXU matmuls, f32 accumulation ------
    x1 = x1_ref[0].astype(jnp.bfloat16)                                   # (C1,H1,W1)
    t = jnp.dot(x1.reshape(C1 * H1, W1), a_w_ref[...],
                preferred_element_type=jnp.float32)                       # (C1*H1,Wu)
    t = t.astype(jnp.bfloat16).reshape(C1, H1, Wu)
    a_hb = jnp.broadcast_to(a_h_ref[...], (C1, Hu, H1))
    up = jnp.einsum("chk,ckw->chw", a_hb, t,
                    preferred_element_type=jnp.float32)                   # (C1,Hu,Wu)

    # ---- pad (conv halo + F.pad of x1) and channel concat, entirely in VMEM ------
    # channels [0:C2] = x2, [C2:Cin] = upsampled x1  ==  torch.cat([x2, x1], dim=1)
    _store_padded(xp_ref, 0, x2_ref[0], 1, 1)
    _store_padded(xp_ref, C2, up, 1 + oy, 1 + ox)

    # ---- 3x3 conv as 9 accumulating tap matmuls (Cout, Cin) @ (Cin, Ho*Wo) -------
    xpad = xp_ref[...]
    acc = jnp.zeros((Cout, Ho * Wo), jnp.float32)
    for k in range(9):
        dy, dx = k // 3, k % 3
        tap = xpad[:, dy:dy + Ho, dx:dx + Wo].reshape(Cin, Ho * Wo)
        acc = acc + jnp.dot(w_ref[k], tap.astype(jnp.bfloat16),
                            preferred_element_type=jnp.float32)

    # ---- folded-BN bias + ReLU, lane-dense store ----------------------------------
    y = jnp.maximum(acc + b_ref[...], 0.0)
    o_ref[0] = y.astype(o_ref.dtype)


# ----------------------------------------------------------------------------
# Decoder forward (matches PyTorch Decoder.forward, bilinear branch)
# ----------------------------------------------------------------------------
def decoder_forward(x1, x2, conv_w, gamma, beta, running_mean, running_var,
                    eps=1e-5):
    """NCHW in / NCHW out (no wrapper transposes; the kernel is channels-first).

    Note: the source module assigns `self.up = (nn.Upsample(...),)` (a tuple — a bug
    in the original code); we implement the clearly intended bilinear upsample.
    """
    N, C1, H1, W1 = x1.shape
    N2, C2, Ho, Wo = x2.shape
    Cout, Cin, kh, kw = conv_w.shape
    assert N2 == N and Cin == C1 + C2 and kh == 3 and kw == 3
    Hu, Wu = 2 * H1, 2 * W1
    diff_y, diff_x = Ho - Hu, Wo - Wu
    assert diff_y >= 0 and diff_x >= 0            # F.pad in the module only grows x1
    oy, ox = diff_y // 2, diff_x // 2

    a_h = jnp.asarray(_interp_matrix(H1, Hu)).astype(jnp.bfloat16)        # (Hu, H1)
    a_wt = jnp.asarray(_interp_matrix(W1, Wu).T).astype(jnp.bfloat16)     # (W1, Wu)

    # Fold BatchNorm (inference) into the conv:  w' = w*scale,  b' = beta - mean*scale
    scale = gamma / jnp.sqrt(running_var + eps)
    bias = (beta - running_mean * scale).reshape(Cout, 1).astype(jnp.float32)
    # conv_w's Cin axis is already ordered [x2 channels, x1 channels] (torch.cat order).
    w_taps = (jnp.transpose(conv_w * scale[:, None, None, None], (2, 3, 0, 1))
              .reshape(9, Cout, Cin).astype(jnp.bfloat16))                # (9,Cout,Cin)

    kernel = functools.partial(_decoder_kernel, oy, ox)
    # TODO(synk): for production-size activations add spatial row tiling
    # (grid=(N, Ho//tile_h) with a 1-row halo) so per-block VMEM fits v7x's 64 MiB /
    # the scoped defaults and both v7x TensorCores get work even at N=1; at that
    # point the padded scratch can also move to bf16 and the grid-invariant operands
    # (a_h, a_wt, w_taps, bias) to pipeline_mode=pl.Buffered(1).
    out = pl.pallas_call(
        kernel,
        out_shape=jax.ShapeDtypeStruct((N, Cout, Ho * Wo), x2.dtype),
        grid=(N,),
        in_specs=[
            pl.BlockSpec((Hu, H1), lambda n: (0, 0)),
            pl.BlockSpec((W1, Wu), lambda n: (0, 0)),
            pl.BlockSpec((9, Cout, Cin), lambda n: (0, 0, 0)),
            pl.BlockSpec((Cout, 1), lambda n: (0, 0)),
            pl.BlockSpec((1, C1, H1, W1), lambda n: (n, 0, 0, 0)),
            pl.BlockSpec((1, C2, Ho, Wo), lambda n: (n, 0, 0, 0)),
        ],
        out_specs=pl.BlockSpec((1, Cout, Ho * Wo), lambda n: (n, 0, 0)),
        scratch_shapes=[pltpu.VMEM((C1 + C2, Ho + 2, Wo + 2), jnp.float32)],
        compiler_params=pltpu.CompilerParams(dimension_semantics=("parallel",)),
    )(a_h, a_wt, w_taps, bias, x1, x2)
    return out.reshape(N, Cout, Ho, Wo)       # free: contiguous NCHW


# ----------------------------------------------------------------------------
# Pure-JAX (f32) reference for the self-check
# ----------------------------------------------------------------------------
def _reference(x1, x2, conv_w, gamma, beta, running_mean, running_var, eps=1e-5):
    N, C1, H, W = x1.shape
    a_h = jnp.asarray(_interp_matrix(H, 2 * H))
    a_w = jnp.asarray(_interp_matrix(W, 2 * W))
    x1_up = jnp.einsum("oh,nchw,pw->ncop", a_h, x1, a_w)
    dy = x2.shape[2] - x1_up.shape[2]
    dx = x2.shape[3] - x1_up.shape[3]
    x1_up = jnp.pad(x1_up, ((0, 0), (0, 0),
                            (dy // 2, dy - dy // 2), (dx // 2, dx - dx // 2)))
    x = jnp.concatenate([x2, x1_up], axis=1)
    y = jax.lax.conv_general_dilated(
        x, conv_w, (1, 1), ((1, 1), (1, 1)),
        dimension_numbers=("NCHW", "OIHW", "NCHW"))
    scale = gamma / jnp.sqrt(running_var + eps)
    bias = beta - running_mean * scale
    y = y * scale[None, :, None, None] + bias[None, :, None, None]
    return jnp.maximum(y, 0.0)


if __name__ == "__main__":
    key = jax.random.PRNGKey(0)
    k1, k2, kw, kg, kb, km, kv = jax.random.split(key, 7)

    # Small shapes consistent with the module: in_channels = C(x2) + C(x1)
    N = 2
    in_channels, out_channels = 8, 8
    H1 = W1 = 8                                   # x1 spatial (upsampled -> 16x16 = x2)
    x1 = jax.random.normal(k1, (N, in_channels // 2, H1, W1), jnp.float32)
    x2 = jax.random.normal(k2, (N, in_channels // 2, 2 * H1, 2 * W1), jnp.float32)

    conv_w = 0.1 * jax.random.normal(kw, (out_channels, in_channels, 3, 3), jnp.float32)
    gamma = 1.0 + 0.1 * jax.random.normal(kg, (out_channels,), jnp.float32)
    beta = 0.1 * jax.random.normal(kb, (out_channels,), jnp.float32)
    running_mean = 0.1 * jax.random.normal(km, (out_channels,), jnp.float32)
    running_var = 0.5 + jnp.abs(jax.random.normal(kv, (out_channels,), jnp.float32))

    out = decoder_forward(x1, x2, conv_w, gamma, beta, running_mean, running_var)
    out = jax.block_until_ready(out)

    ref = _reference(x1, x2, conv_w, gamma, beta, running_mean, running_var)
    assert out.shape == (N, out_channels, 2 * H1, 2 * W1), out.shape
    if not jnp.allclose(out, ref, atol=3e-2, rtol=3e-2):
        err = jnp.max(jnp.abs(out - ref))
        raise AssertionError(
            f"Pallas Decoder output mismatch vs JAX reference (max |err| = {err})")

    print("KERNEL_OK")
</pallas_src>

<mosaic_0001>
module attributes {stable_mosaic.version = 11 : i64} {
  func.func @_decoder_kernel(%arg0: i32, %arg1: memref<16x8xbf16, #tpu.memory_space<vmem>>, %arg2: memref<8x16xbf16, #tpu.memory_space<vmem>>, %arg3: memref<9x8x8xbf16, #tpu.memory_space<vmem>>, %arg4: memref<8x1xf32, #tpu.memory_space<vmem>>, %arg5: memref<1x4x8x8xf32, #tpu.memory_space<vmem>>, %arg6: memref<1x4x16x16xf32, #tpu.memory_space<vmem>>, %arg7: memref<1x8x256xf32, #tpu.memory_space<vmem>>, %arg8: memref<8x18x18xf32, #tpu.memory_space<vmem>>) attributes {dimension_semantics = [#tpu.dimension_semantics<parallel>], iteration_bounds = array<i64: 2>, scalar_prefetch = 0 : i64, scratch_operands = 1 : i64, tpu.core_type = #tpu.core_type<tc>, window_params = [{pipeline_mode = #tpu.pipeline_mode<synchronous>, transform_indices = @transform_0, window_bounds = array<i64: 16, 8>}, {pipeline_mode = #tpu.pipeline_mode<synchronous>, transform_indices = @transform_1, window_bounds = array<i64: 8, 16>}, {pipeline_mode = #tpu.pipeline_mode<synchronous>, transform_indices = @transform_2, window_bounds = array<i64: 9, 8, 8>}, {pipeline_mode = #tpu.pipeline_mode<synchronous>, transform_indices = @transform_3, window_bounds = array<i64: 8, 1>}, {transform_indices = @transform_4, window_bounds = array<i64: 1, 4, 8, 8>}, {transform_indices = @transform_5, window_bounds = array<i64: 1, 4, 16, 16>}, {transform_indices = @transform_6, window_bounds = array<i64: 1, 8, 256>}]} {
    %c0 = arith.constant 0 : index
    %c0_0 = arith.constant 0 : index
    %c0_1 = arith.constant 0 : index
    %c0_2 = arith.constant 0 : index
    %0 = vector.load %arg5[%c0, %c0_0, %c0_1, %c0_2] : memref<1x4x8x8xf32, #tpu.memory_space<vmem>>, vector<1x4x8x8xf32>
    %1 = vector.shape_cast %0 : vector<1x4x8x8xf32> to vector<4x8x8xf32>
    %2 = arith.truncf %1 : vector<4x8x8xf32> to vector<4x8x8xbf16>
    %3 = vector.shape_cast %2 : vector<4x8x8xbf16> to vector<32x8xbf16>
    %c0_3 = arith.constant 0 : index
    %c0_4 = arith.constant 0 : index
    %4 = vector.load %arg2[%c0_3, %c0_4] : memref<8x16xbf16, #tpu.memory_space<vmem>>, vector<8x16xbf16>
    %cst = arith.constant dense<0.000000e+00> : vector<32x16xf32>
    %5 = tpu.matmul %3, %4, %cst {dimension_numbers = #tpu.dot_dimension_numbers<[1], [0], [0], [1], [0, 0, 1, 1], [], []>} : vector<32x8xbf16>, vector<8x16xbf16>, vector<32x16xf32> -> vector<32x16xf32>
    %6 = arith.truncf %5 : vector<32x16xf32> to vector<32x16xbf16>
    %7 = vector.shape_cast %6 : vector<32x16xbf16> to vector<4x8x16xbf16>
    %c0_5 = arith.constant 0 : index
    %c0_6 = arith.constant 0 : index
    %8 = vector.load %arg1[%c0_5, %c0_6] : memref<16x8xbf16, #tpu.memory_space<vmem>>, vector<16x8xbf16>
    %9 = vector.shape_cast %8 : vector<16x8xbf16> to vector<1x16x8xbf16>
    %10 = vector.broadcast %9 : vector<1x16x8xbf16> to vector<4x16x8xbf16>
    "tpu.trace_start"() <{level = 10 : i32, message = "chk,ckw->chw"}> : () -> ()
    %cst_7 = arith.constant dense<0.000000e+00> : vector<4x16x16xf32>
    %11 = tpu.matmul %10, %7, %cst_7 {dimension_numbers = #tpu.dot_dimension_numbers<[2], [1], [1], [2], [0, 0, 0, 1, 1, 2], [0], [0]>} : vector<4x16x8xbf16>, vector<4x8x16xbf16>, vector<4x16x16xf32> -> vector<4x16x16xf32>
    "tpu.trace_stop"() : () -> ()
    %c0_8 = arith.constant 0 : index
    %c0_9 = arith.constant 0 : index
    %c0_10 = arith.constant 0 : index
    %c0_11 = arith.constant 0 : index
    %12 = vector.load %arg6[%c0_8, %c0_9, %c0_10, %c0_11] : memref<1x4x16x16xf32, #tpu.memory_space<vmem>>, vector<1x4x16x16xf32>
    %13 = vector.shape_cast %12 : vector<1x4x16x16xf32> to vector<4x16x16xf32>
    %cst_12 = arith.constant 0.000000e+00 : f32
    %14 = vector.broadcast %cst_12 : f32 to vector<4x1x18xf32>
    %c0_13 = arith.constant 0 : index
    %c0_14 = arith.constant 0 : index
    %c0_15 = arith.constant 0 : index
    %15 = vector.load %arg8[%c0_13, %c0_14, %c0_15] : memref<8x18x18xf32, #tpu.memory_space<vmem>>, vector<4x1x18xf32>
    tpu.vector_store %arg8[%c0_13, %c0_14, %c0_15], %14 {strides = array<i32>} : memref<8x18x18xf32, #tpu.memory_space<vmem>>, vector<4x1x18xf32>,
    %cst_16 = arith.constant 0.000000e+00 : f32
    %16 = vector.broadcast %cst_16 : f32 to vector<4x1x18xf32>
    %c0_17 = arith.constant 0 : index
    %c17 = arith.constant 17 : index
    %c0_18 = arith.constant 0 : index
    %17 = vector.load %arg8[%c0_17, %c17, %c0_18] : memref<8x18x18xf32, #tpu.memory_space<vmem>>, vector<4x1x18xf32>
    tpu.vector_store %arg8[%c0_17, %c17, %c0_18], %16 {strides = array<i32>} : memref<8x18x18xf32, #tpu.memory_space<vmem>>, vector<4x1x18xf32>,
    %cst_19 = arith.constant 0.000000e+00 : f32
    %18 = vector.broadcast %cst_19 : f32 to vector<4x16x1xf32>
    %c0_20 = arith.constant 0 : index
    %c1 = arith.constant 1 : index
    %c0_21 = arith.constant 0 : index
    %19 = vector.load %arg8[%c0_20, %c1, %c0_21] : memref<8x18x18xf32, #tpu.memory_space<vmem>>, vector<4x16x1xf32>
    tpu.vector_store %arg8[%c0_20, %c1, %c0_21], %18 {strides = array<i32>} : memref<8x18x18xf32, #tpu.memory_space<vmem>>, vector<4x16x1xf32>,
    %cst_22 = arith.constant 0.000000e+00 : f32
    %20 = vector.broadcast %cst_22 : f32 to vector<4x16x1xf32>
    %c0_23 = arith.constant 0 : index
    %c1_24 = arith.constant 1 : index
    %c17_25 = arith.constant 17 : index
    %21 = vector.load %arg8[%c0_23, %c1_24, %c17_25] : memref<8x18x18xf32, #tpu.memory_space<vmem>>, vector<4x16x1xf32>
    tpu.vector_store %arg8[%c0_23, %c1_24, %c17_25], %20 {strides = array<i32>} : memref<8x18x18xf32, #tpu.memory_space<vmem>>, vector<4x16x1xf32>,
    %c0_26 = arith.constant 0 : index
    %c1_27 = arith.constant 1 : index
    %c1_28 = arith.constant 1 : index
    %22 = vector.load %arg8[%c0_26, %c1_27, %c1_28] : memref<8x18x18xf32, #tpu.memory_space<vmem>>, vector<4x16x16xf32>
    tpu.vector_store %arg8[%c0_26, %c1_27, %c1_28], %13 {strides = array<i32>} : memref<8x18x18xf32, #tpu.memory_space<vmem>>, vector<4x16x16xf32>,
    %cst_29 = arith.constant 0.000000e+00 : f32
    %23 = vector.broadcast %cst_29 : f32 to vector<4x1x18xf32>
    %c4 = arith.constant 4 : index
    %c0_30 = arith.constant 0 : index
    %c0_31 = arith.constant 0 : index
    %24 = vector.load %arg8[%c4, %c0_30, %c0_31] : memref<8x18x18xf32, #tpu.memory_space<vmem>>, vector<4x1x18xf32>
    tpu.vector_store %arg8[%c4, %c0_30, %c0_31], %23 {strides = array<i32>} : memref<8x18x18xf32, #tpu.memory_space<vmem>>, vector<4x1x18xf32>,
    %cst_32 = arith.constant 0.000000e+00 : f32
    %25 = vector.broadcast %cst_32 : f32 to vector<4x1x18xf32>
    %c4_33 = arith.constant 4 : index
    %c17_34 = arith.constant 17 : index
    %c0_35 = arith.constant 0 : index
    %26 = vector.load %arg8[%c4_33, %c17_34, %c0_35] : memref<8x18x18xf32, #tpu.memory_space<vmem>>, vector<4x1x18xf32>
    tpu.vector_store %arg8[%c4_33, %c17_34, %c0_35], %25 {strides = array<i32>} : memref<8x18x18xf32, #tpu.memory_space<vmem>>, vector<4x1x18xf32>,
    %cst_36 = arith.constant 0.000000e+00 : f32
    %27 = vector.broadcast %cst_36 : f32 to vector<4x16x1xf32>
    %c4_37 = arith.constant 4 : index
    %c1_38 = arith.constant 1 : index
    %c0_39 = arith.constant 0 : index
    %28 = vector.load %arg8[%c4_37, %c1_38, %c0_39] : memref<8x18x18xf32, #tpu.memory_space<vmem>>, vector<4x16x1xf32>
    tpu.vector_store %arg8[%c4_37, %c1_38, %c0_39], %27 {strides = array<i32>} : memref<8x18x18xf32, #tpu.memory_space<vmem>>, vector<4x16x1xf32>,
    %cst_40 = arith.constant 0.000000e+00 : f32
    %29 = vector.broadcast %cst_40 : f32 to vector<4x16x1xf32>
    %c4_41 = arith.constant 4 : index
    %c1_42 = arith.constant 1 : index
    %c17_43 = arith.constant 17 : index
    %30 = vector.load %arg8[%c4_41, %c1_42, %c17_43] : memref<8x18x18xf32, #tpu.memory_space<vmem>>, vector<4x16x1xf32>
    tpu.vector_store %arg8[%c4_41, %c1_42, %c17_43], %29 {strides = array<i32>} : memref<8x18x18xf32, #tpu.memory_space<vmem>>, vector<4x16x1xf32>,
    %c4_44 = arith.constant 4 : index
    %c1_45 = arith.constant 1 : index
    %c1_46 = arith.constant 1 : index
    %31 = vector.load %arg8[%c4_44, %c1_45, %c1_46] : memref<8x18x18xf32, #tpu.memory_space<vmem>>, vector<4x16x16xf32>
    tpu.vector_store %arg8[%c4_44, %c1_45, %c1_46], %11 {strides = array<i32>} : memref<8x18x18xf32, #tpu.memory_space<vmem>>, vector<4x16x16xf32>,
    %c0_47 = arith.constant 0 : index
    %c0_48 = arith.constant 0 : index
    %c0_49 = arith.constant 0 : index
    %32 = vector.load %arg8[%c0_47, %c0_48, %c0_49] : memref<8x18x18xf32, #tpu.memory_space<vmem>>, vector<8x18x18xf32>
    %cst_50 = arith.constant 0.000000e+00 : f32
    %33 = vector.broadcast %cst_50 : f32 to vector<8x256xf32>
    %34 = vector.extract_strided_slice %32 {offsets = [0, 0, 0], sizes = [8, 16, 16], strides = [1, 1, 1]} : vector<8x18x18xf32> to vector<8x16x16xf32>
    %35 = vector.shape_cast %34 : vector<8x16x16xf32> to vector<8x256xf32>
    %c0_51 = arith.constant 0 : index
    %c0_52 = arith.constant 0 : index
    %c0_53 = arith.constant 0 : index
    %36 = vector.load %arg3[%c0_51, %c0_52, %c0_53] : memref<9x8x8xbf16, #tpu.memory_space<vmem>>, vector<1x8x8xbf16>
    %37 = vector.shape_cast %36 : vector<1x8x8xbf16> to vector<8x8xbf16>
    %38 = arith.truncf %35 : vector<8x256xf32> to vector<8x256xbf16>
    %cst_54 = arith.constant dense<0.000000e+00> : vector<8x256xf32>
    %39 = tpu.matmul %37, %38, %cst_54 {dimension_numbers = #tpu.dot_dimension_numbers<[1], [0], [0], [1], [0, 0, 1, 1], [], []>} : vector<8x8xbf16>, vector<8x256xbf16>, vector<8x256xf32> -> vector<8x256xf32>
    %40 = arith.addf %33, %39 : vector<8x256xf32>
    %41 = vector.extract_strided_slice %32 {offsets = [0, 0, 1], sizes = [8, 16, 16], strides = [1, 1, 1]} : vector<8x18x18xf32> to vector<8x16x16xf32>
    %42 = vector.shape_cast %41 : vector<8x16x16xf32> to vector<8x256xf32>
    %c1_55 = arith.constant 1 : index
    %c0_56 = arith.constant 0 : index
    %c0_57 = arith.constant 0 : index
    %43 = vector.load %arg3[%c1_55, %c0_56, %c0_57] : memref<9x8x8xbf16, #tpu.memory_space<vmem>>, vector<1x8x8xbf16>
    %44 = vector.shape_cast %43 : vector<1x8x8xbf16> to vector<8x8xbf16>
    %45 = arith.truncf %42 : vector<8x256xf32> to vector<8x256xbf16>
    %cst_58 = arith.constant dense<0.000000e+00> : vector<8x256xf32>
    %46 = tpu.matmul %44, %45, %cst_58 {dimension_numbers = #tpu.dot_dimension_numbers<[1], [0], [0], [1], [0, 0, 1, 1], [], []>} : vector<8x8xbf16>, vector<8x256xbf16>, vector<8x256xf32> -> vector<8x256xf32>
    %47 = arith.addf %40, %46 : vector<8x256xf32>
    %48 = vector.extract_strided_slice %32 {offsets = [0, 0, 2], sizes = [8, 16, 16], strides = [1, 1, 1]} : vector<8x18x18xf32> to vector<8x16x16xf32>
    %49 = vector.shape_cast %48 : vector<8x16x16xf32> to vector<8x256xf32>
    %c2 = arith.constant 2 : index
    %c0_59 = arith.constant 0 : index
    %c0_60 = arith.constant 0 : index
    %50 = vector.load %arg3[%c2, %c0_59, %c0_60] : memref<9x8x8xbf16, #tpu.memory_space<vmem>>, vector<1x8x8xbf16>
    %51 = vector.shape_cast %50 : vector<1x8x8xbf16> to vector<8x8xbf16>
    %52 = arith.truncf %49 : vector<8x256xf32> to vector<8x256xbf16>
    %cst_61 = arith.constant dense<0.000000e+00> : vector<8x256xf32>
    %53 = tpu.matmul %51, %52, %cst_61 {dimension_numbers = #tpu.dot_dimension_numbers<[1], [0], [0], [1], [0, 0, 1, 1], [], []>} : vector<8x8xbf16>, vector<8x256xbf16>, vector<8x256xf32> -> vector<8x256xf32>
    %54 = arith.addf %47, %53 : vector<8x256xf32>
    %55 = vector.extract_strided_slice %32 {offsets = [0, 1, 0], sizes = [8, 16, 16], strides = [1, 1, 1]} : vector<8x18x18xf32> to vector<8x16x16xf32>
    %56 = vector.shape_cast %55 : vector<8x16x16xf32> to vector<8x256xf32>
    %c3 = arith.constant 3 : index
    %c0_62 = arith.constant 0 : index
    %c0_63 = arith.constant 0 : index
    %57 = vector.load %arg3[%c3, %c0_62, %c0_63] : memref<9x8x8xbf16, #tpu.memory_space<vmem>>, vector<1x8x8xbf16>
    %58 = vector.shape_cast %57 : vector<1x8x8xbf16> to vector<8x8xbf16>
    %59 = arith.truncf %56 : vector<8x256xf32> to vector<8x256xbf16>
    %cst_64 = arith.constant dense<0.000000e+00> : vector<8x256xf32>
    %60 = tpu.matmul %58, %59, %cst_64 {dimension_numbers = #tpu.dot_dimension_numbers<[1], [0], [0], [1], [0, 0, 1, 1], [], []>} : vector<8x8xbf16>, vector<8x256xbf16>, vector<8x256xf32> -> vector<8x256xf32>
    %61 = arith.addf %54, %60 : vector<8x256xf32>
    %62 = vector.extract_strided_slice %32 {offsets = [0, 1, 1], sizes = [8, 16, 16], strides = [1, 1, 1]} : vector<8x18x18xf32> to vector<8x16x16xf32>
    %63 = vector.shape_cast %62 : vector<8x16x16xf32> to vector<8x256xf32>
    %c4_65 = arith.constant 4 : index
    %c0_66 = arith.constant 0 : index
    %c0_67 = arith.constant 0 : index
    %64 = vector.load %arg3[%c4_65, %c0_66, %c0_67] : memref<9x8x8xbf16, #tpu.memory_space<vmem>>, vector<1x8x8xbf16>
    %65 = vector.shape_cast %64 : vector<1x8x8xbf16> to vector<8x8xbf16>
    %66 = arith.truncf %63 : vector<8x256xf32> to vector<8x256xbf16>
    %cst_68 = arith.constant dense<0.000000e+00> : vector<8x256xf32>
    %67 = tpu.matmul %65, %66, %cst_68 {dimension_numbers = #tpu.dot_dimension_numbers<[1], [0], [0], [1], [0, 0, 1, 1], [], []>} : vector<8x8xbf16>, vector<8x256xbf16>, vector<8x256xf32> -> vector<8x256xf32>
    %68 = arith.addf %61, %67 : vector<8x256xf32>
    %69 = vector.extract_strided_slice %32 {offsets = [0, 1, 2], sizes = [8, 16, 16], strides = [1, 1, 1]} : vector<8x18x18xf32> to vector<8x16x16xf32>
    %70 = vector.shape_cast %69 : vector<8x16x16xf32> to vector<8x256xf32>
    %c5 = arith.constant 5 : index
    %c0_69 = arith.constant 0 : index
    %c0_70 = arith.constant 0 : index
    %71 = vector.load %arg3[%c5, %c0_69, %c0_70] : memref<9x8x8xbf16, #tpu.memory_space<vmem>>, vector<1x8x8xbf16>
    %72 = vector.shape_cast %71 : vector<1x8x8xbf16> to vector<8x8xbf16>
    %73 = arith.truncf %70 : vector<8x256xf32> to vector<8x256xbf16>
    %cst_71 = arith.constant dense<0.000000e+00> : vector<8x256xf32>
    %74 = tpu.matmul %72, %73, %cst_71 {dimension_numbers = #tpu.dot_dimension_numbers<[1], [0], [0], [1], [0, 0, 1, 1], [], []>} : vector<8x8xbf16>, vector<8x256xbf16>, vector<8x256xf32> -> vector<8x256xf32>
    %75 = arith.addf %68, %74 : vector<8x256xf32>
    %76 = vector.extract_strided_slice %32 {offsets = [0, 2, 0], sizes = [8, 16, 16], strides = [1, 1, 1]} : vector<8x18x18xf32> to vector<8x16x16xf32>
    %77 = vector.shape_cast %76 : vector<8x16x16xf32> to vector<8x256xf32>
    %c6 = arith.constant 6 : index
    %c0_72 = arith.constant 0 : index
    %c0_73 = arith.constant 0 : index
    %78 = vector.load %arg3[%c6, %c0_72, %c0_73] : memref<9x8x8xbf16, #tpu.memory_space<vmem>>, vector<1x8x8xbf16>
    %79 = vector.shape_cast %78 : vector<1x8x8xbf16> to vector<8x8xbf16>
    %80 = arith.truncf %77 : vector<8x256xf32> to vector<8x256xbf16>
    %cst_74 = arith.constant dense<0.000000e+00> : vector<8x256xf32>
    %81 = tpu.matmul %79, %80, %cst_74 {dimension_numbers = #tpu.dot_dimension_numbers<[1], [0], [0], [1], [0, 0, 1, 1], [], []>} : vector<8x8xbf16>, vector<8x256xbf16>, vector<8x256xf32> -> vector<8x256xf32>
    %82 = arith.addf %75, %81 : vector<8x256xf32>
    %83 = vector.extract_strided_slice %32 {offsets = [0, 2, 1], sizes = [8, 16, 16], strides = [1, 1, 1]} : vector<8x18x18xf32> to vector<8x16x16xf32>
    %84 = vector.shape_cast %83 : vector<8x16x16xf32> to vector<8x256xf32>
    %c7 = arith.constant 7 : index
    %c0_75 = arith.constant 0 : index
    %c0_76 = arith.constant 0 : index
    %85 = vector.load %arg3[%c7, %c0_75, %c0_76] : memref<9x8x8xbf16, #tpu.memory_space<vmem>>, vector<1x8x8xbf16>
    %86 = vector.shape_cast %85 : vector<1x8x8xbf16> to vector<8x8xbf16>
    %87 = arith.truncf %84 : vector<8x256xf32> to vector<8x256xbf16>
    %cst_77 = arith.constant dense<0.000000e+00> : vector<8x256xf32>
    %88 = tpu.matmul %86, %87, %cst_77 {dimension_numbers = #tpu.dot_dimension_numbers<[1], [0], [0], [1], [0, 0, 1, 1], [], []>} : vector<8x8xbf16>, vector<8x256xbf16>, vector<8x256xf32> -> vector<8x256xf32>
    %89 = arith.addf %82, %88 : vector<8x256xf32>
    %90 = vector.extract_strided_slice %32 {offsets = [0, 2, 2], sizes = [8, 16, 16], strides = [1, 1, 1]} : vector<8x18x18xf32> to vector<8x16x16xf32>
    %91 = vector.shape_cast %90 : vector<8x16x16xf32> to vector<8x256xf32>
    %c8 = arith.constant 8 : index
    %c0_78 = arith.constant 0 : index
    %c0_79 = arith.constant 0 : index
    %92 = vector.load %arg3[%c8, %c0_78, %c0_79] : memref<9x8x8xbf16, #tpu.memory_space<vmem>>, vector<1x8x8xbf16>
    %93 = vector.shape_cast %92 : vector<1x8x8xbf16> to vector<8x8xbf16>
    %94 = arith.truncf %91 : vector<8x256xf32> to vector<8x256xbf16>
    %cst_80 = arith.constant dense<0.000000e+00> : vector<8x256xf32>
    %95 = tpu.matmul %93, %94, %cst_80 {dimension_numbers = #tpu.dot_dimension_numbers<[1], [0], [0], [1], [0, 0, 1, 1], [], []>} : vector<8x8xbf16>, vector<8x256xbf16>, vector<8x256xf32> -> vector<8x256xf32>
    %96 = arith.addf %89, %95 : vector<8x256xf32>
    %c0_81 = arith.constant 0 : index
    %c0_82 = arith.constant 0 : index
    %97 = vector.load %arg4[%c0_81, %c0_82] : memref<8x1xf32, #tpu.memory_space<vmem>>, vector<8x1xf32>
    %98 = vector.broadcast %97 : vector<8x1xf32> to vector<8x256xf32>
    %99 = arith.addf %96, %98 : vector<8x256xf32>
    %cst_83 = arith.constant 0.000000e+00 : f32
    %100 = vector.broadcast %cst_83 : f32 to vector<8x256xf32>
    %101 = arith.maximumf %99, %100 : vector<8x256xf32>
    %c0_84 = arith.constant 0 : index
    %c0_85 = arith.constant 0 : index
    %c0_86 = arith.constant 0 : index
    %102 = vector.load %arg7[%c0_84, %c0_85, %c0_86] : memref<1x8x256xf32, #tpu.memory_space<vmem>>, vector<1x8x256xf32>
    %103 = vector.shape_cast %102 : vector<1x8x256xf32> to vector<8x256xf32>
    %104 = vector.shape_cast %101 : vector<8x256xf32> to vector<1x8x256xf32>
    tpu.vector_store %arg7[%c0_84, %c0_85, %c0_86], %104 {strides = array<i32>} : memref<1x8x256xf32, #tpu.memory_space<vmem>>, vector<1x8x256xf32>,
    return
  }
  func.func @transform_0(%arg0: i32) -> (i32, i32) {
    %c0_i32 = arith.constant 0 : i32
    %c0_i32_0 = arith.constant 0 : i32
    %c0_i32_1 = arith.constant 0 : i32
    return %c0_i32, %c0_i32_0 : i32, i32
  }
  func.func @transform_1(%arg0: i32) -> (i32, i32) {
    %c0_i32 = arith.constant 0 : i32
    %c0_i32_0 = arith.constant 0 : i32
    %c0_i32_1 = arith.constant 0 : i32
    return %c0_i32, %c0_i32_0 : i32, i32
  }
  func.func @transform_2(%arg0: i32) -> (i32, i32, i32) {
    %c0_i32 = arith.constant 0 : i32
    %c0_i32_0 = arith.constant 0 : i32
    %c0_i32_1 = arith.constant 0 : i32
    %c0_i32_2 = arith.constant 0 : i32
    return %c0_i32, %c0_i32_0, %c0_i32_1 : i32, i32, i32
  }
  func.func @transform_3(%arg0: i32) -> (i32, i32) {
    %c0_i32 = arith.constant 0 : i32
    %c0_i32_0 = arith.constant 0 : i32
    %c0_i32_1 = arith.constant 0 : i32
    return %c0_i32, %c0_i32_0 : i32, i32
  }
  func.func @transform_4(%arg0: i32) -> (i32, i32, i32, i32) {
    %c0_i32 = arith.constant 0 : i32
    %c0_i32_0 = arith.constant 0 : i32
    %c0_i32_1 = arith.constant 0 : i32
    %c0_i32_2 = arith.constant 0 : i32
    return %arg0, %c0_i32, %c0_i32_0, %c0_i32_1 : i32, i32, i32, i32
  }
  func.func @transform_5(%arg0: i32) -> (i32, i32, i32, i32) {
    %c0_i32 = arith.constant 0 : i32
    %c0_i32_0 = arith.constant 0 : i32
    %c0_i32_1 = arith.constant 0 : i32
    %c0_i32_2 = arith.constant 0 : i32
    return %arg0, %c0_i32, %c0_i32_0, %c0_i32_1 : i32, i32, i32, i32
  }
  func.func @transform_6(%arg0: i32) -> (i32, i32, i32) {
    %c0_i32 = arith.constant 0 : i32
    %c0_i32_0 = arith.constant 0 : i32
    %c0_i32_1 = arith.constant 0 : i32
    return %arg0, %c0_i32, %c0_i32_0 : i32, i32, i32
  }
}

</mosaic_0001>

<llo_original>
// kernel: tpu_custom_call.1
$region0: #{tpu_custom_call.1}
  #allocation0 [shape = 'u32[]', space=smem, size = 0x4, offset = 0x4, fixed_abs, tag = 'smem constant byte address 0x4 - core index']
  #allocation1 [shape = 'u32[72,128]{1,0:T(1,128)}', space=vmem, size = 0x9000, scoped, tag = 'internal scratch']
  #allocation2 [shape = 'f32[8,18,18]{2,1,0:T(8,128)}', space=vmem, size = 0x18000, scoped, tag = 'scratch operand']
  %s0 = inlined_call_operand.vmem [shape: bf16[16,8], index: 0, kind: input, shape index: {}]
  %s1 = inlined_call_operand.vmem [shape: bf16[8,16], index: 1, kind: input, shape index: {}]
  %s2 = inlined_call_operand.vmem [shape: bf16[9,8,8], index: 2, kind: input, shape index: {}]
  %s3 = inlined_call_operand.vmem [shape: f32[8,1], index: 3, kind: input, shape index: {}]
  %s4 = inlined_call_operand.vmem [shape: f32[2,4,8,8], index: 4, kind: input, shape index: {}]
  %s5 = inlined_call_operand.hbm [shape: f32[2,4,16,16], index: 5, kind: input, shape index: {}]
  %s6 = inlined_call_operand.hbm [shape: f32[2,8,256], index: 6, kind: output, shape index: {}]
  %s7 = sld [smem:[#allocation0]]
  $region61: #{tpu_custom_call.1} parent=0
    _
  %s9 = ssub.s32 1, %s7
  %s10 = scalar_select 0, %s9, %s7
  $region1: #{tpu_custom_call.1} parent=0
    #allocation3 [shape = 'u8[65536]{0}', space=vmem, size = 0x10000, scoped, tag = 'input window, operand 5']
    #allocation4 [shape = 's32[2]{0}', space=sflag, size = 0x8, scoped, tag = 'scoped memory for tpu_custom_call.1']
    #allocation5 [shape = 's32[2]{0}', space=sflag, size = 0x8, scoped, tag = 'scoped memory for tpu_custom_call.1']
    #allocation6 [shape = 'u8[16384]{0}', space=vmem, size = 0x4000, scoped, tag = 'output window, operand 0']
    %11 = vsyncpa [#allocation4], 0
    %s12 = scalar_lea.sflag [#allocation4], 1
    %13 = vsyncpa %s12, 0
    %14 = vsyncpa [#allocation5], 0
    %s15 = scalar_lea.sflag [#allocation5], 1
    %16 = vsyncpa %s15, 0
    loop: start=0, step=1, limit=4
    $region2: #{tpu_custom_call.1} parent=1 // loop_pre_header
      _
    $region3: #{tpu_custom_call.1} parent=1 // loop_header
      %s18 = sphi 0, %s22
      %p19 = scmp.ge.s32.totalorder %s18, 4
      %s26 = sphi 0, %s26
      %s28 = sphi 0, %s26
      %s29 = sphi 0, %s28
      %s43 = sphi 0, %s29
      %s47 = sphi 0, %s47
      %s49 = sphi 0, %s47
      %s50 = sphi 0, %s49
      %s64 = sphi 0, %s50
      %s68 = sphi 0, %s68
      %s70 = sphi 0, %s68
      %s71 = sphi 0, %s70
      %s85 = sphi 0, %s71
      %s89 = sphi 0, %s89
      %s91 = sphi 0, %s89
      %s92 = sphi 0, %s91
      %s106 = sphi 0, %s92
      %s112 = sphi 0, %s114
      %s115 = sphi 0, %s112
      %s116 = sphi 0, %s115
      %s132 = sphi 0, %s116
      %s138 = sphi 0, %s140
      %s141 = sphi 0, %s138
      %s142 = sphi 0, %s141
      %s158 = sphi 0, %s142
      %s164 = sphi 0, %s166
      %s167 = sphi 0, %s164
      %s168 = sphi 0, %s167
      %s184 = sphi 0, %s168
    $region4: #{tpu_custom_call.1} parent=1 // loop_header_branch
      %21 = sbr.rel (%p19) target = $region8
    $region5: #{tpu_custom_call.1} parent=1 // loop_body
      %s23 = ssub.s32 %s18, 1
      %s24 = ssub.s32 %s18, 2
      %s25 = sadd.s32 %s18, 1
      %s27 = sadd.s32 %s26, 1
      %p30 = scmp.eq.s32.totalorder %s18, 1
      %p31 = scmp.ne.s32.totalorder %s26, %s28
      %p32 = scmp.eq.s32.totalorder %s18, 0
      %p33 = por %p31, %p32
      %p34 = scmp.ne.s32.totalorder %s26, %s28
      %p35 = scmp.eq.s32.totalorder %s23, 1
      %p36 = por %p34, %p35
      %p37 = scmp.ne.s32.totalorder %s28, %s29
      %p38 = scmp.eq.s32.totalorder %s23, 0
      %p39 = por %p37, %p38
      %p40 = scmp.ne.s32.totalorder %s28, %s29
      %p41 = scmp.eq.s32.totalorder %s24, 1
      %p42 = por %p40, %p41
      %p44 = scmp.ne.s32.totalorder %s29, %s43
      %p45 = scmp.eq.s32.totalorder %s24, 0
      %p46 = por %p44, %p45
      %s48 = sadd.s32 %s47, 1
      %p51 = scmp.eq.s32.totalorder %s18, 1
      %p52 = scmp.ne.s32.totalorder %s47, %s49
      %p53 = scmp.eq.s32.totalorder %s18, 0
      %p54 = por %p52, %p53
      %p55 = scmp.ne.s32.totalorder %s47, %s49
      %p56 = scmp.eq.s32.totalorder %s23, 1
      %p57 = por %p55, %p56
      %p58 = scmp.ne.s32.totalorder %s49, %s50
      %p59 = scmp.eq.s32.totalorder %s23, 0
      %p60 = por %p58, %p59
      %p61 = scmp.ne.s32.totalorder %s49, %s50
      %p62 = scmp.eq.s32.totalorder %s24, 1
      %p63 = por %p61, %p62
      %p65 = scmp.ne.s32.totalorder %s50, %s64
      %p66 = scmp.eq.s32.totalorder %s24, 0
      %p67 = por %p65, %p66
      %s69 = sadd.s32 %s68, 1
      %p72 = scmp.eq.s32.totalorder %s18, 1
      %p73 = scmp.ne.s32.totalorder %s68, %s70
      %p74 = scmp.eq.s32.totalorder %s18, 0
      %p75 = por %p73, %p74
      %p76 = scmp.ne.s32.totalorder %s68, %s70
      %p77 = scmp.eq.s32.totalorder %s23, 1
      %p78 = por %p76, %p77
      %p79 = scmp.ne.s32.totalorder %s70, %s71
      %p80 = scmp.eq.s32.totalorder %s23, 0
      %p81 = por %p79, %p80
      %p82 = scmp.ne.s32.totalorder %s70, %s71
      %p83 = scmp.eq.s32.totalorder %s24, 1
      %p84 = por %p82, %p83
      %p86 = scmp.ne.s32.totalorder %s71, %s85
      %p87 = scmp.eq.s32.totalorder %s24, 0
      %p88 = por %p86, %p87
      %s90 = sadd.s32 %s89, 1
      %p93 = scmp.eq.s32.totalorder %s18, 1
      %p94 = scmp.ne.s32.totalorder %s89, %s91
      %p95 = scmp.eq.s32.totalorder %s18, 0
      %p96 = por %p94, %p95
      %p97 = scmp.ne.s32.totalorder %s89, %s91
      %p98 = scmp.eq.s32.totalorder %s23, 1
      %p99 = por %p97, %p98
      %p100 = scmp.ne.s32.totalorder %s91, %s92
      %p101 = scmp.eq.s32.totalorder %s23, 0
      %p102 = por %p100, %p101
      %p103 = scmp.ne.s32.totalorder %s91, %s92
      %p104 = scmp.eq.s32.totalorder %s24, 1
      %p105 = por %p103, %p104
      %p107 = scmp.ne.s32.totalorder %s92, %s106
      %p108 = scmp.eq.s32.totalorder %s24, 0
      %p109 = por %p107, %p108
      %s110 = ssub.s32 %s18, %s25
      %p111 = scmp.eq.s32.totalorder %s110, 0
      %s113 = sadd.s32 %s112, 1
      %s114 = scalar_select %p111, %s112, %s113
      %p117 = pneg %p111
      %p118 = scmp.eq.s32.totalorder %s18, 1
      %p119 = por %p117, %p118
      %p120 = scmp.ne.s32.totalorder %s112, %s115
      %p121 = scmp.eq.s32.totalorder %s18, 0
      %p122 = por %p120, %p121
      %p123 = scmp.ne.s32.totalorder %s112, %s115
      %p124 = scmp.eq.s32.totalorder %s23, 1
      %p125 = por %p123, %p124
      %p126 = scmp.ne.s32.totalorder %s115, %s116
      %p127 = scmp.eq.s32.totalorder %s23, 0
      %p128 = por %p126, %p127
      %p129 = scmp.ne.s32.totalorder %s115, %s116
      %p130 = scmp.eq.s32.totalorder %s24, 1
      %p131 = por %p129, %p130
      %p133 = scmp.ne.s32.totalorder %s116, %s132
      %p134 = scmp.eq.s32.totalorder %s24, 0
      %p135 = por %p133, %p134
      %s136 = ssub.s32 %s18, %s25
      %p137 = scmp.eq.s32.totalorder %s136, 0
      %s139 = sadd.s32 %s138, 1
      %s140 = scalar_select %p137, %s138, %s139
      %p143 = pneg %p137
      %p144 = scmp.eq.s32.totalorder %s18, 1
      %p145 = por %p143, %p144
      %p146 = scmp.ne.s32.totalorder %s138, %s141
      %p147 = scmp.eq.s32.totalorder %s18, 0
      %p148 = por %p146, %p147
      %p149 = scmp.ne.s32.totalorder %s138, %s141
      %p150 = scmp.eq.s32.totalorder %s23, 1
      %p151 = por %p149, %p150
      %p152 = scmp.ne.s32.totalorder %s141, %s142
      %p153 = scmp.eq.s32.totalorder %s23, 0
      %p154 = por %p152, %p153
      %p155 = scmp.ne.s32.totalorder %s141, %s142
      %p156 = scmp.eq.s32.totalorder %s24, 1
      %p157 = por %p155, %p156
      %p159 = scmp.ne.s32.totalorder %s142, %s158
      %p160 = scmp.eq.s32.totalorder %s24, 0
      %p161 = por %p159, %p160
      %s162 = ssub.s32 %s18, %s25
      %p163 = scmp.eq.s32.totalorder %s162, 0
      %s165 = sadd.s32 %s164, 1
      %s166 = scalar_select %p163, %s164, %s165
      %p169 = pneg %p163
      %p170 = scmp.eq.s32.totalorder %s18, 1
      %p171 = por %p169, %p170
      %p172 = scmp.ne.s32.totalorder %s164, %s167
      %p173 = scmp.eq.s32.totalorder %s18, 0
      %p174 = por %p172, %p173
      %p175 = scmp.ne.s32.totalorder %s164, %s167
      %p176 = scmp.eq.s32.totalorder %s23, 1
      %p177 = por %p175, %p176
      %p178 = scmp.ne.s32.totalorder %s167, %s168
      %p179 = scmp.eq.s32.totalorder %s23, 0
      %p180 = por %p178, %p179
      %p181 = scmp.ne.s32.totalorder %s167, %s168
      %p182 = scmp.eq.s32.totalorder %s24, 1
      %p183 = por %p181, %p182
      %p185 = scmp.ne.s32.totalorder %s168, %s184
      %p186 = scmp.eq.s32.totalorder %s24, 0
      %p187 = por %p185, %p186
      %p188 = scmp.le.s32.totalorder 1, %s18
      %p189 = scmp.lt.s32.totalorder %s18, 3
      %p190 = pnand %p188, %p189
      %p191 = pneg %p190
      // Predicated region
      $region9: #{tpu_custom_call.1} parent=5 // pred_check
        _
      $region10: #{tpu_custom_call.1} parent=5 // pred_check_branch
        %193 = sbr.rel (%p190) target = $region12
      $region11: #{tpu_custom_call.1} parent=5 // pred_region
        %s194 = ssub.s32 %s18, 1
        // Predicated region
        $region13: #{tpu_custom_call.1} parent=11 // pred_check
          %p195 = pneg %p39
        $region14: #{tpu_custom_call.1} parent=11 // pred_check_branch
          %197 = sbr.rel (%p195) target = $region16
        $region15: #{tpu_custom_call.1} parent=11 // pred_region
          _
        $region16: #{tpu_custom_call.1} parent=11 // pred_fallthru
          _
        // Predicated region
        $region17: #{tpu_custom_call.1} parent=11 // pred_check
          %p198 = pneg %p60
        $region18: #{tpu_custom_call.1} parent=11 // pred_check_branch
          %200 = sbr.rel (%p198) target = $region20
        $region19: #{tpu_custom_call.1} parent=11 // pred_region
          _
        $region20: #{tpu_custom_call.1} parent=11 // pred_fallthru
          _
        // Predicated region
        $region21: #{tpu_custom_call.1} parent=11 // pred_check
          %p201 = pneg %p81
        $region22: #{tpu_custom_call.1} parent=11 // pred_check_branch
          %203 = sbr.rel (%p201) target = $region24
        $region23: #{tpu_custom_call.1} parent=11 // pred_region
          _
        $region24: #{tpu_custom_call.1} parent=11 // pred_fallthru
          _
        // Predicated region
        $region25: #{tpu_custom_call.1} parent=11 // pred_check
          %p204 = pneg %p102
        $region26: #{tpu_custom_call.1} parent=11 // pred_check_branch
          %206 = sbr.rel (%p204) target = $region28
        $region27: #{tpu_custom_call.1} parent=11 // pred_region
          _
        $region28: #{tpu_custom_call.1} parent=11 // pred_fallthru
          _
      $region12: #{tpu_custom_call.1} parent=5 // pred_fallthru
        _
      %p207 = scmp.lt.s32.totalorder %s18, 2
      // Predicated region
      $region29: #{tpu_custom_call.1} parent=5 // pred_check
        %p208 = pneg %p207
      $region30: #{tpu_custom_call.1} parent=5 // pred_check_branch
        %210 = sbr.rel (%p208) target = $region32
      $region31: #{tpu_custom_call.1} parent=5 // pred_region
        // Predicated region
        $region33: #{tpu_custom_call.1} parent=31 // pred_check
          %p211 = pneg %p122
        $region34: #{tpu_custom_call.1} parent=31 // pred_check_branch
          %213 = sbr.rel (%p211) target = $region36
        $region35: #{tpu_custom_call.1} parent=31 // pred_region
          %p214 = scmp.lt.s32.totalorder %s18, 1
          %s215 = scalar_select %p214, %s18, 1
          %s216 = smul.addr %s215, 4
          %s217 = smul.addr %s216, 8
          %s218 = scalar_lea.vmem %s4, %s217
        $region36: #{tpu_custom_call.1} parent=31 // pred_fallthru
          _
        // Predicated region
        $region37: #{tpu_custom_call.1} parent=31 // pred_check
          %p219 = pneg %p148
        $region38: #{tpu_custom_call.1} parent=31 // pred_check_branch
          %221 = sbr.rel (%p219) target = $region40
        $region39: #{tpu_custom_call.1} parent=31 // pred_region
          %s222 = sand.u32 %s138, 1
          %s223 = scalar_lea.sflag [#allocation4], %s222
          %s224 = sand.u32 %s138, 1
          %s225 = smul.addr %s224, 64
          %s226 = scalar_lea.vmem [#allocation3], %s225
          %228 = vsyncadd %s223, 0
          %s229 = smul.addr %s18, 8
          %s230 = smul.addr %s229, 8
          %s231 = scalar_lea.hbm %s5, %s230
          %s232 = sshll.u32 %s231, 4
          %s233 = int_to_ptr.hbm [resolvable:$true] %s232
          %s234 = sshll.u32 %s226, 4
          %s235 = int_to_ptr.vmem [resolvable:$true] %s234
          %240 = dma.hbm_to_vmem [thread:$0]  %s233, 1024, %s235, %s223, 128, 128, 8
        $region40: #{tpu_custom_call.1} parent=31 // pred_fallthru
          _
      $region32: #{tpu_custom_call.1} parent=5 // pred_fallthru
        _
      %p241 = scmp.le.s32.totalorder 1, %s18
      %p242 = scmp.lt.s32.totalorder %s18, 3
      %p243 = pnand %p241, %p242
      %p244 = pneg %p243
      // Predicated region
      $region41: #{tpu_custom_call.1} parent=5 // pred_check
        _
      $region42: #{tpu_custom_call.1} parent=5 // pred_check_branch
        %246 = sbr.rel (%p243) target = $region44
      $region43: #{tpu_custom_call.1} parent=5 // pred_region
        %s247 = ssub.s32 %s18, 1
        %s248 = sand.u32 %s141, 1
        %s249 = scalar_lea.sflag [#allocation4], %s248
        %s250 = sand.u32 %s141, 1
        %s251 = smul.addr %s250, 64
        %s252 = scalar_lea.vmem [#allocation3], %s251
        // Predicated region
        $region45: #{tpu_custom_call.1} parent=43 // pred_check
          %p253 = pneg %p154
        $region46: #{tpu_custom_call.1} parent=43 // pred_check_branch
          %255 = sbr.rel (%p253) target = $region48
        $region47: #{tpu_custom_call.1} parent=43 // pred_region
          %257 = dma.done %s249, 1024
        $region48: #{tpu_custom_call.1} parent=43 // pred_fallthru
          _
        %p258 = pneg %p39
        %p259 = pneg %p36
        %p260 = pneg %p60
        %p261 = pneg %p57
        %p262 = pneg %p81
        %p263 = pneg %p78
        %p264 = pneg %p102
        %p265 = pneg %p99
        %p266 = scmp.lt.s32.totalorder %s23, 1
        %s267 = scalar_select %p266, %s23, 1
        %s268 = smul.addr %s267, 4
        %s269 = smul.addr %s268, 8
        %s270 = scalar_lea.vmem %s4, %s269
        %p271 = pneg %p128
        %p272 = pneg %p125
        %s273 = sand.u32 %s141, 1
        %s274 = scalar_lea.sflag [#allocation4], %s273
        %s275 = sand.u32 %s141, 1
        %s276 = smul.addr %s275, 64
        %s277 = scalar_lea.vmem [#allocation3], %s276
        %p278 = pneg %p154
        %p279 = pneg %p151
        %p280 = pneg %p180
        %p281 = pneg %p177
        %s282 = sand.u32 %s167, 1
        %s283 = scalar_lea.sflag [#allocation5], %s282
        %s284 = sand.u32 %s167, 1
        %s285 = smul.addr %s284, 16
        %s286 = scalar_lea.vmem [#allocation6], %s285
        %p287 = scmp.lt.s32.totalorder %s23, 1
        %s288 = scalar_select %p287, %s23, 1
        %s289 = smul.addr %s288, 4
        %s290 = smul.addr %s289, 8
        %s291 = scalar_lea.vmem %s4, %s290
        %v293 = vld [vmem:[%s291] sm:$0xff]
        %v294 = vld [vmem:[%s291 + $0x8] sm:$0xff]
        %v295 = vld [vmem:[%s291 + $0x10] sm:$0xff]
        %v296 = vld [vmem:[%s291 + $0x18] sm:$0xff]
        %v297 = vpack.c.bf16 %v293, %v293
        %v298 = vpack.c.bf16 %v294, %v294
        %v299 = vpack.c.bf16 %v295, %v295
        %v300 = vpack.c.bf16 %v296, %v296
        %v301 = vld [vmem:[%s1] sm:$0xf]
        %v306 = vunpack.c.l.b16 %v297
        %v307 = vunpack.c.l.b16 %v298
        %v308 = vunpack.c.l.b16 %v299
        %v309 = vunpack.c.l.b16 %v300
        %v310 = vpack.c.b16 %v307, %v306
        %v311 = vpack.c.b16 %v309, %v308
        %vm312 = vcmask 64512
        %v314 = vsel %vm312, %v310, 0
        %v317 = vsel %vm312, %v311, 0
        %vm319 = vcmask 1043456
        %v321 = vsel %vm319, %v301, 0
        %323 = vmatpush.bf16.msra.mxu0 0
        %324 = vmatpush.bf16.msra.mxu0 0
        %325 = vmatpush.bf16.msra.mxu0 0
        %326 = vmatpush.bf16.msra.mxu0 0
        %327 = vmatpush.bf16.msra.mxu0 0
        %328 = vmatpush.bf16.msra.mxu0 0
        %329 = vmatpush.bf16.msra.mxu0 0
        %330 = vmatpush.bf16.msra.mxu0 %v321
        %331 = vmatmul.bf16.gmra.mxu0 %v314
        %v332 = vpop.f32.mrf.mxu0
        %v333 = vadd.f32 0.0, %v332
        %v334 = vpop.f32.mrf.mxu0
        %v335 = vadd.f32 0.0, %v334
        %336 = vmatmul.bf16.gmra.mxu0 %v317
        %v337 = vpop.f32.mrf.mxu0
        %v338 = vadd.f32 0.0, %v337
        %v339 = vpop.f32.mrf.mxu0
        %v340 = vadd.f32 0.0, %v339
        %341 = vdwg.mxu0
        %v342 = vpack.c.bf16 %v333, %v333
        %v343 = vpack.c.bf16 %v335, %v335
        %v344 = vpack.c.bf16 %v338, %v338
        %v345 = vpack.c.bf16 %v340, %v340
        %v346 = vld [vmem:[%s0] sm:$0xf]
        %v347 = vld [vmem:[%s0 + $0x4] sm:$0xf]
        %v350 = vunpack.c.l.b16 %v346
        %v351 = vunpack.c.l.b16 %v347
        %v352 = vpack.c.b16 %v351, %v350
        %v354 = vsel %vm312, %v352, 0
        %v357 = vsel %vm319, %v342, 0
        %359 = vmatpush.bf16.msra.mxu0 0
        %360 = vmatpush.bf16.msra.mxu0 0
        %361 = vmatpush.bf16.msra.mxu0 0
        %362 = vmatpush.bf16.msra.mxu0 0
        %363 = vmatpush.bf16.msra.mxu0 0
        %364 = vmatpush.bf16.msra.mxu0 0
        %365 = vmatpush.bf16.msra.mxu0 0
        %366 = vmatpush.bf16.msra.mxu0 %v357
        %367 = vmatmul.bf16.gmra.mxu0 %v354
        %v368 = vpop.f32.mrf.mxu0
        %v369 = vadd.f32 0.0, %v368
        %v370 = vpop.f32.mrf.mxu0
        %v371 = vadd.f32 0.0, %v370
        %372 = vdwg.mxu0
        %v374 = vsel %vm319, %v343, 0
        %376 = vmatpush.bf16.msra.mxu0 0
        %377 = vmatpush.bf16.msra.mxu0 0
        %378 = vmatpush.bf16.msra.mxu0 0
        %379 = vmatpush.bf16.msra.mxu0 0
        %380 = vmatpush.bf16.msra.mxu0 0
        %381 = vmatpush.bf16.msra.mxu0 0
        %382 = vmatpush.bf16.msra.mxu0 0
        %383 = vmatpush.bf16.msra.mxu0 %v374
        %384 = vmatmul.bf16.gmra.mxu0 %v354
        %v385 = vpop.f32.mrf.mxu0
        %v386 = vadd.f32 0.0, %v385
        %v387 = vpop.f32.mrf.mxu0
        %v388 = vadd.f32 0.0, %v387
        %389 = vdwg.mxu0
        %v391 = vsel %vm319, %v344, 0
        %393 = vmatpush.bf16.msra.mxu0 0
        %394 = vmatpush.bf16.msra.mxu0 0
        %395 = vmatpush.bf16.msra.mxu0 0
        %396 = vmatpush.bf16.msra.mxu0 0
        %397 = vmatpush.bf16.msra.mxu0 0
        %398 = vmatpush.bf16.msra.mxu0 0
        %399 = vmatpush.bf16.msra.mxu0 0
        %400 = vmatpush.bf16.msra.mxu0 %v391
        %401 = vmatmul.bf16.gmra.mxu0 %v354
        %v402 = vpop.f32.mrf.mxu0
        %v403 = vadd.f32 0.0, %v402
        %v404 = vpop.f32.mrf.mxu0
        %v405 = vadd.f32 0.0, %v404
        %406 = vdwg.mxu0
        %v408 = vsel %vm319, %v345, 0
        %410 = vmatpush.bf16.msra.mxu0 0
        %411 = vmatpush.bf16.msra.mxu0 0
        %412 = vmatpush.bf16.msra.mxu0 0
        %413 = vmatpush.bf16.msra.mxu0 0
        %414 = vmatpush.bf16.msra.mxu0 0
        %415 = vmatpush.bf16.msra.mxu0 0
        %416 = vmatpush.bf16.msra.mxu0 0
        %417 = vmatpush.bf16.msra.mxu0 %v408
        %418 = vmatmul.bf16.gmra.mxu0 %v354
        %v419 = vpop.f32.mrf.mxu0
        %v420 = vadd.f32 0.0, %v419
        %v421 = vpop.f32.mrf.mxu0
        %v422 = vadd.f32 0.0, %v421
        %423 = vdwg.mxu0
        %v424 = vld [vmem:[%s252] sm:$0xff]
        %v425 = vld [vmem:[%s252 + $0x8] sm:$0xff]
        %v426 = vld [vmem:[%s252 + $0x10] sm:$0xff]
        %v427 = vld [vmem:[%s252 + $0x18] sm:$0xff]
        %v428 = vld [vmem:[%s252 + $0x20] sm:$0xff]
        %v429 = vld [vmem:[%s252 + $0x28] sm:$0xff]
        %v430 = vld [vmem:[%s252 + $0x30] sm:$0xff]
        %v431 = vld [vmem:[%s252 + $0x38] sm:$0xff]
        %vm432 = vcmask 139264
        %433 = vst.msk [vmem:[#allocation2] sm:$0x1] %vm432, 0.0
        %434 = vst.msk [vmem:[#allocation2 + $0x18] sm:$0x1] %vm432, 0.0
        %435 = vst.msk [vmem:[#allocation2 + $0x30] sm:$0x1] %vm432, 0.0
        %436 = vst.msk [vmem:[#allocation2 + $0x48] sm:$0x1] %vm432, 0.0
        %437 = vst.msk [vmem:[#allocation2 + $0x11] sm:$0x1] %vm432, 0.0
        %438 = vst.msk [vmem:[#allocation2 + $0x29] sm:$0x1] %vm432, 0.0
        %439 = vst.msk [vmem:[#allocation2 + $0x41] sm:$0x1] %vm432, 0.0
        %440 = vst.msk [vmem:[#allocation2 + $0x59] sm:$0x1] %vm432, 0.0
        %vm441 = vcmask 7168
        %442 = vst.msk [vmem:[#allocation2 + $0x1] sm:$0xff] %vm441, 0.0
        %443 = vst.msk [vmem:[#allocation2 + $0x9] sm:$0xff] %vm441, 0.0
        %444 = vst.msk [vmem:[#allocation2 + $0x19] sm:$0xff] %vm441, 0.0
        %445 = vst.msk [vmem:[#allocation2 + $0x21] sm:$0xff] %vm441, 0.0
        %446 = vst.msk [vmem:[#allocation2 + $0x31] sm:$0xff] %vm441, 0.0
        %447 = vst.msk [vmem:[#allocation2 + $0x39] sm:$0xff] %vm441, 0.0
        %448 = vst.msk [vmem:[#allocation2 + $0x49] sm:$0xff] %vm441, 0.0
        %449 = vst.msk [vmem:[#allocation2 + $0x51] sm:$0xff] %vm441, 0.0
        %vm450 = vcmask 146568
        %451 = vst.msk [vmem:[#allocation2 + $0x1] sm:$0xff] %vm450, 0.0
        %452 = vst.msk [vmem:[#allocation2 + $0x9] sm:$0xff] %vm450, 0.0
        %453 = vst.msk [vmem:[#allocation2 + $0x19] sm:$0xff] %vm450, 0.0
        %454 = vst.msk [vmem:[#allocation2 + $0x21] sm:$0xff] %vm450, 0.0
        %455 = vst.msk [vmem:[#allocation2 + $0x31] sm:$0xff] %vm450, 0.0
        %456 = vst.msk [vmem:[#allocation2 + $0x39] sm:$0xff] %vm450, 0.0
        %457 = vst.msk [vmem:[#allocation2 + $0x49] sm:$0xff] %vm450, 0.0
        %458 = vst.msk [vmem:[#allocation2 + $0x51] sm:$0xff] %vm450, 0.0
        %467 = vrot.lane.b32.xlu0 %v424, 1
        %v468 = vpop.permute.xlu0 %467
        %469 = vrot.lane.b32.xlu0 %v425, 1
        %v470 = vpop.permute.xlu0 %469
        %471 = vrot.lane.b32.xlu0 %v426, 1
        %v472 = vpop.permute.xlu0 %471
        %473 = vrot.lane.b32.xlu0 %v427, 1
        %v474 = vpop.permute.xlu0 %473
        %475 = vrot.lane.b32.xlu0 %v428, 1
        %v476 = vpop.permute.xlu0 %475
        %477 = vrot.lane.b32.xlu0 %v429, 1
        %v478 = vpop.permute.xlu0 %477
        %479 = vrot.lane.b32.xlu0 %v430, 1
        %v480 = vpop.permute.xlu0 %479
        %481 = vrot.lane.b32.xlu0 %v431, 1
        %v482 = vpop.permute.xlu0 %481
        %vm491 = vcmask 138248
        %492 = vst.msk [vmem:[#allocation2 + $0x1] sm:$0xff] %vm491, %v468
        %493 = vst.msk [vmem:[#allocation2 + $0x9] sm:$0xff] %vm491, %v470
        %494 = vst.msk [vmem:[#allocation2 + $0x19] sm:$0xff] %vm491, %v472
        %495 = vst.msk [vmem:[#allocation2 + $0x21] sm:$0xff] %vm491, %v474
        %496 = vst.msk [vmem:[#allocation2 + $0x31] sm:$0xff] %vm491, %v476
        %497 = vst.msk [vmem:[#allocation2 + $0x39] sm:$0xff] %vm491, %v478
        %498 = vst.msk [vmem:[#allocation2 + $0x49] sm:$0xff] %vm491, %v480
        %499 = vst.msk [vmem:[#allocation2 + $0x51] sm:$0xff] %vm491, %v482
        %s500 = scalar_lea.vmem [#allocation2], 96
        %501 = vst.msk [vmem:[%s500] sm:$0x1] %vm432, 0.0
        %502 = vst.msk [vmem:[%s500 + $0x18] sm:$0x1] %vm432, 0.0
        %503 = vst.msk [vmem:[%s500 + $0x30] sm:$0x1] %vm432, 0.0
        %504 = vst.msk [vmem:[%s500 + $0x48] sm:$0x1] %vm432, 0.0
        %505 = vst.msk [vmem:[%s500 + $0x11] sm:$0x1] %vm432, 0.0
        %506 = vst.msk [vmem:[%s500 + $0x29] sm:$0x1] %vm432, 0.0
        %507 = vst.msk [vmem:[%s500 + $0x41] sm:$0x1] %vm432, 0.0
        %508 = vst.msk [vmem:[%s500 + $0x59] sm:$0x1] %vm432, 0.0
        %509 = vst.msk [vmem:[%s500 + $0x1] sm:$0xff] %vm441, 0.0
        %510 = vst.msk [vmem:[%s500 + $0x9] sm:$0xff] %vm441, 0.0
        %511 = vst.msk [vmem:[%s500 + $0x19] sm:$0xff] %vm441, 0.0
        %512 = vst.msk [vmem:[%s500 + $0x21] sm:$0xff] %vm441, 0.0
        %513 = vst.msk [vmem:[%s500 + $0x31] sm:$0xff] %vm441, 0.0
        %514 = vst.msk [vmem:[%s500 + $0x39] sm:$0xff] %vm441, 0.0
        %515 = vst.msk [vmem:[%s500 + $0x49] sm:$0xff] %vm441, 0.0
        %516 = vst.msk [vmem:[%s500 + $0x51] sm:$0xff] %vm441, 0.0
        %517 = vst.msk [vmem:[%s500 + $0x1] sm:$0xff] %vm450, 0.0
        %518 = vst.msk [vmem:[%s500 + $0x9] sm:$0xff] %vm450, 0.0
        %519 = vst.msk [vmem:[%s500 + $0x19] sm:$0xff] %vm450, 0.0
        %520 = vst.msk [vmem:[%s500 + $0x21] sm:$0xff] %vm450, 0.0
        %521 = vst.msk [vmem:[%s500 + $0x31] sm:$0xff] %vm450, 0.0
        %522 = vst.msk [vmem:[%s500 + $0x39] sm:$0xff] %vm450, 0.0
        %523 = vst.msk [vmem:[%s500 + $0x49] sm:$0xff] %vm450, 0.0
        %524 = vst.msk [vmem:[%s500 + $0x51] sm:$0xff] %vm450, 0.0
        %533 = vrot.lane.b32.xlu0 %v369, 1
        %v534 = vpop.permute.xlu0 %533
        %535 = vrot.lane.b32.xlu0 %v371, 1
        %v536 = vpop.permute.xlu0 %535
        %537 = vrot.lane.b32.xlu0 %v386, 1
        %v538 = vpop.permute.xlu0 %537
        %539 = vrot.lane.b32.xlu0 %v388, 1
        %v540 = vpop.permute.xlu0 %539
        %541 = vrot.lane.b32.xlu0 %v403, 1
        %v542 = vpop.permute.xlu0 %541
        %543 = vrot.lane.b32.xlu0 %v405, 1
        %v544 = vpop.permute.xlu0 %543
        %545 = vrot.lane.b32.xlu0 %v420, 1
        %v546 = vpop.permute.xlu0 %545
        %547 = vrot.lane.b32.xlu0 %v422, 1
        %v548 = vpop.permute.xlu0 %547
        %557 = vst.msk [vmem:[%s500 + $0x1] sm:$0xff] %vm491, %v534
        %558 = vst.msk [vmem:[%s500 + $0x9] sm:$0xff] %vm491, %v536
        %559 = vst.msk [vmem:[%s500 + $0x19] sm:$0xff] %vm491, %v538
        %560 = vst.msk [vmem:[%s500 + $0x21] sm:$0xff] %vm491, %v540
        %561 = vst.msk [vmem:[%s500 + $0x31] sm:$0xff] %vm491, %v542
        %562 = vst.msk [vmem:[%s500 + $0x39] sm:$0xff] %vm491, %v544
        %563 = vst.msk [vmem:[%s500 + $0x49] sm:$0xff] %vm491, %v546
        %564 = vst.msk [vmem:[%s500 + $0x51] sm:$0xff] %vm491, %v548
        %v565 = vld [vmem:[#allocation2] sm:$0xff]
        %v566 = vld [vmem:[#allocation2 + $0x8] sm:$0xff]
        %v567 = vld [vmem:[#allocation2 + $0x10] sm:$0x3]
        %v568 = vld [vmem:[#allocation2 + $0x18] sm:$0xff]
        %v569 = vld [vmem:[#allocation2 + $0x20] sm:$0xff]
        %v570 = vld [vmem:[#allocation2 + $0x28] sm:$0x3]
        %v571 = vld [vmem:[#allocation2 + $0x30] sm:$0xff]
        %v572 = vld [vmem:[#allocation2 + $0x38] sm:$0xff]
        %v573 = vld [vmem:[#allocation2 + $0x40] sm:$0x3]
        %v574 = vld [vmem:[#allocation2 + $0x48] sm:$0xff]
        %v575 = vld [vmem:[#allocation2 + $0x50] sm:$0xff]
        %v576 = vld [vmem:[#allocation2 + $0x58] sm:$0x3]
        %v577 = vld [vmem:[#allocation2 + $0x60] sm:$0xff]
        %v578 = vld [vmem:[#allocation2 + $0x68] sm:$0xff]
        %v579 = vld [vmem:[#allocation2 + $0x70] sm:$0x3]
        %v580 = vld [vmem:[#allocation2 + $0x78] sm:$0xff]
        %v581 = vld [vmem:[#allocation2 + $0x80] sm:$0xff]
        %v582 = vld [vmem:[#allocation2 + $0x88] sm:$0x3]
        %v583 = vld [vmem:[#allocation2 + $0x90] sm:$0xff]
        %v584 = vld [vmem:[#allocation2 + $0x98] sm:$0xff]
        %v585 = vld [vmem:[#allocation2 + $0xa0] sm:$0x3]
        %v586 = vld [vmem:[#allocation2 + $0xa8] sm:$0xff]
        %v587 = vld [vmem:[#allocation2 + $0xb0] sm:$0xff]
        %v588 = vld [vmem:[#allocation2 + $0xb8] sm:$0x3]
        %v589 = vrot.slane %v571, 4
        %vm590 = vcmask 1047556
        %v591 = vsel %vm590, %v589, %v565
        %v592 = vrot.slane %v565, 4
        %v593 = vsel %vm590, %v571, %v592
        %v595 = vunpack.c.l.s4 1983009808
        %v596 = vunpack.c.0.s8 %v595
        %v597 = vperm.slane %v591, %v596
        %v599 = vunpack.c.l.s4 1983009808
        %v600 = vunpack.c.0.s8 %v599
        %v601 = vperm.slane %v593, %v600
        %v602 = vrot.slane %v574, 4
        %v603 = vsel %vm590, %v602, %v568
        %v604 = vrot.slane %v568, 4
        %v605 = vsel %vm590, %v574, %v604
        %v607 = vunpack.c.l.s4 1983009808
        %v608 = vunpack.c.0.s8 %v607
        %v609 = vperm.slane %v603, %v608
        %v611 = vunpack.c.l.s4 1983009808
        %v612 = vunpack.c.0.s8 %v611
        %v613 = vperm.slane %v605, %v612
        %v614 = vrot.slane %v583, 4
        %v615 = vsel %vm590, %v614, %v577
        %v616 = vrot.slane %v577, 4
        %v617 = vsel %vm590, %v583, %v616
        %v619 = vunpack.c.l.s4 1983009808
        %v620 = vunpack.c.0.s8 %v619
        %v621 = vperm.slane %v615, %v620
        %v623 = vunpack.c.l.s4 1983009808
        %v624 = vunpack.c.0.s8 %v623
        %v625 = vperm.slane %v617, %v624
        %v626 = vrot.slane %v586, 4
        %v627 = vsel %vm590, %v626, %v580
        %v628 = vrot.slane %v580, 4
        %v629 = vsel %vm590, %v586, %v628
        %v631 = vunpack.c.l.s4 1983009808
        %v632 = vunpack.c.0.s8 %v631
        %v633 = vperm.slane %v627, %v632
        %v635 = vunpack.c.l.s4 1983009808
        %v636 = vunpack.c.0.s8 %v635
        %v637 = vperm.slane %v629, %v636
        %v638 = vrot.slane %v609, 4
        %v639 = vsel %vm590, %v638, %v597
        %v640 = vrot.slane %v597, 4
        %v641 = vsel %vm590, %v609, %v640
        %v643 = vunpack.c.l.s4 1934713408
        %v644 = vunpack.c.0.s8 %v643
        %v645 = vperm.slane %v639, %v644
        %v647 = vunpack.c.l.s4 1934713408
        %v648 = vunpack.c.0.s8 %v647
        %v649 = vperm.slane %v641, %v648
        %v650 = vrot.slane %v613, 4
        %v651 = vsel %vm590, %v650, %v601
        %v652 = vrot.slane %v601, 4
        %v653 = vsel %vm590, %v613, %v652
        %v655 = vunpack.c.l.s4 1934713408
        %v656 = vunpack.c.0.s8 %v655
        %v657 = vperm.slane %v651, %v656
        %v659 = vunpack.c.l.s4 1934713408
        %v660 = vunpack.c.0.s8 %v659
        %v661 = vperm.slane %v653, %v660
        %v662 = vrot.slane %v633, 4
        %v663 = vsel %vm590, %v662, %v621
        %v664 = vrot.slane %v621, 4
        %v665 = vsel %vm590, %v633, %v664
        %v667 = vunpack.c.l.s4 1934713408
        %v668 = vunpack.c.0.s8 %v667
        %v669 = vperm.slane %v663, %v668
        %v671 = vunpack.c.l.s4 1934713408
        %v672 = vunpack.c.0.s8 %v671
        %v673 = vperm.slane %v665, %v672
        %v674 = vrot.slane %v637, 4
        %v675 = vsel %vm590, %v674, %v625
        %v676 = vrot.slane %v625, 4
        %v677 = vsel %vm590, %v637, %v676
        %v679 = vunpack.c.l.s4 1934713408
        %v680 = vunpack.c.0.s8 %v679
        %v681 = vperm.slane %v675, %v680
        %v683 = vunpack.c.l.s4 1934713408
        %v684 = vunpack.c.0.s8 %v683
        %v685 = vperm.slane %v677, %v684
        %v686 = vrot.slane %v669, 4
        %v687 = vsel %vm590, %v686, %v645
        %v688 = vrot.slane %v645, 4
        %v689 = vsel %vm590, %v669, %v688
        %v690 = vrot.slane %v673, 4
        %v691 = vsel %vm590, %v690, %v649
        %v692 = vrot.slane %v649, 4
        %v693 = vsel %vm590, %v673, %v692
        %v694 = vrot.slane %v681, 4
        %v695 = vsel %vm590, %v694, %v657
        %v696 = vrot.slane %v657, 4
        %v697 = vsel %vm590, %v681, %v696
        %v698 = vrot.slane %v685, 4
        %v699 = vsel %vm590, %v698, %v661
        %v700 = vrot.slane %v661, 4
        %v701 = vsel %vm590, %v685, %v700
        %v702 = vrot.slane %v572, 4
        %v703 = vsel %vm590, %v702, %v566
        %v704 = vrot.slane %v566, 4
        %v705 = vsel %vm590, %v572, %v704
        %v707 = vunpack.c.l.s4 1983009808
        %v708 = vunpack.c.0.s8 %v707
        %v709 = vperm.slane %v703, %v708
        %v711 = vunpack.c.l.s4 1983009808
        %v712 = vunpack.c.0.s8 %v711
        %v713 = vperm.slane %v705, %v712
        %v714 = vrot.slane %v575, 4
        %v715 = vsel %vm590, %v714, %v569
        %v716 = vrot.slane %v569, 4
        %v717 = vsel %vm590, %v575, %v716
        %v719 = vunpack.c.l.s4 1983009808
        %v720 = vunpack.c.0.s8 %v719
        %v721 = vperm.slane %v715, %v720
        %v723 = vunpack.c.l.s4 1983009808
        %v724 = vunpack.c.0.s8 %v723
        %v725 = vperm.slane %v717, %v724
        %v726 = vrot.slane %v584, 4
        %v727 = vsel %vm590, %v726, %v578
        %v728 = vrot.slane %v578, 4
        %v729 = vsel %vm590, %v584, %v728
        %v731 = vunpack.c.l.s4 1983009808
        %v732 = vunpack.c.0.s8 %v731
        %v733 = vperm.slane %v727, %v732
        %v735 = vunpack.c.l.s4 1983009808
        %v736 = vunpack.c.0.s8 %v735
        %v737 = vperm.slane %v729, %v736
        %v738 = vrot.slane %v587, 4
        %v739 = vsel %vm590, %v738, %v581
        %v740 = vrot.slane %v581, 4
        %v741 = vsel %vm590, %v587, %v740
        %v743 = vunpack.c.l.s4 1983009808
        %v744 = vunpack.c.0.s8 %v743
        %v745 = vperm.slane %v739, %v744
        %v747 = vunpack.c.l.s4 1983009808
        %v748 = vunpack.c.0.s8 %v747
        %v749 = vperm.slane %v741, %v748
        %v750 = vrot.slane %v721, 4
        %v751 = vsel %vm590, %v750, %v709
        %v752 = vrot.slane %v709, 4
        %v753 = vsel %vm590, %v721, %v752
        %v755 = vunpack.c.l.s4 1934713408
        %v756 = vunpack.c.0.s8 %v755
        %v757 = vperm.slane %v751, %v756
        %v759 = vunpack.c.l.s4 1934713408
        %v760 = vunpack.c.0.s8 %v759
        %v761 = vperm.slane %v753, %v760
        %v762 = vrot.slane %v725, 4
        %v763 = vsel %vm590, %v762, %v713
        %v764 = vrot.slane %v713, 4
        %v765 = vsel %vm590, %v725, %v764
        %v767 = vunpack.c.l.s4 1934713408
        %v768 = vunpack.c.0.s8 %v767
        %v769 = vperm.slane %v763, %v768
        %v771 = vunpack.c.l.s4 1934713408
        %v772 = vunpack.c.0.s8 %v771
        %v773 = vperm.slane %v765, %v772
        %v774 = vrot.slane %v745, 4
        %v775 = vsel %vm590, %v774, %v733
        %v776 = vrot.slane %v733, 4
        %v777 = vsel %vm590, %v745, %v776
        %v779 = vunpack.c.l.s4 1934713408
        %v780 = vunpack.c.0.s8 %v779
        %v781 = vperm.slane %v775, %v780
        %v783 = vunpack.c.l.s4 1934713408
        %v784 = vunpack.c.0.s8 %v783
        %v785 = vperm.slane %v777, %v784
        %v786 = vrot.slane %v749, 4
        %v787 = vsel %vm590, %v786, %v737
        %v788 = vrot.slane %v737, 4
        %v789 = vsel %vm590, %v749, %v788
        %v791 = vunpack.c.l.s4 1934713408
        %v792 = vunpack.c.0.s8 %v791
        %v793 = vperm.slane %v787, %v792
        %v795 = vunpack.c.l.s4 1934713408
        %v796 = vunpack.c.0.s8 %v795
        %v797 = vperm.slane %v789, %v796
        %v798 = vrot.slane %v781, 4
        %v799 = vsel %vm590, %v798, %v757
        %v800 = vrot.slane %v757, 4
        %v801 = vsel %vm590, %v781, %v800
        %v802 = vrot.slane %v785, 4
        %v803 = vsel %vm590, %v802, %v761
        %v804 = vrot.slane %v761, 4
        %v805 = vsel %vm590, %v785, %v804
        %v806 = vrot.slane %v793, 4
        %v807 = vsel %vm590, %v806, %v769
        %v808 = vrot.slane %v769, 4
        %v809 = vsel %vm590, %v793, %v808
        %v810 = vrot.slane %v797, 4
        %v811 = vsel %vm590, %v810, %v773
        %v812 = vrot.slane %v773, 4
        %v813 = vsel %vm590, %v797, %v812
        %815 = vrot.lane.b32.xlu0 %v689, 16
        %v816 = vpop.permute.xlu0 %815
        %819 = vrot.lane.b32.xlu0 %v691, 32
        %v820 = vpop.permute.xlu0 %819
        %823 = vrot.lane.b32.xlu0 %v693, 48
        %v824 = vpop.permute.xlu0 %823
        %827 = vrot.lane.b32.xlu0 %v695, 64
        %v828 = vpop.permute.xlu0 %827
        %831 = vrot.lane.b32.xlu0 %v697, 80
        %v832 = vpop.permute.xlu0 %831
        %835 = vrot.lane.b32.xlu0 %v699, 96
        %v836 = vpop.permute.xlu0 %835
        %839 = vrot.lane.b32.xlu0 %v701, 112
        %v840 = vpop.permute.xlu0 %839
        %843 = vrot.lane.b32.xlu0 %v801, 16
        %v844 = vpop.permute.xlu0 %843
        %847 = vrot.lane.b32.xlu0 %v803, 32
        %v848 = vpop.permute.xlu0 %847
        %851 = vrot.lane.b32.xlu0 %v805, 48
        %v852 = vpop.permute.xlu0 %851
        %855 = vrot.lane.b32.xlu0 %v807, 64
        %v856 = vpop.permute.xlu0 %855
        %859 = vrot.lane.b32.xlu0 %v809, 80
        %v860 = vpop.permute.xlu0 %859
        %863 = vrot.lane.b32.xlu0 %v811, 96
        %v864 = vpop.permute.xlu0 %863
        %867 = vrot.lane.b32.xlu0 %v813, 112
        %v868 = vpop.permute.xlu0 %867
        %vm870 = vcmask 130048
        %v871 = vsel %vm870, %v687, %v816
        %vm872 = vcmask 261120
        %v873 = vsel %vm872, %v871, %v820
        %vm874 = vcmask 392192
        %v875 = vsel %vm874, %v873, %v824
        %vm876 = vcmask 523264
        %v877 = vsel %vm876, %v875, %v828
        %vm878 = vcmask 654336
        %v879 = vsel %vm878, %v877, %v832
        %vm880 = vcmask 785408
        %v881 = vsel %vm880, %v879, %v836
        %vm882 = vcmask 916480
        %v883 = vsel %vm882, %v881, %v840
        %v884 = vsel %vm870, %v799, %v844
        %v885 = vsel %vm872, %v884, %v848
        %v886 = vsel %vm874, %v885, %v852
        %v887 = vsel %vm876, %v886, %v856
        %v888 = vsel %vm878, %v887, %v860
        %v889 = vsel %vm880, %v888, %v864
        %v890 = vsel %vm882, %v889, %v868
        %v891 = vld [vmem:[%s2] sm:$0xf]
        %v892 = vpack.c.bf16 %v883, %v883
        %v893 = vpack.c.bf16 %v890, %v890
        %910 = vrot.lane.b32.xlu0 %v565, 127
        %v911 = vpop.permute.xlu0 %910
        %912 = vrot.lane.b32.xlu0 %v566, 127
        %v913 = vpop.permute.xlu0 %912
        %914 = vrot.lane.b32.xlu0 %v568, 127
        %v915 = vpop.permute.xlu0 %914
        %916 = vrot.lane.b32.xlu0 %v569, 127
        %v917 = vpop.permute.xlu0 %916
        %918 = vrot.lane.b32.xlu0 %v571, 127
        %v919 = vpop.permute.xlu0 %918
        %920 = vrot.lane.b32.xlu0 %v572, 127
        %v921 = vpop.permute.xlu0 %920
        %922 = vrot.lane.b32.xlu0 %v574, 127
        %v923 = vpop.permute.xlu0 %922
        %924 = vrot.lane.b32.xlu0 %v575, 127
        %v925 = vpop.permute.xlu0 %924
        %926 = vrot.lane.b32.xlu0 %v577, 127
        %v927 = vpop.permute.xlu0 %926
        %928 = vrot.lane.b32.xlu0 %v578, 127
        %v929 = vpop.permute.xlu0 %928
        %930 = vrot.lane.b32.xlu0 %v580, 127
        %v931 = vpop.permute.xlu0 %930
        %932 = vrot.lane.b32.xlu0 %v581, 127
        %v933 = vpop.permute.xlu0 %932
        %934 = vrot.lane.b32.xlu0 %v583, 127
        %v935 = vpop.permute.xlu0 %934
        %936 = vrot.lane.b32.xlu0 %v584, 127
        %v937 = vpop.permute.xlu0 %936
        %938 = vrot.lane.b32.xlu0 %v586, 127
        %v939 = vpop.permute.xlu0 %938
        %940 = vrot.lane.b32.xlu0 %v587, 127
        %v941 = vpop.permute.xlu0 %940
        %v958 = vrot.slane %v919, 4
        %v959 = vsel %vm590, %v958, %v911
        %v960 = vrot.slane %v911, 4
        %v961 = vsel %vm590, %v919, %v960
        %v963 = vunpack.c.l.s4 1983009808
        %v964 = vunpack.c.0.s8 %v963
        %v965 = vperm.slane %v959, %v964
        %v967 = vunpack.c.l.s4 1983009808
        %v968 = vunpack.c.0.s8 %v967
        %v969 = vperm.slane %v961, %v968
        %v970 = vrot.slane %v923, 4
        %v971 = vsel %vm590, %v970, %v915
        %v972 = vrot.slane %v915, 4
        %v973 = vsel %vm590, %v923, %v972
        %v975 = vunpack.c.l.s4 1983009808
        %v976 = vunpack.c.0.s8 %v975
        %v977 = vperm.slane %v971, %v976
        %v979 = vunpack.c.l.s4 1983009808
        %v980 = vunpack.c.0.s8 %v979
        %v981 = vperm.slane %v973, %v980
        %v982 = vrot.slane %v935, 4
        %v983 = vsel %vm590, %v982, %v927
        %v984 = vrot.slane %v927, 4
        %v985 = vsel %vm590, %v935, %v984
        %v987 = vunpack.c.l.s4 1983009808
        %v988 = vunpack.c.0.s8 %v987
        %v989 = vperm.slane %v983, %v988
        %v991 = vunpack.c.l.s4 1983009808
        %v992 = vunpack.c.0.s8 %v991
        %v993 = vperm.slane %v985, %v992
        %v994 = vrot.slane %v939, 4
        %v995 = vsel %vm590, %v994, %v931
        %v996 = vrot.slane %v931, 4
        %v997 = vsel %vm590, %v939, %v996
        %v999 = vunpack.c.l.s4 1983009808
        %v1000 = vunpack.c.0.s8 %v999
        %v1001 = vperm.slane %v995, %v1000
        %v1003 = vunpack.c.l.s4 1983009808
        %v1004 = vunpack.c.0.s8 %v1003
        %v1005 = vperm.slane %v997, %v1004
        %v1006 = vrot.slane %v977, 4
        %v1007 = vsel %vm590, %v1006, %v965
        %v1008 = vrot.slane %v965, 4
        %v1009 = vsel %vm590, %v977, %v1008
        %v1011 = vunpack.c.l.s4 1934713408
        %v1012 = vunpack.c.0.s8 %v1011
        %v1013 = vperm.slane %v1007, %v1012
        %v1015 = vunpack.c.l.s4 1934713408
        %v1016 = vunpack.c.0.s8 %v1015
        %v1017 = vperm.slane %v1009, %v1016
        %v1018 = vrot.slane %v981, 4
        %v1019 = vsel %vm590, %v1018, %v969
        %v1020 = vrot.slane %v969, 4
        %v1021 = vsel %vm590, %v981, %v1020
        %v1023 = vunpack.c.l.s4 1934713408
        %v1024 = vunpack.c.0.s8 %v1023
        %v1025 = vperm.slane %v1019, %v1024
        %v1027 = vunpack.c.l.s4 1934713408
        %v1028 = vunpack.c.0.s8 %v1027
        %v1029 = vperm.slane %v1021, %v1028
        %v1030 = vrot.slane %v1001, 4
        %v1031 = vsel %vm590, %v1030, %v989
        %v1032 = vrot.slane %v989, 4
        %v1033 = vsel %vm590, %v1001, %v1032
        %v1035 = vunpack.c.l.s4 1934713408
        %v1036 = vunpack.c.0.s8 %v1035
        %v1037 = vperm.slane %v1031, %v1036
        %v1039 = vunpack.c.l.s4 1934713408
        %v1040 = vunpack.c.0.s8 %v1039
        %v1041 = vperm.slane %v1033, %v1040
        %v1042 = vrot.slane %v1005, 4
        %v1043 = vsel %vm590, %v1042, %v993
        %v1044 = vrot.slane %v993, 4
        %v1045 = vsel %vm590, %v1005, %v1044
        %v1047 = vunpack.c.l.s4 1934713408
        %v1048 = vunpack.c.0.s8 %v1047
        %v1049 = vperm.slane %v1043, %v1048
        %v1051 = vunpack.c.l.s4 1934713408
        %v1052 = vunpack.c.0.s8 %v1051
        %v1053 = vperm.slane %v1045, %v1052
        %v1054 = vrot.slane %v1037, 4
        %v1055 = vsel %vm590, %v1054, %v1013
        %v1056 = vrot.slane %v1013, 4
        %v1057 = vsel %vm590, %v1037, %v1056
        %v1058 = vrot.slane %v1041, 4
        %v1059 = vsel %vm590, %v1058, %v1017
        %v1060 = vrot.slane %v1017, 4
        %v1061 = vsel %vm590, %v1041, %v1060
        %v1062 = vrot.slane %v1049, 4
        %v1063 = vsel %vm590, %v1062, %v1025
        %v1064 = vrot.slane %v1025, 4
        %v1065 = vsel %vm590, %v1049, %v1064
        %v1066 = vrot.slane %v1053, 4
        %v1067 = vsel %vm590, %v1066, %v1029
        %v1068 = vrot.slane %v1029, 4
        %v1069 = vsel %vm590, %v1053, %v1068
        %v1070 = vrot.slane %v921, 4
        %v1071 = vsel %vm590, %v1070, %v913
        %v1072 = vrot.slane %v913, 4
        %v1073 = vsel %vm590, %v921, %v1072
        %v1075 = vunpack.c.l.s4 1983009808
        %v1076 = vunpack.c.0.s8 %v1075
        %v1077 = vperm.slane %v1071, %v1076
        %v1079 = vunpack.c.l.s4 1983009808
        %v1080 = vunpack.c.0.s8 %v1079
        %v1081 = vperm.slane %v1073, %v1080
        %v1082 = vrot.slane %v925, 4
        %v1083 = vsel %vm590, %v1082, %v917
        %v1084 = vrot.slane %v917, 4
        %v1085 = vsel %vm590, %v925, %v1084
        %v1087 = vunpack.c.l.s4 1983009808
        %v1088 = vunpack.c.0.s8 %v1087
        %v1089 = vperm.slane %v1083, %v1088
        %v1091 = vunpack.c.l.s4 1983009808
        %v1092 = vunpack.c.0.s8 %v1091
        %v1093 = vperm.slane %v1085, %v1092
        %v1094 = vrot.slane %v937, 4
        %v1095 = vsel %vm590, %v1094, %v929
        %v1096 = vrot.slane %v929, 4
        %v1097 = vsel %vm590, %v937, %v1096
        %v1099 = vunpack.c.l.s4 1983009808
        %v1100 = vunpack.c.0.s8 %v1099
        %v1101 = vperm.slane %v1095, %v1100
        %v1103 = vunpack.c.l.s4 1983009808
        %v1104 = vunpack.c.0.s8 %v1103
        %v1105 = vperm.slane %v1097, %v1104
        %v1106 = vrot.slane %v941, 4
        %v1107 = vsel %vm590, %v1106, %v933
        %v1108 = vrot.slane %v933, 4
        %v1109 = vsel %vm590, %v941, %v1108
        %v1111 = vunpack.c.l.s4 1983009808
        %v1112 = vunpack.c.0.s8 %v1111
        %v1113 = vperm.slane %v1107, %v1112
        %v1115 = vunpack.c.l.s4 1983009808
        %v1116 = vunpack.c.0.s8 %v1115
        %v1117 = vperm.slane %v1109, %v1116
        %v1118 = vrot.slane %v1089, 4
        %v1119 = vsel %vm590, %v1118, %v1077
        %v1120 = vrot.slane %v1077, 4
        %v1121 = vsel %vm590, %v1089, %v1120
        %v1123 = vunpack.c.l.s4 1934713408
        %v1124 = vunpack.c.0.s8 %v1123
        %v1125 = vperm.slane %v1119, %v1124
        %v1127 = vunpack.c.l.s4 1934713408
        %v1128 = vunpack.c.0.s8 %v1127
        %v1129 = vperm.slane %v1121, %v1128
        %v1130 = vrot.slane %v1093, 4
        %v1131 = vsel %vm590, %v1130, %v1081
        %v1132 = vrot.slane %v1081, 4
        %v1133 = vsel %vm590, %v1093, %v1132
        %v1135 = vunpack.c.l.s4 1934713408
        %v1136 = vunpack.c.0.s8 %v1135
        %v1137 = vperm.slane %v1131, %v1136
        %v1139 = vunpack.c.l.s4 1934713408
        %v1140 = vunpack.c.0.s8 %v1139
        %v1141 = vperm.slane %v1133, %v1140
        %v1142 = vrot.slane %v1113, 4
        %v1143 = vsel %vm590, %v1142, %v1101
        %v1144 = vrot.slane %v1101, 4
        %v1145 = vsel %vm590, %v1113, %v1144
        %v1147 = vunpack.c.l.s4 1934713408
        %v1148 = vunpack.c.0.s8 %v1147
        %v1149 = vperm.slane %v1143, %v1148
        %v1151 = vunpack.c.l.s4 1934713408
        %v1152 = vunpack.c.0.s8 %v1151
        %v1153 = vperm.slane %v1145, %v1152
        %v1154 = vrot.slane %v1117, 4
        %v1155 = vsel %vm590, %v1154, %v1105
        %v1156 = vrot.slane %v1105, 4
        %v1157 = vsel %vm590, %v1117, %v1156
        %v1159 = vunpack.c.l.s4 1934713408
        %v1160 = vunpack.c.0.s8 %v1159
        %v1161 = vperm.slane %v1155, %v1160
        %v1163 = vunpack.c.l.s4 1934713408
        %v1164 = vunpack.c.0.s8 %v1163
        %v1165 = vperm.slane %v1157, %v1164
        %v1166 = vrot.slane %v1149, 4
        %v1167 = vsel %vm590, %v1166, %v1125
        %v1168 = vrot.slane %v1125, 4
        %v1169 = vsel %vm590, %v1149, %v1168
        %v1170 = vrot.slane %v1153, 4
        %v1171 = vsel %vm590, %v1170, %v1129
        %v1172 = vrot.slane %v1129, 4
        %v1173 = vsel %vm590, %v1153, %v1172
        %v1174 = vrot.slane %v1161, 4
        %v1175 = vsel %vm590, %v1174, %v1137
        %v1176 = vrot.slane %v1137, 4
        %v1177 = vsel %vm590, %v1161, %v1176
        %v1178 = vrot.slane %v1165, 4
        %v1179 = vsel %vm590, %v1178, %v1141
        %v1180 = vrot.slane %v1141, 4
        %v1181 = vsel %vm590, %v1165, %v1180
        %1183 = vrot.lane.b32.xlu0 %v1057, 16
        %v1184 = vpop.permute.xlu0 %1183
        %1187 = vrot.lane.b32.xlu0 %v1059, 32
        %v1188 = vpop.permute.xlu0 %1187
        %1191 = vrot.lane.b32.xlu0 %v1061, 48
        %v1192 = vpop.permute.xlu0 %1191
        %1195 = vrot.lane.b32.xlu0 %v1063, 64
        %v1196 = vpop.permute.xlu0 %1195
        %1199 = vrot.lane.b32.xlu0 %v1065, 80
        %v1200 = vpop.permute.xlu0 %1199
        %1203 = vrot.lane.b32.xlu0 %v1067, 96
        %v1204 = vpop.permute.xlu0 %1203
        %1207 = vrot.lane.b32.xlu0 %v1069, 112
        %v1208 = vpop.permute.xlu0 %1207
        %1211 = vrot.lane.b32.xlu0 %v1169, 16
        %v1212 = vpop.permute.xlu0 %1211
        %1215 = vrot.lane.b32.xlu0 %v1171, 32
        %v1216 = vpop.permute.xlu0 %1215
        %1219 = vrot.lane.b32.xlu0 %v1173, 48
        %v1220 = vpop.permute.xlu0 %1219
        %1223 = vrot.lane.b32.xlu0 %v1175, 64
        %v1224 = vpop.permute.xlu0 %1223
        %1227 = vrot.lane.b32.xlu0 %v1177, 80
        %v1228 = vpop.permute.xlu0 %1227
        %1231 = vrot.lane.b32.xlu0 %v1179, 96
        %v1232 = vpop.permute.xlu0 %1231
        %1235 = vrot.lane.b32.xlu0 %v1181, 112
        %v1236 = vpop.permute.xlu0 %1235
        %v1238 = vsel %vm870, %v1055, %v1184
        %v1239 = vsel %vm872, %v1238, %v1188
        %v1240 = vsel %vm874, %v1239, %v1192
        %v1241 = vsel %vm876, %v1240, %v1196
        %v1242 = vsel %vm878, %v1241, %v1200
        %v1243 = vsel %vm880, %v1242, %v1204
        %v1244 = vsel %vm882, %v1243, %v1208
        %v1245 = vsel %vm870, %v1167, %v1212
        %v1246 = vsel %vm872, %v1245, %v1216
        %v1247 = vsel %vm874, %v1246, %v1220
        %v1248 = vsel %vm876, %v1247, %v1224
        %v1249 = vsel %vm878, %v1248, %v1228
        %v1250 = vsel %vm880, %v1249, %v1232
        %v1251 = vsel %vm882, %v1250, %v1236
        %s1252 = scalar_lea.vmem %s2, 4
        %v1253 = vld [vmem:[%s1252] sm:$0xf]
        %v1254 = vpack.c.bf16 %v1244, %v1244
        %v1255 = vpack.c.bf16 %v1251, %v1251
        %v1257 = vsel %vm312, %v1253, 0
        %v1260 = vsel %vm319, %v1254, 0
        %v1263 = vsel %vm319, %v1255, 0
        %1265 = vmatpush.bf16.msra.mxu0 0
        %1266 = vmatpush.bf16.msra.mxu0 0
        %1267 = vmatpush.bf16.msra.mxu0 0
        %1268 = vmatpush.bf16.msra.mxu0 0
        %1269 = vmatpush.bf16.msra.mxu0 0
        %1270 = vmatpush.bf16.msra.mxu0 0
        %1271 = vmatpush.bf16.msra.mxu0 0
        %1272 = vmatpush.bf16.msra.mxu0 %v1260
        %1273 = vmatmul.bf16.gmra.mxu0 %v1257
        %v1274 = vpop.f32.mrf.mxu0
        %v1275 = vadd.f32 0.0, %v1274
        %v1276 = vpop.f32.mrf.mxu0
        %1277 = vdwg.mxu0
        %1278 = vmatpush.bf16.msra.mxu0 0
        %1279 = vmatpush.bf16.msra.mxu0 0
        %1280 = vmatpush.bf16.msra.mxu0 0
        %1281 = vmatpush.bf16.msra.mxu0 0
        %1282 = vmatpush.bf16.msra.mxu0 0
        %1283 = vmatpush.bf16.msra.mxu0 0
        %1284 = vmatpush.bf16.msra.mxu0 0
        %1285 = vmatpush.bf16.msra.mxu0 %v1263
        %1286 = vmatmul.bf16.gmra.mxu0 %v1257
        %v1287 = vpop.f32.mrf.mxu0
        %v1288 = vadd.f32 0.0, %v1287
        %v1289 = vpop.f32.mrf.mxu0
        %1290 = vdwg.mxu0
        %v1292 = vsel %vm312, %v891, 0
        %v1295 = vsel %vm319, %v892, 0
        %v1298 = vsel %vm319, %v893, 0
        %1300 = vmatpush.bf16.msra.mxu0 0
        %1301 = vmatpush.bf16.msra.mxu0 0
        %1302 = vmatpush.bf16.msra.mxu0 0
        %1303 = vmatpush.bf16.msra.mxu0 0
        %1304 = vmatpush.bf16.msra.mxu0 0
        %1305 = vmatpush.bf16.msra.mxu0 0
        %1306 = vmatpush.bf16.msra.mxu0 0
        %1307 = vmatpush.bf16.msra.mxu0 %v1295
        %1308 = vmatmul.bf16.gmra.mxu0 %v1292
        %v1309 = vpop.f32.mrf.mxu0
        %v1310 = vadd.f32 %v1275, %v1309
        %v1311 = vpop.f32.mrf.mxu0
        %1312 = vdwg.mxu0
        %1313 = vmatpush.bf16.msra.mxu0 0
        %1314 = vmatpush.bf16.msra.mxu0 0
        %1315 = vmatpush.bf16.msra.mxu0 0
        %1316 = vmatpush.bf16.msra.mxu0 0
        %1317 = vmatpush.bf16.msra.mxu0 0
        %1318 = vmatpush.bf16.msra.mxu0 0
        %1319 = vmatpush.bf16.msra.mxu0 0
        %1320 = vmatpush.bf16.msra.mxu0 %v1298
        %1321 = vmatmul.bf16.gmra.mxu0 %v1292
        %v1322 = vpop.f32.mrf.mxu0
        %v1323 = vadd.f32 %v1288, %v1322
        %v1324 = vpop.f32.mrf.mxu0
        %1325 = vdwg.mxu0
        %1326 = vrot.lane.b32.xlu0 %v565, 126
        %v1327 = vpop.permute.xlu0 %1326
        %1328 = vrot.lane.b32.xlu0 %v566, 126
        %v1329 = vpop.permute.xlu0 %1328
        %1330 = vrot.lane.b32.xlu0 %v568, 126
        %v1331 = vpop.permute.xlu0 %1330
        %1332 = vrot.lane.b32.xlu0 %v569, 126
        %v1333 = vpop.permute.xlu0 %1332
        %1334 = vrot.lane.b32.xlu0 %v571, 126
        %v1335 = vpop.permute.xlu0 %1334
        %1336 = vrot.lane.b32.xlu0 %v572, 126
        %v1337 = vpop.permute.xlu0 %1336
        %1338 = vrot.lane.b32.xlu0 %v574, 126
        %v1339 = vpop.permute.xlu0 %1338
        %1340 = vrot.lane.b32.xlu0 %v575, 126
        %v1341 = vpop.permute.xlu0 %1340
        %1342 = vrot.lane.b32.xlu0 %v577, 126
        %v1343 = vpop.permute.xlu0 %1342
        %1344 = vrot.lane.b32.xlu0 %v578, 126
        %v1345 = vpop.permute.xlu0 %1344
        %1346 = vrot.lane.b32.xlu0 %v580, 126
        %v1347 = vpop.permute.xlu0 %1346
        %1348 = vrot.lane.b32.xlu0 %v581, 126
        %v1349 = vpop.permute.xlu0 %1348
        %1350 = vrot.lane.b32.xlu0 %v583, 126
        %v1351 = vpop.permute.xlu0 %1350
        %1352 = vrot.lane.b32.xlu0 %v584, 126
        %v1353 = vpop.permute.xlu0 %1352
        %1354 = vrot.lane.b32.xlu0 %v586, 126
        %v1355 = vpop.permute.xlu0 %1354
        %1356 = vrot.lane.b32.xlu0 %v587, 126
        %v1357 = vpop.permute.xlu0 %1356
        %v1374 = vrot.slane %v1335, 4
        %v1375 = vsel %vm590, %v1374, %v1327
        %v1376 = vrot.slane %v1327, 4
        %v1377 = vsel %vm590, %v1335, %v1376
        %v1379 = vunpack.c.l.s4 1983009808
        %v1380 = vunpack.c.0.s8 %v1379
        %v1381 = vperm.slane %v1375, %v1380
        %v1383 = vunpack.c.l.s4 1983009808
        %v1384 = vunpack.c.0.s8 %v1383
        %v1385 = vperm.slane %v1377, %v1384
        %v1386 = vrot.slane %v1339, 4
        %v1387 = vsel %vm590, %v1386, %v1331
        %v1388 = vrot.slane %v1331, 4
        %v1389 = vsel %vm590, %v1339, %v1388
        %v1391 = vunpack.c.l.s4 1983009808
        %v1392 = vunpack.c.0.s8 %v1391
        %v1393 = vperm.slane %v1387, %v1392
        %v1395 = vunpack.c.l.s4 1983009808
        %v1396 = vunpack.c.0.s8 %v1395
        %v1397 = vperm.slane %v1389, %v1396
        %v1398 = vrot.slane %v1351, 4
        %v1399 = vsel %vm590, %v1398, %v1343
        %v1400 = vrot.slane %v1343, 4
        %v1401 = vsel %vm590, %v1351, %v1400
        %v1403 = vunpack.c.l.s4 1983009808
        %v1404 = vunpack.c.0.s8 %v1403
        %v1405 = vperm.slane %v1399, %v1404
        %v1407 = vunpack.c.l.s4 1983009808
        %v1408 = vunpack.c.0.s8 %v1407
        %v1409 = vperm.slane %v1401, %v1408
        %v1410 = vrot.slane %v1355, 4
        %v1411 = vsel %vm590, %v1410, %v1347
        %v1412 = vrot.slane %v1347, 4
        %v1413 = vsel %vm590, %v1355, %v1412
        %v1415 = vunpack.c.l.s4 1983009808
        %v1416 = vunpack.c.0.s8 %v1415
        %v1417 = vperm.slane %v1411, %v1416
        %v1419 = vunpack.c.l.s4 1983009808
        %v1420 = vunpack.c.0.s8 %v1419
        %v1421 = vperm.slane %v1413, %v1420
        %v1422 = vrot.slane %v1393, 4
        %v1423 = vsel %vm590, %v1422, %v1381
        %v1424 = vrot.slane %v1381, 4
        %v1425 = vsel %vm590, %v1393, %v1424
        %v1427 = vunpack.c.l.s4 1934713408
        %v1428 = vunpack.c.0.s8 %v1427
        %v1429 = vperm.slane %v1423, %v1428
        %v1431 = vunpack.c.l.s4 1934713408
        %v1432 = vunpack.c.0.s8 %v1431
        %v1433 = vperm.slane %v1425, %v1432
        %v1434 = vrot.slane %v1397, 4
        %v1435 = vsel %vm590, %v1434, %v1385
        %v1436 = vrot.slane %v1385, 4
        %v1437 = vsel %vm590, %v1397, %v1436
        %v1439 = vunpack.c.l.s4 1934713408
        %v1440 = vunpack.c.0.s8 %v1439
        %v1441 = vperm.slane %v1435, %v1440
        %v1443 = vunpack.c.l.s4 1934713408
        %v1444 = vunpack.c.0.s8 %v1443
        %v1445 = vperm.slane %v1437, %v1444
        %v1446 = vrot.slane %v1417, 4
        %v1447 = vsel %vm590, %v1446, %v1405
        %v1448 = vrot.slane %v1405, 4
        %v1449 = vsel %vm590, %v1417, %v1448
        %v1451 = vunpack.c.l.s4 1934713408
        %v1452 = vunpack.c.0.s8 %v1451
        %v1453 = vperm.slane %v1447, %v1452
        %v1455 = vunpack.c.l.s4 1934713408
        %v1456 = vunpack.c.0.s8 %v1455
        %v1457 = vperm.slane %v1449, %v1456
        %v1458 = vrot.slane %v1421, 4
        %v1459 = vsel %vm590, %v1458, %v1409
        %v1460 = vrot.slane %v1409, 4
        %v1461 = vsel %vm590, %v1421, %v1460
        %v1463 = vunpack.c.l.s4 1934713408
        %v1464 = vunpack.c.0.s8 %v1463
        %v1465 = vperm.slane %v1459, %v1464
        %v1467 = vunpack.c.l.s4 1934713408
        %v1468 = vunpack.c.0.s8 %v1467
        %v1469 = vperm.slane %v1461, %v1468
        %v1470 = vrot.slane %v1453, 4
        %v1471 = vsel %vm590, %v1470, %v1429
        %v1472 = vrot.slane %v1429, 4
        %v1473 = vsel %vm590, %v1453, %v1472
        %v1474 = vrot.slane %v1457, 4
        %v1475 = vsel %vm590, %v1474, %v1433
        %v1476 = vrot.slane %v1433, 4
        %v1477 = vsel %vm590, %v1457, %v1476
        %v1478 = vrot.slane %v1465, 4
        %v1479 = vsel %vm590, %v1478, %v1441
        %v1480 = vrot.slane %v1441, 4
        %v1481 = vsel %vm590, %v1465, %v1480
        %v1482 = vrot.slane %v1469, 4
        %v1483 = vsel %vm590, %v1482, %v1445
        %v1484 = vrot.slane %v1445, 4
        %v1485 = vsel %vm590, %v1469, %v1484
        %v1486 = vrot.slane %v1337, 4
        %v1487 = vsel %vm590, %v1486, %v1329
        %v1488 = vrot.slane %v1329, 4
        %v1489 = vsel %vm590, %v1337, %v1488
        %v1491 = vunpack.c.l.s4 1983009808
        %v1492 = vunpack.c.0.s8 %v1491
        %v1493 = vperm.slane %v1487, %v1492
        %v1495 = vunpack.c.l.s4 1983009808
        %v1496 = vunpack.c.0.s8 %v1495
        %v1497 = vperm.slane %v1489, %v1496
        %v1498 = vrot.slane %v1341, 4
        %v1499 = vsel %vm590, %v1498, %v1333
        %v1500 = vrot.slane %v1333, 4
        %v1501 = vsel %vm590, %v1341, %v1500
        %v1503 = vunpack.c.l.s4 1983009808
        %v1504 = vunpack.c.0.s8 %v1503
        %v1505 = vperm.slane %v1499, %v1504
        %v1507 = vunpack.c.l.s4 1983009808
        %v1508 = vunpack.c.0.s8 %v1507
        %v1509 = vperm.slane %v1501, %v1508
        %v1510 = vrot.slane %v1353, 4
        %v1511 = vsel %vm590, %v1510, %v1345
        %v1512 = vrot.slane %v1345, 4
        %v1513 = vsel %vm590, %v1353, %v1512
        %v1515 = vunpack.c.l.s4 1983009808
        %v1516 = vunpack.c.0.s8 %v1515
        %v1517 = vperm.slane %v1511, %v1516
        %v1519 = vunpack.c.l.s4 1983009808
        %v1520 = vunpack.c.0.s8 %v1519
        %v1521 = vperm.slane %v1513, %v1520
        %v1522 = vrot.slane %v1357, 4
        %v1523 = vsel %vm590, %v1522, %v1349
        %v1524 = vrot.slane %v1349, 4
        %v1525 = vsel %vm590, %v1357, %v1524
        %v1527 = vunpack.c.l.s4 1983009808
        %v1528 = vunpack.c.0.s8 %v1527
        %v1529 = vperm.slane %v1523, %v1528
        %v1531 = vunpack.c.l.s4 1983009808
        %v1532 = vunpack.c.0.s8 %v1531
        %v1533 = vperm.slane %v1525, %v1532
        %v1534 = vrot.slane %v1505, 4
        %v1535 = vsel %vm590, %v1534, %v1493
        %v1536 = vrot.slane %v1493, 4
        %v1537 = vsel %vm590, %v1505, %v1536
        %v1539 = vunpack.c.l.s4 1934713408
        %v1540 = vunpack.c.0.s8 %v1539
        %v1541 = vperm.slane %v1535, %v1540
        %v1543 = vunpack.c.l.s4 1934713408
        %v1544 = vunpack.c.0.s8 %v1543
        %v1545 = vperm.slane %v1537, %v1544
        %v1546 = vrot.slane %v1509, 4
        %v1547 = vsel %vm590, %v1546, %v1497
        %v1548 = vrot.slane %v1497, 4
        %v1549 = vsel %vm590, %v1509, %v1548
        %v1551 = vunpack.c.l.s4 1934713408
        %v1552 = vunpack.c.0.s8 %v1551
        %v1553 = vperm.slane %v1547, %v1552
        %v1555 = vunpack.c.l.s4 1934713408
        %v1556 = vunpack.c.0.s8 %v1555
        %v1557 = vperm.slane %v1549, %v1556
        %v1558 = vrot.slane %v1529, 4
        %v1559 = vsel %vm590, %v1558, %v1517
        %v1560 = vrot.slane %v1517, 4
        %v1561 = vsel %vm590, %v1529, %v1560
        %v1563 = vunpack.c.l.s4 1934713408
        %v1564 = vunpack.c.0.s8 %v1563
        %v1565 = vperm.slane %v1559, %v1564
        %v1567 = vunpack.c.l.s4 1934713408
        %v1568 = vunpack.c.0.s8 %v1567
        %v1569 = vperm.slane %v1561, %v1568
        %v1570 = vrot.slane %v1533, 4
        %v1571 = vsel %vm590, %v1570, %v1521
        %v1572 = vrot.slane %v1521, 4
        %v1573 = vsel %vm590, %v1533, %v1572
        %v1575 = vunpack.c.l.s4 1934713408
        %v1576 = vunpack.c.0.s8 %v1575
        %v1577 = vperm.slane %v1571, %v1576
        %v1579 = vunpack.c.l.s4 1934713408
        %v1580 = vunpack.c.0.s8 %v1579
        %v1581 = vperm.slane %v1573, %v1580
        %v1582 = vrot.slane %v1565, 4
        %v1583 = vsel %vm590, %v1582, %v1541
        %v1584 = vrot.slane %v1541, 4
        %v1585 = vsel %vm590, %v1565, %v1584
        %v1586 = vrot.slane %v1569, 4
        %v1587 = vsel %vm590, %v1586, %v1545
        %v1588 = vrot.slane %v1545, 4
        %v1589 = vsel %vm590, %v1569, %v1588
        %v1590 = vrot.slane %v1577, 4
        %v1591 = vsel %vm590, %v1590, %v1553
        %v1592 = vrot.slane %v1553, 4
        %v1593 = vsel %vm590, %v1577, %v1592
        %v1594 = vrot.slane %v1581, 4
        %v1595 = vsel %vm590, %v1594, %v1557
        %v1596 = vrot.slane %v1557, 4
        %v1597 = vsel %vm590, %v1581, %v1596
        %1599 = vrot.lane.b32.xlu0 %v1473, 16
        %v1600 = vpop.permute.xlu0 %1599
        %1603 = vrot.lane.b32.xlu0 %v1475, 32
        %v1604 = vpop.permute.xlu0 %1603
        %1607 = vrot.lane.b32.xlu0 %v1477, 48
        %v1608 = vpop.permute.xlu0 %1607
        %1611 = vrot.lane.b32.xlu0 %v1479, 64
        %v1612 = vpop.permute.xlu0 %1611
        %1615 = vrot.lane.b32.xlu0 %v1481, 80
        %v1616 = vpop.permute.xlu0 %1615
        %1619 = vrot.lane.b32.xlu0 %v1483, 96
        %v1620 = vpop.permute.xlu0 %1619
        %1623 = vrot.lane.b32.xlu0 %v1485, 112
        %v1624 = vpop.permute.xlu0 %1623
        %1627 = vrot.lane.b32.xlu0 %v1585, 16
        %v1628 = vpop.permute.xlu0 %1627
        %1631 = vrot.lane.b32.xlu0 %v1587, 32
        %v1632 = vpop.permute.xlu0 %1631
        %1635 = vrot.lane.b32.xlu0 %v1589, 48
        %v1636 = vpop.permute.xlu0 %1635
        %1639 = vrot.lane.b32.xlu0 %v1591, 64
        %v1640 = vpop.permute.xlu0 %1639
        %1643 = vrot.lane.b32.xlu0 %v1593, 80
        %v1644 = vpop.permute.xlu0 %1643
        %1647 = vrot.lane.b32.xlu0 %v1595, 96
        %v1648 = vpop.permute.xlu0 %1647
        %1651 = vrot.lane.b32.xlu0 %v1597, 112
        %v1652 = vpop.permute.xlu0 %1651
        %v1654 = vsel %vm870, %v1471, %v1600
        %v1655 = vsel %vm872, %v1654, %v1604
        %v1656 = vsel %vm874, %v1655, %v1608
        %v1657 = vsel %vm876, %v1656, %v1612
        %v1658 = vsel %vm878, %v1657, %v1616
        %v1659 = vsel %vm880, %v1658, %v1620
        %v1660 = vsel %vm882, %v1659, %v1624
        %v1661 = vsel %vm870, %v1583, %v1628
        %v1662 = vsel %vm872, %v1661, %v1632
        %v1663 = vsel %vm874, %v1662, %v1636
        %v1664 = vsel %vm876, %v1663, %v1640
        %v1665 = vsel %vm878, %v1664, %v1644
        %v1666 = vsel %vm880, %v1665, %v1648
        %v1667 = vsel %vm882, %v1666, %v1652
        %s1668 = scalar_lea.vmem %s2, 8
        %v1669 = vld [vmem:[%s1668] sm:$0xf]
        %v1670 = vpack.c.bf16 %v1660, %v1660
        %v1671 = vpack.c.bf16 %v1667, %v1667
        %v1673 = vsel %vm312, %v1669, 0
        %v1676 = vsel %vm319, %v1670, 0
        %v1679 = vsel %vm319, %v1671, 0
        %1681 = vmatpush.bf16.msra.mxu0 0
        %1682 = vmatpush.bf16.msra.mxu0 0
        %1683 = vmatpush.bf16.msra.mxu0 0
        %1684 = vmatpush.bf16.msra.mxu0 0
        %1685 = vmatpush.bf16.msra.mxu0 0
        %1686 = vmatpush.bf16.msra.mxu0 0
        %1687 = vmatpush.bf16.msra.mxu0 0
        %1688 = vmatpush.bf16.msra.mxu0 %v1676
        %1689 = vmatmul.bf16.gmra.mxu0 %v1673
        %v1690 = vpop.f32.mrf.mxu0
        %v1691 = vadd.f32 0.0, %v1690
        %v1692 = vpop.f32.mrf.mxu0
        %1693 = vdwg.mxu0
        %1694 = vmatpush.bf16.msra.mxu0 0
        %1695 = vmatpush.bf16.msra.mxu0 0
        %1696 = vmatpush.bf16.msra.mxu0 0
        %1697 = vmatpush.bf16.msra.mxu0 0
        %1698 = vmatpush.bf16.msra.mxu0 0
        %1699 = vmatpush.bf16.msra.mxu0 0
        %1700 = vmatpush.bf16.msra.mxu0 0
        %1701 = vmatpush.bf16.msra.mxu0 %v1679
        %1702 = vmatmul.bf16.gmra.mxu0 %v1673
        %v1703 = vpop.f32.mrf.mxu0
        %v1704 = vadd.f32 0.0, %v1703
        %v1705 = vpop.f32.mrf.mxu0
        %1706 = vdwg.mxu0
        %v1707 = vadd.f32 %v1310, %v1691
        %v1708 = vadd.f32 %v1323, %v1704
        %vm1717 = vcmask 1046528
        %v1718 = vrot.slane %v565, 1
        %v1719 = vrot.slane %v566, 1
        %v1720 = vsel %vm1717, %v1718, %v1719
        %v1721 = vrot.slane %v567, 1
        %v1722 = vsel %vm1717, %v1719, %v1721
        %v1723 = vrot.slane %v568, 1
        %v1724 = vrot.slane %v569, 1
        %v1725 = vsel %vm1717, %v1723, %v1724
        %v1726 = vrot.slane %v570, 1
        %v1727 = vsel %vm1717, %v1724, %v1726
        %v1728 = vrot.slane %v571, 1
        %v1729 = vrot.slane %v572, 1
        %v1730 = vsel %vm1717, %v1728, %v1729
        %v1731 = vrot.slane %v573, 1
        %v1732 = vsel %vm1717, %v1729, %v1731
        %v1733 = vrot.slane %v574, 1
        %v1734 = vrot.slane %v575, 1
        %v1735 = vsel %vm1717, %v1733, %v1734
        %v1736 = vrot.slane %v576, 1
        %v1737 = vsel %vm1717, %v1734, %v1736
        %v1738 = vrot.slane %v577, 1
        %v1739 = vrot.slane %v578, 1
        %v1740 = vsel %vm1717, %v1738, %v1739
        %v1741 = vrot.slane %v579, 1
        %v1742 = vsel %vm1717, %v1739, %v1741
        %v1743 = vrot.slane %v580, 1
        %v1744 = vrot.slane %v581, 1
        %v1745 = vsel %vm1717, %v1743, %v1744
        %v1746 = vrot.slane %v582, 1
        %v1747 = vsel %vm1717, %v1744, %v1746
        %v1748 = vrot.slane %v583, 1
        %v1749 = vrot.slane %v584, 1
        %v1750 = vsel %vm1717, %v1748, %v1749
        %v1751 = vrot.slane %v585, 1
        %v1752 = vsel %vm1717, %v1749, %v1751
        %v1753 = vrot.slane %v586, 1
        %v1754 = vrot.slane %v587, 1
        %v1755 = vsel %vm1717, %v1753, %v1754
        %v1756 = vrot.slane %v588, 1
        %v1757 = vsel %vm1717, %v1754, %v1756
        %v1774 = vrot.slane %v1730, 4
        %v1775 = vsel %vm590, %v1774, %v1720
        %v1776 = vrot.slane %v1720, 4
        %v1777 = vsel %vm590, %v1730, %v1776
        %v1779 = vunpack.c.l.s4 1983009808
        %v1780 = vunpack.c.0.s8 %v1779
        %v1781 = vperm.slane %v1775, %v1780
        %v1783 = vunpack.c.l.s4 1983009808
        %v1784 = vunpack.c.0.s8 %v1783
        %v1785 = vperm.slane %v1777, %v1784
        %v1786 = vrot.slane %v1735, 4
        %v1787 = vsel %vm590, %v1786, %v1725
        %v1788 = vrot.slane %v1725, 4
        %v1789 = vsel %vm590, %v1735, %v1788
        %v1791 = vunpack.c.l.s4 1983009808
        %v1792 = vunpack.c.0.s8 %v1791
        %v1793 = vperm.slane %v1787, %v1792
        %v1795 = vunpack.c.l.s4 1983009808
        %v1796 = vunpack.c.0.s8 %v1795
        %v1797 = vperm.slane %v1789, %v1796
        %v1798 = vrot.slane %v1750, 4
        %v1799 = vsel %vm590, %v1798, %v1740
        %v1800 = vrot.slane %v1740, 4
        %v1801 = vsel %vm590, %v1750, %v1800
        %v1803 = vunpack.c.l.s4 1983009808
        %v1804 = vunpack.c.0.s8 %v1803
        %v1805 = vperm.slane %v1799, %v1804
        %v1807 = vunpack.c.l.s4 1983009808
        %v1808 = vunpack.c.0.s8 %v1807
        %v1809 = vperm.slane %v1801, %v1808
        %v1810 = vrot.slane %v1755, 4
        %v1811 = vsel %vm590, %v1810, %v1745
        %v1812 = vrot.slane %v1745, 4
        %v1813 = vsel %vm590, %v1755, %v1812
        %v1815 = vunpack.c.l.s4 1983009808
        %v1816 = vunpack.c.0.s8 %v1815
        %v1817 = vperm.slane %v1811, %v1816
        %v1819 = vunpack.c.l.s4 1983009808
        %v1820 = vunpack.c.0.s8 %v1819
        %v1821 = vperm.slane %v1813, %v1820
        %v1822 = vrot.slane %v1793, 4
        %v1823 = vsel %vm590, %v1822, %v1781
        %v1824 = vrot.slane %v1781, 4
        %v1825 = vsel %vm590, %v1793, %v1824
        %v1827 = vunpack.c.l.s4 1934713408
        %v1828 = vunpack.c.0.s8 %v1827
        %v1829 = vperm.slane %v1823, %v1828
        %v1831 = vunpack.c.l.s4 1934713408
        %v1832 = vunpack.c.0.s8 %v1831
        %v1833 = vperm.slane %v1825, %v1832
        %v1834 = vrot.slane %v1797, 4
        %v1835 = vsel %vm590, %v1834, %v1785
        %v1836 = vrot.slane %v1785, 4
        %v1837 = vsel %vm590, %v1797, %v1836
        %v1839 = vunpack.c.l.s4 1934713408
        %v1840 = vunpack.c.0.s8 %v1839
        %v1841 = vperm.slane %v1835, %v1840
        %v1843 = vunpack.c.l.s4 1934713408
        %v1844 = vunpack.c.0.s8 %v1843
        %v1845 = vperm.slane %v1837, %v1844
        %v1846 = vrot.slane %v1817, 4
        %v1847 = vsel %vm590, %v1846, %v1805
        %v1848 = vrot.slane %v1805, 4
        %v1849 = vsel %vm590, %v1817, %v1848
        %v1851 = vunpack.c.l.s4 1934713408
        %v1852 = vunpack.c.0.s8 %v1851
        %v1853 = vperm.slane %v1847, %v1852
        %v1855 = vunpack.c.l.s4 1934713408
        %v1856 = vunpack.c.0.s8 %v1855
        %v1857 = vperm.slane %v1849, %v1856
        %v1858 = vrot.slane %v1821, 4
        %v1859 = vsel %vm590, %v1858, %v1809
        %v1860 = vrot.slane %v1809, 4
        %v1861 = vsel %vm590, %v1821, %v1860
        %v1863 = vunpack.c.l.s4 1934713408
        %v1864 = vunpack.c.0.s8 %v1863
        %v1865 = vperm.slane %v1859, %v1864
        %v1867 = vunpack.c.l.s4 1934713408
        %v1868 = vunpack.c.0.s8 %v1867
        %v1869 = vperm.slane %v1861, %v1868
        %v1870 = vrot.slane %v1853, 4
        %v1871 = vsel %vm590, %v1870, %v1829
        %v1872 = vrot.slane %v1829, 4
        %v1873 = vsel %vm590, %v1853, %v1872
        %v1874 = vrot.slane %v1857, 4
        %v1875 = vsel %vm590, %v1874, %v1833
        %v1876 = vrot.slane %v1833, 4
        %v1877 = vsel %vm590, %v1857, %v1876
        %v1878 = vrot.slane %v1865, 4
        %v1879 = vsel %vm590, %v1878, %v1841
        %v1880 = vrot.slane %v1841, 4
        %v1881 = vsel %vm590, %v1865, %v1880
        %v1882 = vrot.slane %v1869, 4
        %v1883 = vsel %vm590, %v1882, %v1845
        %v1884 = vrot.slane %v1845, 4
        %v1885 = vsel %vm590, %v1869, %v1884
        %v1886 = vrot.slane %v1732, 4
        %v1887 = vsel %vm590, %v1886, %v1722
        %v1888 = vrot.slane %v1722, 4
        %v1889 = vsel %vm590, %v1732, %v1888
        %v1891 = vunpack.c.l.s4 1983009808
        %v1892 = vunpack.c.0.s8 %v1891
        %v1893 = vperm.slane %v1887, %v1892
        %v1895 = vunpack.c.l.s4 1983009808
        %v1896 = vunpack.c.0.s8 %v1895
        %v1897 = vperm.slane %v1889, %v1896
        %v1898 = vrot.slane %v1737, 4
        %v1899 = vsel %vm590, %v1898, %v1727
        %v1900 = vrot.slane %v1727, 4
        %v1901 = vsel %vm590, %v1737, %v1900
        %v1903 = vunpack.c.l.s4 1983009808
        %v1904 = vunpack.c.0.s8 %v1903
        %v1905 = vperm.slane %v1899, %v1904
        %v1907 = vunpack.c.l.s4 1983009808
        %v1908 = vunpack.c.0.s8 %v1907
        %v1909 = vperm.slane %v1901, %v1908
        %v1910 = vrot.slane %v1752, 4
        %v1911 = vsel %vm590, %v1910, %v1742
        %v1912 = vrot.slane %v1742, 4
        %v1913 = vsel %vm590, %v1752, %v1912
        %v1915 = vunpack.c.l.s4 1983009808
        %v1916 = vunpack.c.0.s8 %v1915
        %v1917 = vperm.slane %v1911, %v1916
        %v1919 = vunpack.c.l.s4 1983009808
        %v1920 = vunpack.c.0.s8 %v1919
        %v1921 = vperm.slane %v1913, %v1920
        %v1922 = vrot.slane %v1757, 4
        %v1923 = vsel %vm590, %v1922, %v1747
        %v1924 = vrot.slane %v1747, 4
        %v1925 = vsel %vm590, %v1757, %v1924
        %v1927 = vunpack.c.l.s4 1983009808
        %v1928 = vunpack.c.0.s8 %v1927
        %v1929 = vperm.slane %v1923, %v1928
        %v1931 = vunpack.c.l.s4 1983009808
        %v1932 = vunpack.c.0.s8 %v1931
        %v1933 = vperm.slane %v1925, %v1932
        %v1934 = vrot.slane %v1905, 4
        %v1935 = vsel %vm590, %v1934, %v1893
        %v1936 = vrot.slane %v1893, 4
        %v1937 = vsel %vm590, %v1905, %v1936
        %v1939 = vunpack.c.l.s4 1934713408
        %v1940 = vunpack.c.0.s8 %v1939
        %v1941 = vperm.slane %v1935, %v1940
        %v1943 = vunpack.c.l.s4 1934713408
        %v1944 = vunpack.c.0.s8 %v1943
        %v1945 = vperm.slane %v1937, %v1944
        %v1946 = vrot.slane %v1909, 4
        %v1947 = vsel %vm590, %v1946, %v1897
        %v1948 = vrot.slane %v1897, 4
        %v1949 = vsel %vm590, %v1909, %v1948
        %v1951 = vunpack.c.l.s4 1934713408
        %v1952 = vunpack.c.0.s8 %v1951
        %v1953 = vperm.slane %v1947, %v1952
        %v1955 = vunpack.c.l.s4 1934713408
        %v1956 = vunpack.c.0.s8 %v1955
        %v1957 = vperm.slane %v1949, %v1956
        %v1958 = vrot.slane %v1929, 4
        %v1959 = vsel %vm590, %v1958, %v1917
        %v1960 = vrot.slane %v1917, 4
        %v1961 = vsel %vm590, %v1929, %v1960
        %v1963 = vunpack.c.l.s4 1934713408
        %v1964 = vunpack.c.0.s8 %v1963
        %v1965 = vperm.slane %v1959, %v1964
        %v1967 = vunpack.c.l.s4 1934713408
        %v1968 = vunpack.c.0.s8 %v1967
        %v1969 = vperm.slane %v1961, %v1968
        %v1970 = vrot.slane %v1933, 4
        %v1971 = vsel %vm590, %v1970, %v1921
        %v1972 = vrot.slane %v1921, 4
        %v1973 = vsel %vm590, %v1933, %v1972
        %v1975 = vunpack.c.l.s4 1934713408
        %v1976 = vunpack.c.0.s8 %v1975
        %v1977 = vperm.slane %v1971, %v1976
        %v1979 = vunpack.c.l.s4 1934713408
        %v1980 = vunpack.c.0.s8 %v1979
        %v1981 = vperm.slane %v1973, %v1980
        %v1982 = vrot.slane %v1965, 4
        %v1983 = vsel %vm590, %v1982, %v1941
        %v1984 = vrot.slane %v1941, 4
        %v1985 = vsel %vm590, %v1965, %v1984
        %v1986 = vrot.slane %v1969, 4
        %v1987 = vsel %vm590, %v1986, %v1945
        %v1988 = vrot.slane %v1945, 4
        %v1989 = vsel %vm590, %v1969, %v1988
        %v1990 = vrot.slane %v1977, 4
        %v1991 = vsel %vm590, %v1990, %v1953
        %v1992 = vrot.slane %v1953, 4
        %v1993 = vsel %vm590, %v1977, %v1992
        %v1994 = vrot.slane %v1981, 4
        %v1995 = vsel %vm590, %v1994, %v1957
        %v1996 = vrot.slane %v1957, 4
        %v1997 = vsel %vm590, %v1981, %v1996
        %1999 = vrot.lane.b32.xlu0 %v1873, 16
        %v2000 = vpop.permute.xlu0 %1999
        %2003 = vrot.lane.b32.xlu0 %v1875, 32
        %v2004 = vpop.permute.xlu0 %2003
        %2007 = vrot.lane.b32.xlu0 %v1877, 48
        %v2008 = vpop.permute.xlu0 %2007
        %2011 = vrot.lane.b32.xlu0 %v1879, 64
        %v2012 = vpop.permute.xlu0 %2011
        %2015 = vrot.lane.b32.xlu0 %v1881, 80
        %v2016 = vpop.permute.xlu0 %2015
        %2019 = vrot.lane.b32.xlu0 %v1883, 96
        %v2020 = vpop.permute.xlu0 %2019
        %2023 = vrot.lane.b32.xlu0 %v1885, 112
        %v2024 = vpop.permute.xlu0 %2023
        %2027 = vrot.lane.b32.xlu0 %v1985, 16
        %v2028 = vpop.permute.xlu0 %2027
        %2031 = vrot.lane.b32.xlu0 %v1987, 32
        %v2032 = vpop.permute.xlu0 %2031
        %2035 = vrot.lane.b32.xlu0 %v1989, 48
        %v2036 = vpop.permute.xlu0 %2035
        %2039 = vrot.lane.b32.xlu0 %v1991, 64
        %v2040 = vpop.permute.xlu0 %2039
        %2043 = vrot.lane.b32.xlu0 %v1993, 80
        %v2044 = vpop.permute.xlu0 %2043
        %2047 = vrot.lane.b32.xlu0 %v1995, 96
        %v2048 = vpop.permute.xlu0 %2047
        %2051 = vrot.lane.b32.xlu0 %v1997, 112
        %v2052 = vpop.permute.xlu0 %2051
        %v2054 = vsel %vm870, %v1871, %v2000
        %v2055 = vsel %vm872, %v2054, %v2004
        %v2056 = vsel %vm874, %v2055, %v2008
        %v2057 = vsel %vm876, %v2056, %v2012
        %v2058 = vsel %vm878, %v2057, %v2016
        %v2059 = vsel %vm880, %v2058, %v2020
        %v2060 = vsel %vm882, %v2059, %v2024
        %v2061 = vsel %vm870, %v1983, %v2028
        %v2062 = vsel %vm872, %v2061, %v2032
        %v2063 = vsel %vm874, %v2062, %v2036
        %v2064 = vsel %vm876, %v2063, %v2040
        %v2065 = vsel %vm878, %v2064, %v2044
        %v2066 = vsel %vm880, %v2065, %v2048
        %v2067 = vsel %vm882, %v2066, %v2052
        %s2068 = scalar_lea.vmem %s2, 12
        %v2069 = vld [vmem:[%s2068] sm:$0xf]
        %v2070 = vpack.c.bf16 %v2060, %v2060
        %v2071 = vpack.c.bf16 %v2067, %v2067
        %v2073 = vsel %vm312, %v2069, 0
        %v2076 = vsel %vm319, %v2070, 0
        %v2079 = vsel %vm319, %v2071, 0
        %2081 = vmatpush.bf16.msra.mxu0 0
        %2082 = vmatpush.bf16.msra.mxu0 0
        %2083 = vmatpush.bf16.msra.mxu0 0
        %2084 = vmatpush.bf16.msra.mxu0 0
        %2085 = vmatpush.bf16.msra.mxu0 0
        %2086 = vmatpush.bf16.msra.mxu0 0
        %2087 = vmatpush.bf16.msra.mxu0 0
        %2088 = vmatpush.bf16.msra.mxu0 %v2076
        %2089 = vmatmul.bf16.gmra.mxu0 %v2073
        %v2090 = vpop.f32.mrf.mxu0
        %v2091 = vadd.f32 0.0, %v2090
        %v2092 = vpop.f32.mrf.mxu0
        %2093 = vdwg.mxu0
        %2094 = vmatpush.bf16.msra.mxu0 0
        %2095 = vmatpush.bf16.msra.mxu0 0
        %2096 = vmatpush.bf16.msra.mxu0 0
        %2097 = vmatpush.bf16.msra.mxu0 0
        %2098 = vmatpush.bf16.msra.mxu0 0
        %2099 = vmatpush.bf16.msra.mxu0 0
        %2100 = vmatpush.bf16.msra.mxu0 0
        %2101 = vmatpush.bf16.msra.mxu0 %v2079
        %2102 = vmatmul.bf16.gmra.mxu0 %v2073
        %v2103 = vpop.f32.mrf.mxu0
        %v2104 = vadd.f32 0.0, %v2103
        %v2105 = vpop.f32.mrf.mxu0
        %2106 = vdwg.mxu0
        %v2107 = vadd.f32 %v1707, %v2091
        %v2108 = vadd.f32 %v1708, %v2104
        %2109 = vrot.lane.b32.xlu0 %v1720, 127
        %v2110 = vpop.permute.xlu0 %2109
        %2111 = vrot.lane.b32.xlu0 %v1722, 127
        %v2112 = vpop.permute.xlu0 %2111
        %2113 = vrot.lane.b32.xlu0 %v1725, 127
        %v2114 = vpop.permute.xlu0 %2113
        %2115 = vrot.lane.b32.xlu0 %v1727, 127
        %v2116 = vpop.permute.xlu0 %2115
        %2117 = vrot.lane.b32.xlu0 %v1730, 127
        %v2118 = vpop.permute.xlu0 %2117
        %2119 = vrot.lane.b32.xlu0 %v1732, 127
        %v2120 = vpop.permute.xlu0 %2119
        %2121 = vrot.lane.b32.xlu0 %v1735, 127
        %v2122 = vpop.permute.xlu0 %2121
        %2123 = vrot.lane.b32.xlu0 %v1737, 127
        %v2124 = vpop.permute.xlu0 %2123
        %2125 = vrot.lane.b32.xlu0 %v1740, 127
        %v2126 = vpop.permute.xlu0 %2125
        %2127 = vrot.lane.b32.xlu0 %v1742, 127
        %v2128 = vpop.permute.xlu0 %2127
        %2129 = vrot.lane.b32.xlu0 %v1745, 127
        %v2130 = vpop.permute.xlu0 %2129
        %2131 = vrot.lane.b32.xlu0 %v1747, 127
        %v2132 = vpop.permute.xlu0 %2131
        %2133 = vrot.lane.b32.xlu0 %v1750, 127
        %v2134 = vpop.permute.xlu0 %2133
        %2135 = vrot.lane.b32.xlu0 %v1752, 127
        %v2136 = vpop.permute.xlu0 %2135
        %2137 = vrot.lane.b32.xlu0 %v1755, 127
        %v2138 = vpop.permute.xlu0 %2137
        %2139 = vrot.lane.b32.xlu0 %v1757, 127
        %v2140 = vpop.permute.xlu0 %2139
        %v2157 = vrot.slane %v2118, 4
        %v2158 = vsel %vm590, %v2157, %v2110
        %v2159 = vrot.slane %v2110, 4
        %v2160 = vsel %vm590, %v2118, %v2159
        %v2162 = vunpack.c.l.s4 1983009808
        %v2163 = vunpack.c.0.s8 %v2162
        %v2164 = vperm.slane %v2158, %v2163
        %v2166 = vunpack.c.l.s4 1983009808
        %v2167 = vunpack.c.0.s8 %v2166
        %v2168 = vperm.slane %v2160, %v2167
        %v2169 = vrot.slane %v2122, 4
        %v2170 = vsel %vm590, %v2169, %v2114
        %v2171 = vrot.slane %v2114, 4
        %v2172 = vsel %vm590, %v2122, %v2171
        %v2174 = vunpack.c.l.s4 1983009808
        %v2175 = vunpack.c.0.s8 %v2174
        %v2176 = vperm.slane %v2170, %v2175
        %v2178 = vunpack.c.l.s4 1983009808
        %v2179 = vunpack.c.0.s8 %v2178
        %v2180 = vperm.slane %v2172, %v2179
        %v2181 = vrot.slane %v2134, 4
        %v2182 = vsel %vm590, %v2181, %v2126
        %v2183 = vrot.slane %v2126, 4
        %v2184 = vsel %vm590, %v2134, %v2183
        %v2186 = vunpack.c.l.s4 1983009808
        %v2187 = vunpack.c.0.s8 %v2186
        %v2188 = vperm.slane %v2182, %v2187
        %v2190 = vunpack.c.l.s4 1983009808
        %v2191 = vunpack.c.0.s8 %v2190
        %v2192 = vperm.slane %v2184, %v2191
        %v2193 = vrot.slane %v2138, 4
        %v2194 = vsel %vm590, %v2193, %v2130
        %v2195 = vrot.slane %v2130, 4
        %v2196 = vsel %vm590, %v2138, %v2195
        %v2198 = vunpack.c.l.s4 1983009808
        %v2199 = vunpack.c.0.s8 %v2198
        %v2200 = vperm.slane %v2194, %v2199
        %v2202 = vunpack.c.l.s4 1983009808
        %v2203 = vunpack.c.0.s8 %v2202
        %v2204 = vperm.slane %v2196, %v2203
        %v2205 = vrot.slane %v2176, 4
        %v2206 = vsel %vm590, %v2205, %v2164
        %v2207 = vrot.slane %v2164, 4
        %v2208 = vsel %vm590, %v2176, %v2207
        %v2210 = vunpack.c.l.s4 1934713408
        %v2211 = vunpack.c.0.s8 %v2210
        %v2212 = vperm.slane %v2206, %v2211
        %v2214 = vunpack.c.l.s4 1934713408
        %v2215 = vunpack.c.0.s8 %v2214
        %v2216 = vperm.slane %v2208, %v2215
        %v2217 = vrot.slane %v2180, 4
        %v2218 = vsel %vm590, %v2217, %v2168
        %v2219 = vrot.slane %v2168, 4
        %v2220 = vsel %vm590, %v2180, %v2219
        %v2222 = vunpack.c.l.s4 1934713408
        %v2223 = vunpack.c.0.s8 %v2222
        %v2224 = vperm.slane %v2218, %v2223
        %v2226 = vunpack.c.l.s4 1934713408
        %v2227 = vunpack.c.0.s8 %v2226
        %v2228 = vperm.slane %v2220, %v2227
        %v2229 = vrot.slane %v2200, 4
        %v2230 = vsel %vm590, %v2229, %v2188
        %v2231 = vrot.slane %v2188, 4
        %v2232 = vsel %vm590, %v2200, %v2231
        %v2234 = vunpack.c.l.s4 1934713408
        %v2235 = vunpack.c.0.s8 %v2234
        %v2236 = vperm.slane %v2230, %v2235
        %v2238 = vunpack.c.l.s4 1934713408
        %v2239 = vunpack.c.0.s8 %v2238
        %v2240 = vperm.slane %v2232, %v2239
        %v2241 = vrot.slane %v2204, 4
        %v2242 = vsel %vm590, %v2241, %v2192
        %v2243 = vrot.slane %v2192, 4
        %v2244 = vsel %vm590, %v2204, %v2243
        %v2246 = vunpack.c.l.s4 1934713408
        %v2247 = vunpack.c.0.s8 %v2246
        %v2248 = vperm.slane %v2242, %v2247
        %v2250 = vunpack.c.l.s4 1934713408
        %v2251 = vunpack.c.0.s8 %v2250
        %v2252 = vperm.slane %v2244, %v2251
        %v2253 = vrot.slane %v2236, 4
        %v2254 = vsel %vm590, %v2253, %v2212
        %v2255 = vrot.slane %v2212, 4
        %v2256 = vsel %vm590, %v2236, %v2255
        %v2257 = vrot.slane %v2240, 4
        %v2258 = vsel %vm590, %v2257, %v2216
        %v2259 = vrot.slane %v2216, 4
        %v2260 = vsel %vm590, %v2240, %v2259
        %v2261 = vrot.slane %v2248, 4
        %v2262 = vsel %vm590, %v2261, %v2224
        %v2263 = vrot.slane %v2224, 4
        %v2264 = vsel %vm590, %v2248, %v2263
        %v2265 = vrot.slane %v2252, 4
        %v2266 = vsel %vm590, %v2265, %v2228
        %v2267 = vrot.slane %v2228, 4
        %v2268 = vsel %vm590, %v2252, %v2267
        %v2269 = vrot.slane %v2120, 4
        %v2270 = vsel %vm590, %v2269, %v2112
        %v2271 = vrot.slane %v2112, 4
        %v2272 = vsel %vm590, %v2120, %v2271
        %v2274 = vunpack.c.l.s4 1983009808
        %v2275 = vunpack.c.0.s8 %v2274
        %v2276 = vperm.slane %v2270, %v2275
        %v2278 = vunpack.c.l.s4 1983009808
        %v2279 = vunpack.c.0.s8 %v2278
        %v2280 = vperm.slane %v2272, %v2279
        %v2281 = vrot.slane %v2124, 4
        %v2282 = vsel %vm590, %v2281, %v2116
        %v2283 = vrot.slane %v2116, 4
        %v2284 = vsel %vm590, %v2124, %v2283
        %v2286 = vunpack.c.l.s4 1983009808
        %v2287 = vunpack.c.0.s8 %v2286
        %v2288 = vperm.slane %v2282, %v2287
        %v2290 = vunpack.c.l.s4 1983009808
        %v2291 = vunpack.c.0.s8 %v2290
        %v2292 = vperm.slane %v2284, %v2291
        %v2293 = vrot.slane %v2136, 4
        %v2294 = vsel %vm590, %v2293, %v2128
        %v2295 = vrot.slane %v2128, 4
        %v2296 = vsel %vm590, %v2136, %v2295
        %v2298 = vunpack.c.l.s4 1983009808
        %v2299 = vunpack.c.0.s8 %v2298
        %v2300 = vperm.slane %v2294, %v2299
        %v2302 = vunpack.c.l.s4 1983009808
        %v2303 = vunpack.c.0.s8 %v2302
        %v2304 = vperm.slane %v2296, %v2303
        %v2305 = vrot.slane %v2140, 4
        %v2306 = vsel %vm590, %v2305, %v2132
        %v2307 = vrot.slane %v2132, 4
        %v2308 = vsel %vm590, %v2140, %v2307
        %v2310 = vunpack.c.l.s4 1983009808
        %v2311 = vunpack.c.0.s8 %v2310
        %v2312 = vperm.slane %v2306, %v2311
        %v2314 = vunpack.c.l.s4 1983009808
        %v2315 = vunpack.c.0.s8 %v2314
        %v2316 = vperm.slane %v2308, %v2315
        %v2317 = vrot.slane %v2288, 4
        %v2318 = vsel %vm590, %v2317, %v2276
        %v2319 = vrot.slane %v2276, 4
        %v2320 = vsel %vm590, %v2288, %v2319
        %v2322 = vunpack.c.l.s4 1934713408
        %v2323 = vunpack.c.0.s8 %v2322
        %v2324 = vperm.slane %v2318, %v2323
        %v2326 = vunpack.c.l.s4 1934713408
        %v2327 = vunpack.c.0.s8 %v2326
        %v2328 = vperm.slane %v2320, %v2327
        %v2329 = vrot.slane %v2292, 4
        %v2330 = vsel %vm590, %v2329, %v2280
        %v2331 = vrot.slane %v2280, 4
        %v2332 = vsel %vm590, %v2292, %v2331
        %v2334 = vunpack.c.l.s4 1934713408
        %v2335 = vunpack.c.0.s8 %v2334
        %v2336 = vperm.slane %v2330, %v2335
        %v2338 = vunpack.c.l.s4 1934713408
        %v2339 = vunpack.c.0.s8 %v2338
        %v2340 = vperm.slane %v2332, %v2339
        %v2341 = vrot.slane %v2312, 4
        %v2342 = vsel %vm590, %v2341, %v2300
        %v2343 = vrot.slane %v2300, 4
        %v2344 = vsel %vm590, %v2312, %v2343
        %v2346 = vunpack.c.l.s4 1934713408
        %v2347 = vunpack.c.0.s8 %v2346
        %v2348 = vperm.slane %v2342, %v2347
        %v2350 = vunpack.c.l.s4 1934713408
        %v2351 = vunpack.c.0.s8 %v2350
        %v2352 = vperm.slane %v2344, %v2351
        %v2353 = vrot.slane %v2316, 4
        %v2354 = vsel %vm590, %v2353, %v2304
        %v2355 = vrot.slane %v2304, 4
        %v2356 = vsel %vm590, %v2316, %v2355
        %v2358 = vunpack.c.l.s4 1934713408
        %v2359 = vunpack.c.0.s8 %v2358
        %v2360 = vperm.slane %v2354, %v2359
        %v2362 = vunpack.c.l.s4 1934713408
        %v2363 = vunpack.c.0.s8 %v2362
        %v2364 = vperm.slane %v2356, %v2363
        %v2365 = vrot.slane %v2348, 4
        %v2366 = vsel %vm590, %v2365, %v2324
        %v2367 = vrot.slane %v2324, 4
        %v2368 = vsel %vm590, %v2348, %v2367
        %v2369 = vrot.slane %v2352, 4
        %v2370 = vsel %vm590, %v2369, %v2328
        %v2371 = vrot.slane %v2328, 4
        %v2372 = vsel %vm590, %v2352, %v2371
        %v2373 = vrot.slane %v2360, 4
        %v2374 = vsel %vm590, %v2373, %v2336
        %v2375 = vrot.slane %v2336, 4
        %v2376 = vsel %vm590, %v2360, %v2375
        %v2377 = vrot.slane %v2364, 4
        %v2378 = vsel %vm590, %v2377, %v2340
        %v2379 = vrot.slane %v2340, 4
        %v2380 = vsel %vm590, %v2364, %v2379
        %2382 = vrot.lane.b32.xlu0 %v2256, 16
        %v2383 = vpop.permute.xlu0 %2382
        %2386 = vrot.lane.b32.xlu0 %v2258, 32
        %v2387 = vpop.permute.xlu0 %2386
        %2390 = vrot.lane.b32.xlu0 %v2260, 48
        %v2391 = vpop.permute.xlu0 %2390
        %2394 = vrot.lane.b32.xlu0 %v2262, 64
        %v2395 = vpop.permute.xlu0 %2394
        %2398 = vrot.lane.b32.xlu0 %v2264, 80
        %v2399 = vpop.permute.xlu0 %2398
        %2402 = vrot.lane.b32.xlu0 %v2266, 96
        %v2403 = vpop.permute.xlu0 %2402
        %2406 = vrot.lane.b32.xlu0 %v2268, 112
        %v2407 = vpop.permute.xlu0 %2406
        %2410 = vrot.lane.b32.xlu0 %v2368, 16
        %v2411 = vpop.permute.xlu0 %2410
        %2414 = vrot.lane.b32.xlu0 %v2370, 32
        %v2415 = vpop.permute.xlu0 %2414
        %2418 = vrot.lane.b32.xlu0 %v2372, 48
        %v2419 = vpop.permute.xlu0 %2418
        %2422 = vrot.lane.b32.xlu0 %v2374, 64
        %v2423 = vpop.permute.xlu0 %2422
        %2426 = vrot.lane.b32.xlu0 %v2376, 80
        %v2427 = vpop.permute.xlu0 %2426
        %2430 = vrot.lane.b32.xlu0 %v2378, 96
        %v2431 = vpop.permute.xlu0 %2430
        %2434 = vrot.lane.b32.xlu0 %v2380, 112
        %v2435 = vpop.permute.xlu0 %2434
        %v2437 = vsel %vm870, %v2254, %v2383
        %v2438 = vsel %vm872, %v2437, %v2387
        %v2439 = vsel %vm874, %v2438, %v2391
        %v2440 = vsel %vm876, %v2439, %v2395
        %v2441 = vsel %vm878, %v2440, %v2399
        %v2442 = vsel %vm880, %v2441, %v2403
        %v2443 = vsel %vm882, %v2442, %v2407
        %v2444 = vsel %vm870, %v2366, %v2411
        %v2445 = vsel %vm872, %v2444, %v2415
        %v2446 = vsel %vm874, %v2445, %v2419
        %v2447 = vsel %vm876, %v2446, %v2423
        %v2448 = vsel %vm878, %v2447, %v2427
        %v2449 = vsel %vm880, %v2448, %v2431
        %v2450 = vsel %vm882, %v2449, %v2435
        %s2451 = scalar_lea.vmem %s2, 16
        %v2452 = vld [vmem:[%s2451] sm:$0xf]
        %v2453 = vpack.c.bf16 %v2443, %v2443
        %v2454 = vpack.c.bf16 %v2450, %v2450
        %v2456 = vsel %vm312, %v2452, 0
        %v2459 = vsel %vm319, %v2453, 0
        %v2462 = vsel %vm319, %v2454, 0
        %2464 = vmatpush.bf16.msra.mxu0 0
        %2465 = vmatpush.bf16.msra.mxu0 0
        %2466 = vmatpush.bf16.msra.mxu0 0
        %2467 = vmatpush.bf16.msra.mxu0 0
        %2468 = vmatpush.bf16.msra.mxu0 0
        %2469 = vmatpush.bf16.msra.mxu0 0
        %2470 = vmatpush.bf16.msra.mxu0 0
        %2471 = vmatpush.bf16.msra.mxu0 %v2459
        %2472 = vmatmul.bf16.gmra.mxu0 %v2456
        %v2473 = vpop.f32.mrf.mxu0
        %v2474 = vadd.f32 0.0, %v2473
        %v2475 = vpop.f32.mrf.mxu0
        %2476 = vdwg.mxu0
        %2477 = vmatpush.bf16.msra.mxu0 0
        %2478 = vmatpush.bf16.msra.mxu0 0
        %2479 = vmatpush.bf16.msra.mxu0 0
        %2480 = vmatpush.bf16.msra.mxu0 0
        %2481 = vmatpush.bf16.msra.mxu0 0
        %2482 = vmatpush.bf16.msra.mxu0 0
        %2483 = vmatpush.bf16.msra.mxu0 0
        %2484 = vmatpush.bf16.msra.mxu0 %v2462
        %2485 = vmatmul.bf16.gmra.mxu0 %v2456
        %v2486 = vpop.f32.mrf.mxu0
        %v2487 = vadd.f32 0.0, %v2486
        %v2488 = vpop.f32.mrf.mxu0
        %2489 = vdwg.mxu0
        %v2490 = vadd.f32 %v2107, %v2474
        %v2491 = vadd.f32 %v2108, %v2487
        %2492 = vrot.lane.b32.xlu0 %v1720, 126
        %v2493 = vpop.permute.xlu0 %2492
        %2494 = vrot.lane.b32.xlu0 %v1722, 126
        %v2495 = vpop.permute.xlu0 %2494
        %2496 = vrot.lane.b32.xlu0 %v1725, 126
        %v2497 = vpop.permute.xlu0 %2496
        %2498 = vrot.lane.b32.xlu0 %v1727, 126
        %v2499 = vpop.permute.xlu0 %2498
        %2500 = vrot.lane.b32.xlu0 %v1730, 126
        %v2501 = vpop.permute.xlu0 %2500
        %2502 = vrot.lane.b32.xlu0 %v1732, 126
        %v2503 = vpop.permute.xlu0 %2502
        %2504 = vrot.lane.b32.xlu0 %v1735, 126
        %v2505 = vpop.permute.xlu0 %2504
        %2506 = vrot.lane.b32.xlu0 %v1737, 126
        %v2507 = vpop.permute.xlu0 %2506
        %2508 = vrot.lane.b32.xlu0 %v1740, 126
        %v2509 = vpop.permute.xlu0 %2508
        %2510 = vrot.lane.b32.xlu0 %v1742, 126
        %v2511 = vpop.permute.xlu0 %2510
        %2512 = vrot.lane.b32.xlu0 %v1745, 126
        %v2513 = vpop.permute.xlu0 %2512
        %2514 = vrot.lane.b32.xlu0 %v1747, 126
        %v2515 = vpop.permute.xlu0 %2514
        %2516 = vrot.lane.b32.xlu0 %v1750, 126
        %v2517 = vpop.permute.xlu0 %2516
        %2518 = vrot.lane.b32.xlu0 %v1752, 126
        %v2519 = vpop.permute.xlu0 %2518
        %2520 = vrot.lane.b32.xlu0 %v1755, 126
        %v2521 = vpop.permute.xlu0 %2520
        %2522 = vrot.lane.b32.xlu0 %v1757, 126
        %v2523 = vpop.permute.xlu0 %2522
        %v2540 = vrot.slane %v2501, 4
        %v2541 = vsel %vm590, %v2540, %v2493
        %v2542 = vrot.slane %v2493, 4
        %v2543 = vsel %vm590, %v2501, %v2542
        %v2545 = vunpack.c.l.s4 1983009808
        %v2546 = vunpack.c.0.s8 %v2545
        %v2547 = vperm.slane %v2541, %v2546
        %v2549 = vunpack.c.l.s4 1983009808
        %v2550 = vunpack.c.0.s8 %v2549
        %v2551 = vperm.slane %v2543, %v2550
        %v2552 = vrot.slane %v2505, 4
        %v2553 = vsel %vm590, %v2552, %v2497
        %v2554 = vrot.slane %v2497, 4
        %v2555 = vsel %vm590, %v2505, %v2554
        %v2557 = vunpack.c.l.s4 1983009808
        %v2558 = vunpack.c.0.s8 %v2557
        %v2559 = vperm.slane %v2553, %v2558
        %v2561 = vunpack.c.l.s4 1983009808
        %v2562 = vunpack.c.0.s8 %v2561
        %v2563 = vperm.slane %v2555, %v2562
        %v2564 = vrot.slane %v2517, 4
        %v2565 = vsel %vm590, %v2564, %v2509
        %v2566 = vrot.slane %v2509, 4
        %v2567 = vsel %vm590, %v2517, %v2566
        %v2569 = vunpack.c.l.s4 1983009808
        %v2570 = vunpack.c.0.s8 %v2569
        %v2571 = vperm.slane %v2565, %v2570
        %v2573 = vunpack.c.l.s4 1983009808
        %v2574 = vunpack.c.0.s8 %v2573
        %v2575 = vperm.slane %v2567, %v2574
        %v2576 = vrot.slane %v2521, 4
        %v2577 = vsel %vm590, %v2576, %v2513
        %v2578 = vrot.slane %v2513, 4
        %v2579 = vsel %vm590, %v2521, %v2578
        %v2581 = vunpack.c.l.s4 1983009808
        %v2582 = vunpack.c.0.s8 %v2581
        %v2583 = vperm.slane %v2577, %v2582
        %v2585 = vunpack.c.l.s4 1983009808
        %v2586 = vunpack.c.0.s8 %v2585
        %v2587 = vperm.slane %v2579, %v2586
        %v2588 = vrot.slane %v2559, 4
        %v2589 = vsel %vm590, %v2588, %v2547
        %v2590 = vrot.slane %v2547, 4
        %v2591 = vsel %vm590, %v2559, %v2590
        %v2593 = vunpack.c.l.s4 1934713408
        %v2594 = vunpack.c.0.s8 %v2593
        %v2595 = vperm.slane %v2589, %v2594
        %v2597 = vunpack.c.l.s4 1934713408
        %v2598 = vunpack.c.0.s8 %v2597
        %v2599 = vperm.slane %v2591, %v2598
        %v2600 = vrot.slane %v2563, 4
        %v2601 = vsel %vm590, %v2600, %v2551
        %v2602 = vrot.slane %v2551, 4
        %v2603 = vsel %vm590, %v2563, %v2602
        %v2605 = vunpack.c.l.s4 1934713408
        %v2606 = vunpack.c.0.s8 %v2605
        %v2607 = vperm.slane %v2601, %v2606
        %v2609 = vunpack.c.l.s4 1934713408
        %v2610 = vunpack.c.0.s8 %v2609
        %v2611 = vperm.slane %v2603, %v2610
        %v2612 = vrot.slane %v2583, 4
        %v2613 = vsel %vm590, %v2612, %v2571
        %v2614 = vrot.slane %v2571, 4
        %v2615 = vsel %vm590, %v2583, %v2614
        %v2617 = vunpack.c.l.s4 1934713408
        %v2618 = vunpack.c.0.s8 %v2617
        %v2619 = vperm.slane %v2613, %v2618
        %v2621 = vunpack.c.l.s4 1934713408
        %v2622 = vunpack.c.0.s8 %v2621
        %v2623 = vperm.slane %v2615, %v2622
        %v2624 = vrot.slane %v2587, 4
        %v2625 = vsel %vm590, %v2624, %v2575
        %v2626 = vrot.slane %v2575, 4
        %v2627 = vsel %vm590, %v2587, %v2626
        %v2629 = vunpack.c.l.s4 1934713408
        %v2630 = vunpack.c.0.s8 %v2629
        %v2631 = vperm.slane %v2625, %v2630
        %v2633 = vunpack.c.l.s4 1934713408
        %v2634 = vunpack.c.0.s8 %v2633
        %v2635 = vperm.slane %v2627, %v2634
        %v2636 = vrot.slane %v2619, 4
        %v2637 = vsel %vm590, %v2636, %v2595
        %v2638 = vrot.slane %v2595, 4
        %v2639 = vsel %vm590, %v2619, %v2638
        %v2640 = vrot.slane %v2623, 4
        %v2641 = vsel %vm590, %v2640, %v2599
        %v2642 = vrot.slane %v2599, 4
        %v2643 = vsel %vm590, %v2623, %v2642
        %v2644 = vrot.slane %v2631, 4
        %v2645 = vsel %vm590, %v2644, %v2607
        %v2646 = vrot.slane %v2607, 4
        %v2647 = vsel %vm590, %v2631, %v2646
        %v2648 = vrot.slane %v2635, 4
        %v2649 = vsel %vm590, %v2648, %v2611
        %v2650 = vrot.slane %v2611, 4
        %v2651 = vsel %vm590, %v2635, %v2650
        %v2652 = vrot.slane %v2503, 4
        %v2653 = vsel %vm590, %v2652, %v2495
        %v2654 = vrot.slane %v2495, 4
        %v2655 = vsel %vm590, %v2503, %v2654
        %v2657 = vunpack.c.l.s4 1983009808
        %v2658 = vunpack.c.0.s8 %v2657
        %v2659 = vperm.slane %v2653, %v2658
        %v2661 = vunpack.c.l.s4 1983009808
        %v2662 = vunpack.c.0.s8 %v2661
        %v2663 = vperm.slane %v2655, %v2662
        %v2664 = vrot.slane %v2507, 4
        %v2665 = vsel %vm590, %v2664, %v2499
        %v2666 = vrot.slane %v2499, 4
        %v2667 = vsel %vm590, %v2507, %v2666
        %v2669 = vunpack.c.l.s4 1983009808
        %v2670 = vunpack.c.0.s8 %v2669
        %v2671 = vperm.slane %v2665, %v2670
        %v2673 = vunpack.c.l.s4 1983009808
        %v2674 = vunpack.c.0.s8 %v2673
        %v2675 = vperm.slane %v2667, %v2674
        %v2676 = vrot.slane %v2519, 4
        %v2677 = vsel %vm590, %v2676, %v2511
        %v2678 = vrot.slane %v2511, 4
        %v2679 = vsel %vm590, %v2519, %v2678
        %v2681 = vunpack.c.l.s4 1983009808
        %v2682 = vunpack.c.0.s8 %v2681
        %v2683 = vperm.slane %v2677, %v2682
        %v2685 = vunpack.c.l.s4 1983009808
        %v2686 = vunpack.c.0.s8 %v2685
        %v2687 = vperm.slane %v2679, %v2686
        %v2688 = vrot.slane %v2523, 4
        %v2689 = vsel %vm590, %v2688, %v2515
        %v2690 = vrot.slane %v2515, 4
        %v2691 = vsel %vm590, %v2523, %v2690
        %v2693 = vunpack.c.l.s4 1983009808
        %v2694 = vunpack.c.0.s8 %v2693
        %v2695 = vperm.slane %v2689, %v2694
        %v2697 = vunpack.c.l.s4 1983009808
        %v2698 = vunpack.c.0.s8 %v2697
        %v2699 = vperm.slane %v2691, %v2698
        %v2700 = vrot.slane %v2671, 4
        %v2701 = vsel %vm590, %v2700, %v2659
        %v2702 = vrot.slane %v2659, 4
        %v2703 = vsel %vm590, %v2671, %v2702
        %v2705 = vunpack.c.l.s4 1934713408
        %v2706 = vunpack.c.0.s8 %v2705
        %v2707 = vperm.slane %v2701, %v2706
        %v2709 = vunpack.c.l.s4 1934713408
        %v2710 = vunpack.c.0.s8 %v2709
        %v2711 = vperm.slane %v2703, %v2710
        %v2712 = vrot.slane %v2675, 4
        %v2713 = vsel %vm590, %v2712, %v2663
        %v2714 = vrot.slane %v2663, 4
        %v2715 = vsel %vm590, %v2675, %v2714
        %v2717 = vunpack.c.l.s4 1934713408
        %v2718 = vunpack.c.0.s8 %v2717
        %v2719 = vperm.slane %v2713, %v2718
        %v2721 = vunpack.c.l.s4 1934713408
        %v2722 = vunpack.c.0.s8 %v2721
        %v2723 = vperm.slane %v2715, %v2722
        %v2724 = vrot.slane %v2695, 4
        %v2725 = vsel %vm590, %v2724, %v2683
        %v2726 = vrot.slane %v2683, 4
        %v2727 = vsel %vm590, %v2695, %v2726
        %v2729 = vunpack.c.l.s4 1934713408
        %v2730 = vunpack.c.0.s8 %v2729
        %v2731 = vperm.slane %v2725, %v2730
        %v2733 = vunpack.c.l.s4 1934713408
        %v2734 = vunpack.c.0.s8 %v2733
        %v2735 = vperm.slane %v2727, %v2734
        %v2736 = vrot.slane %v2699, 4
        %v2737 = vsel %vm590, %v2736, %v2687
        %v2738 = vrot.slane %v2687, 4
        %v2739 = vsel %vm590, %v2699, %v2738
        %v2741 = vunpack.c.l.s4 1934713408
        %v2742 = vunpack.c.0.s8 %v2741
        %v2743 = vperm.slane %v2737, %v2742
        %v2745 = vunpack.c.l.s4 1934713408
        %v2746 = vunpack.c.0.s8 %v2745
        %v2747 = vperm.slane %v2739, %v2746
        %v2748 = vrot.slane %v2731, 4
        %v2749 = vsel %vm590, %v2748, %v2707
        %v2750 = vrot.slane %v2707, 4
        %v2751 = vsel %vm590, %v2731, %v2750
        %v2752 = vrot.slane %v2735, 4
        %v2753 = vsel %vm590, %v2752, %v2711
        %v2754 = vrot.slane %v2711, 4
        %v2755 = vsel %vm590, %v2735, %v2754
        %v2756 = vrot.slane %v2743, 4
        %v2757 = vsel %vm590, %v2756, %v2719
        %v2758 = vrot.slane %v2719, 4
        %v2759 = vsel %vm590, %v2743, %v2758
        %v2760 = vrot.slane %v2747, 4
        %v2761 = vsel %vm590, %v2760, %v2723
        %v2762 = vrot.slane %v2723, 4
        %v2763 = vsel %vm590, %v2747, %v2762
        %2765 = vrot.lane.b32.xlu0 %v2639, 16
        %v2766 = vpop.permute.xlu0 %2765
        %2769 = vrot.lane.b32.xlu0 %v2641, 32
        %v2770 = vpop.permute.xlu0 %2769
        %2773 = vrot.lane.b32.xlu0 %v2643, 48
        %v2774 = vpop.permute.xlu0 %2773
        %2777 = vrot.lane.b32.xlu0 %v2645, 64
        %v2778 = vpop.permute.xlu0 %2777
        %2781 = vrot.lane.b32.xlu0 %v2647, 80
        %v2782 = vpop.permute.xlu0 %2781
        %2785 = vrot.lane.b32.xlu0 %v2649, 96
        %v2786 = vpop.permute.xlu0 %2785
        %2789 = vrot.lane.b32.xlu0 %v2651, 112
        %v2790 = vpop.permute.xlu0 %2789
        %2793 = vrot.lane.b32.xlu0 %v2751, 16
        %v2794 = vpop.permute.xlu0 %2793
        %2797 = vrot.lane.b32.xlu0 %v2753, 32
        %v2798 = vpop.permute.xlu0 %2797
        %2801 = vrot.lane.b32.xlu0 %v2755, 48
        %v2802 = vpop.permute.xlu0 %2801
        %2805 = vrot.lane.b32.xlu0 %v2757, 64
        %v2806 = vpop.permute.xlu0 %2805
        %2809 = vrot.lane.b32.xlu0 %v2759, 80
        %v2810 = vpop.permute.xlu0 %2809
        %2813 = vrot.lane.b32.xlu0 %v2761, 96
        %v2814 = vpop.permute.xlu0 %2813
        %2817 = vrot.lane.b32.xlu0 %v2763, 112
        %v2818 = vpop.permute.xlu0 %2817
        %v2820 = vsel %vm870, %v2637, %v2766
        %v2821 = vsel %vm872, %v2820, %v2770
        %v2822 = vsel %vm874, %v2821, %v2774
        %v2823 = vsel %vm876, %v2822, %v2778
        %v2824 = vsel %vm878, %v2823, %v2782
        %v2825 = vsel %vm880, %v2824, %v2786
        %v2826 = vsel %vm882, %v2825, %v2790
        %v2827 = vsel %vm870, %v2749, %v2794
        %v2828 = vsel %vm872, %v2827, %v2798
        %v2829 = vsel %vm874, %v2828, %v2802
        %v2830 = vsel %vm876, %v2829, %v2806
        %v2831 = vsel %vm878, %v2830, %v2810
        %v2832 = vsel %vm880, %v2831, %v2814
        %v2833 = vsel %vm882, %v2832, %v2818
        %s2834 = scalar_lea.vmem %s2, 20
        %v2835 = vld [vmem:[%s2834] sm:$0xf]
        %v2836 = vpack.c.bf16 %v2826, %v2826
        %v2837 = vpack.c.bf16 %v2833, %v2833
        %v2839 = vsel %vm312, %v2835, 0
        %v2842 = vsel %vm319, %v2836, 0
        %v2845 = vsel %vm319, %v2837, 0
        %2847 = vmatpush.bf16.msra.mxu0 0
        %2848 = vmatpush.bf16.msra.mxu0 0
        %2849 = vmatpush.bf16.msra.mxu0 0
        %2850 = vmatpush.bf16.msra.mxu0 0
        %2851 = vmatpush.bf16.msra.mxu0 0
        %2852 = vmatpush.bf16.msra.mxu0 0
        %2853 = vmatpush.bf16.msra.mxu0 0
        %2854 = vmatpush.bf16.msra.mxu0 %v2842
        %2855 = vmatmul.bf16.gmra.mxu0 %v2839
        %v2856 = vpop.f32.mrf.mxu0
        %v2857 = vadd.f32 0.0, %v2856
        %v2858 = vpop.f32.mrf.mxu0
        %2859 = vdwg.mxu0
        %2860 = vmatpush.bf16.msra.mxu0 0
        %2861 = vmatpush.bf16.msra.mxu0 0
        %2862 = vmatpush.bf16.msra.mxu0 0
        %2863 = vmatpush.bf16.msra.mxu0 0
        %2864 = vmatpush.bf16.msra.mxu0 0
        %2865 = vmatpush.bf16.msra.mxu0 0
        %2866 = vmatpush.bf16.msra.mxu0 0
        %2867 = vmatpush.bf16.msra.mxu0 %v2845
        %2868 = vmatmul.bf16.gmra.mxu0 %v2839
        %v2869 = vpop.f32.mrf.mxu0
        %v2870 = vadd.f32 0.0, %v2869
        %v2871 = vpop.f32.mrf.mxu0
        %2872 = vdwg.mxu0
        %v2873 = vadd.f32 %v2490, %v2857
        %v2874 = vadd.f32 %v2491, %v2870
        %vm2875 = vcmask 1045504
        %v2876 = vrot.slane %v565, 2
        %v2877 = vrot.slane %v566, 2
        %v2878 = vsel %vm2875, %v2876, %v2877
        %v2879 = vrot.slane %v567, 2
        %v2880 = vsel %vm2875, %v2877, %v2879
        %v2881 = vrot.slane %v568, 2
        %v2882 = vrot.slane %v569, 2
        %v2883 = vsel %vm2875, %v2881, %v2882
        %v2884 = vrot.slane %v570, 2
        %v2885 = vsel %vm2875, %v2882, %v2884
        %v2886 = vrot.slane %v571, 2
        %v2887 = vrot.slane %v572, 2
        %v2888 = vsel %vm2875, %v2886, %v2887
        %v2889 = vrot.slane %v573, 2
        %v2890 = vsel %vm2875, %v2887, %v2889
        %v2891 = vrot.slane %v574, 2
        %v2892 = vrot.slane %v575, 2
        %v2893 = vsel %vm2875, %v2891, %v2892
        %v2894 = vrot.slane %v576, 2
        %v2895 = vsel %vm2875, %v2892, %v2894
        %v2896 = vrot.slane %v577, 2
        %v2897 = vrot.slane %v578, 2
        %v2898 = vsel %vm2875, %v2896, %v2897
        %v2899 = vrot.slane %v579, 2
        %v2900 = vsel %vm2875, %v2897, %v2899
        %v2901 = vrot.slane %v580, 2
        %v2902 = vrot.slane %v581, 2
        %v2903 = vsel %vm2875, %v2901, %v2902
        %v2904 = vrot.slane %v582, 2
        %v2905 = vsel %vm2875, %v2902, %v2904
        %v2906 = vrot.slane %v583, 2
        %v2907 = vrot.slane %v584, 2
        %v2908 = vsel %vm2875, %v2906, %v2907
        %v2909 = vrot.slane %v585, 2
        %v2910 = vsel %vm2875, %v2907, %v2909
        %v2911 = vrot.slane %v586, 2
        %v2912 = vrot.slane %v587, 2
        %v2913 = vsel %vm2875, %v2911, %v2912
        %v2914 = vrot.slane %v588, 2
        %v2915 = vsel %vm2875, %v2912, %v2914
        %v2932 = vrot.slane %v2888, 4
        %v2933 = vsel %vm590, %v2932, %v2878
        %v2934 = vrot.slane %v2878, 4
        %v2935 = vsel %vm590, %v2888, %v2934
        %v2937 = vunpack.c.l.s4 1983009808
        %v2938 = vunpack.c.0.s8 %v2937
        %v2939 = vperm.slane %v2933, %v2938
        %v2941 = vunpack.c.l.s4 1983009808
        %v2942 = vunpack.c.0.s8 %v2941
        %v2943 = vperm.slane %v2935, %v2942
        %v2944 = vrot.slane %v2893, 4
        %v2945 = vsel %vm590, %v2944, %v2883
        %v2946 = vrot.slane %v2883, 4
        %v2947 = vsel %vm590, %v2893, %v2946
        %v2949 = vunpack.c.l.s4 1983009808
        %v2950 = vunpack.c.0.s8 %v2949
        %v2951 = vperm.slane %v2945, %v2950
        %v2953 = vunpack.c.l.s4 1983009808
        %v2954 = vunpack.c.0.s8 %v2953
        %v2955 = vperm.slane %v2947, %v2954
        %v2956 = vrot.slane %v2908, 4
        %v2957 = vsel %vm590, %v2956, %v2898
        %v2958 = vrot.slane %v2898, 4
        %v2959 = vsel %vm590, %v2908, %v2958
        %v2961 = vunpack.c.l.s4 1983009808
        %v2962 = vunpack.c.0.s8 %v2961
        %v2963 = vperm.slane %v2957, %v2962
        %v2965 = vunpack.c.l.s4 1983009808
        %v2966 = vunpack.c.0.s8 %v2965
        %v2967 = vperm.slane %v2959, %v2966
        %v2968 = vrot.slane %v2913, 4
        %v2969 = vsel %vm590, %v2968, %v2903
        %v2970 = vrot.slane %v2903, 4
        %v2971 = vsel %vm590, %v2913, %v2970
        %v2973 = vunpack.c.l.s4 1983009808
        %v2974 = vunpack.c.0.s8 %v2973
        %v2975 = vperm.slane %v2969, %v2974
        %v2977 = vunpack.c.l.s4 1983009808
        %v2978 = vunpack.c.0.s8 %v2977
        %v2979 = vperm.slane %v2971, %v2978
        %v2980 = vrot.slane %v2951, 4
        %v2981 = vsel %vm590, %v2980, %v2939
        %v2982 = vrot.slane %v2939, 4
        %v2983 = vsel %vm590, %v2951, %v2982
        %v2985 = vunpack.c.l.s4 1934713408
        %v2986 = vunpack.c.0.s8 %v2985
        %v2987 = vperm.slane %v2981, %v2986
        %v2989 = vunpack.c.l.s4 1934713408
        %v2990 = vunpack.c.0.s8 %v2989
        %v2991 = vperm.slane %v2983, %v2990
        %v2992 = vrot.slane %v2955, 4
        %v2993 = vsel %vm590, %v2992, %v2943
        %v2994 = vrot.slane %v2943, 4
        %v2995 = vsel %vm590, %v2955, %v2994
        %v2997 = vunpack.c.l.s4 1934713408
        %v2998 = vunpack.c.0.s8 %v2997
        %v2999 = vperm.slane %v2993, %v2998
        %v3001 = vunpack.c.l.s4 1934713408
        %v3002 = vunpack.c.0.s8 %v3001
        %v3003 = vperm.slane %v2995, %v3002
        %v3004 = vrot.slane %v2975, 4
        %v3005 = vsel %vm590, %v3004, %v2963
        %v3006 = vrot.slane %v2963, 4
        %v3007 = vsel %vm590, %v2975, %v3006
        %v3009 = vunpack.c.l.s4 1934713408
        %v3010 = vunpack.c.0.s8 %v3009
        %v3011 = vperm.slane %v3005, %v3010
        %v3013 = vunpack.c.l.s4 1934713408
        %v3014 = vunpack.c.0.s8 %v3013
        %v3015 = vperm.slane %v3007, %v3014
        %v3016 = vrot.slane %v2979, 4
        %v3017 = vsel %vm590, %v3016, %v2967
        %v3018 = vrot.slane %v2967, 4
        %v3019 = vsel %vm590, %v2979, %v3018
        %v3021 = vunpack.c.l.s4 1934713408
        %v3022 = vunpack.c.0.s8 %v3021
        %v3023 = vperm.slane %v3017, %v3022
        %v3025 = vunpack.c.l.s4 1934713408
        %v3026 = vunpack.c.0.s8 %v3025
        %v3027 = vperm.slane %v3019, %v3026
        %v3028 = vrot.slane %v3011, 4
        %v3029 = vsel %vm590, %v3028, %v2987
        %v3030 = vrot.slane %v2987, 4
        %v3031 = vsel %vm590, %v3011, %v3030
        %v3032 = vrot.slane %v3015, 4
        %v3033 = vsel %vm590, %v3032, %v2991
        %v3034 = vrot.slane %v2991, 4
        %v3035 = vsel %vm590, %v3015, %v3034
        %v3036 = vrot.slane %v3023, 4
        %v3037 = vsel %vm590, %v3036, %v2999
        %v3038 = vrot.slane %v2999, 4
        %v3039 = vsel %vm590, %v3023, %v3038
        %v3040 = vrot.slane %v3027, 4
        %v3041 = vsel %vm590, %v3040, %v3003
        %v3042 = vrot.slane %v3003, 4
        %v3043 = vsel %vm590, %v3027, %v3042
        %v3044 = vrot.slane %v2890, 4
        %v3045 = vsel %vm590, %v3044, %v2880
        %v3046 = vrot.slane %v2880, 4
        %v3047 = vsel %vm590, %v2890, %v3046
        %v3049 = vunpack.c.l.s4 1983009808
        %v3050 = vunpack.c.0.s8 %v3049
        %v3051 = vperm.slane %v3045, %v3050
        %v3053 = vunpack.c.l.s4 1983009808
        %v3054 = vunpack.c.0.s8 %v3053
        %v3055 = vperm.slane %v3047, %v3054
        %v3056 = vrot.slane %v2895, 4
        %v3057 = vsel %vm590, %v3056, %v2885
        %v3058 = vrot.slane %v2885, 4
        %v3059 = vsel %vm590, %v2895, %v3058
        %v3061 = vunpack.c.l.s4 1983009808
        %v3062 = vunpack.c.0.s8 %v3061
        %v3063 = vperm.slane %v3057, %v3062
        %v3065 = vunpack.c.l.s4 1983009808
        %v3066 = vunpack.c.0.s8 %v3065
        %v3067 = vperm.slane %v3059, %v3066
        %v3068 = vrot.slane %v2910, 4
        %v3069 = vsel %vm590, %v3068, %v2900
        %v3070 = vrot.slane %v2900, 4
        %v3071 = vsel %vm590, %v2910, %v3070
        %v3073 = vunpack.c.l.s4 1983009808
        %v3074 = vunpack.c.0.s8 %v3073
        %v3075 = vperm.slane %v3069, %v3074
        %v3077 = vunpack.c.l.s4 1983009808
        %v3078 = vunpack.c.0.s8 %v3077
        %v3079 = vperm.slane %v3071, %v3078
        %v3080 = vrot.slane %v2915, 4
        %v3081 = vsel %vm590, %v3080, %v2905
        %v3082 = vrot.slane %v2905, 4
        %v3083 = vsel %vm590, %v2915, %v3082
        %v3085 = vunpack.c.l.s4 1983009808
        %v3086 = vunpack.c.0.s8 %v3085
        %v3087 = vperm.slane %v3081, %v3086
        %v3089 = vunpack.c.l.s4 1983009808
        %v3090 = vunpack.c.0.s8 %v3089
        %v3091 = vperm.slane %v3083, %v3090
        %v3092 = vrot.slane %v3063, 4
        %v3093 = vsel %vm590, %v3092, %v3051
        %v3094 = vrot.slane %v3051, 4
        %v3095 = vsel %vm590, %v3063, %v3094
        %v3097 = vunpack.c.l.s4 1934713408
        %v3098 = vunpack.c.0.s8 %v3097
        %v3099 = vperm.slane %v3093, %v3098
        %v3101 = vunpack.c.l.s4 1934713408
        %v3102 = vunpack.c.0.s8 %v3101
        %v3103 = vperm.slane %v3095, %v3102
        %v3104 = vrot.slane %v3067, 4
        %v3105 = vsel %vm590, %v3104, %v3055
        %v3106 = vrot.slane %v3055, 4
        %v3107 = vsel %vm590, %v3067, %v3106
        %v3109 = vunpack.c.l.s4 1934713408
        %v3110 = vunpack.c.0.s8 %v3109
        %v3111 = vperm.slane %v3105, %v3110
        %v3113 = vunpack.c.l.s4 1934713408
        %v3114 = vunpack.c.0.s8 %v3113
        %v3115 = vperm.slane %v3107, %v3114
        %v3116 = vrot.slane %v3087, 4
        %v3117 = vsel %vm590, %v3116, %v3075
        %v3118 = vrot.slane %v3075, 4
        %v3119 = vsel %vm590, %v3087, %v3118
        %v3121 = vunpack.c.l.s4 1934713408
        %v3122 = vunpack.c.0.s8 %v3121
        %v3123 = vperm.slane %v3117, %v3122
        %v3125 = vunpack.c.l.s4 1934713408
        %v3126 = vunpack.c.0.s8 %v3125
        %v3127 = vperm.slane %v3119, %v3126
        %v3128 = vrot.slane %v3091, 4
        %v3129 = vsel %vm590, %v3128, %v3079
        %v3130 = vrot.slane %v3079, 4
        %v3131 = vsel %vm590, %v3091, %v3130
        %v3133 = vunpack.c.l.s4 1934713408
        %v3134 = vunpack.c.0.s8 %v3133
        %v3135 = vperm.slane %v3129, %v3134
        %v3137 = vunpack.c.l.s4 1934713408
        %v3138 = vunpack.c.0.s8 %v3137
        %v3139 = vperm.slane %v3131, %v3138
        %v3140 = vrot.slane %v3123, 4
        %v3141 = vsel %vm590, %v3140, %v3099
        %v3142 = vrot.slane %v3099, 4
        %v3143 = vsel %vm590, %v3123, %v3142
        %v3144 = vrot.slane %v3127, 4
        %v3145 = vsel %vm590, %v3144, %v3103
        %v3146 = vrot.slane %v3103, 4
        %v3147 = vsel %vm590, %v3127, %v3146
        %v3148 = vrot.slane %v3135, 4
        %v3149 = vsel %vm590, %v3148, %v3111
        %v3150 = vrot.slane %v3111, 4
        %v3151 = vsel %vm590, %v3135, %v3150
        %v3152 = vrot.slane %v3139, 4
        %v3153 = vsel %vm590, %v3152, %v3115
        %v3154 = vrot.slane %v3115, 4
        %v3155 = vsel %vm590, %v3139, %v3154
        %3157 = vrot.lane.b32.xlu0 %v3031, 16
        %v3158 = vpop.permute.xlu0 %3157
        %3161 = vrot.lane.b32.xlu0 %v3033, 32
        %v3162 = vpop.permute.xlu0 %3161
        %3165 = vrot.lane.b32.xlu0 %v3035, 48
        %v3166 = vpop.permute.xlu0 %3165
        %3169 = vrot.lane.b32.xlu0 %v3037, 64
        %v3170 = vpop.permute.xlu0 %3169
        %3173 = vrot.lane.b32.xlu0 %v3039, 80
        %v3174 = vpop.permute.xlu0 %3173
        %3177 = vrot.lane.b32.xlu0 %v3041, 96
        %v3178 = vpop.permute.xlu0 %3177
        %3181 = vrot.lane.b32.xlu0 %v3043, 112
        %v3182 = vpop.permute.xlu0 %3181
        %3185 = vrot.lane.b32.xlu0 %v3143, 16
        %v3186 = vpop.permute.xlu0 %3185
        %3189 = vrot.lane.b32.xlu0 %v3145, 32
        %v3190 = vpop.permute.xlu0 %3189
        %3193 = vrot.lane.b32.xlu0 %v3147, 48
        %v3194 = vpop.permute.xlu0 %3193
        %3197 = vrot.lane.b32.xlu0 %v3149, 64
        %v3198 = vpop.permute.xlu0 %3197
        %3201 = vrot.lane.b32.xlu0 %v3151, 80
        %v3202 = vpop.permute.xlu0 %3201
        %3205 = vrot.lane.b32.xlu0 %v3153, 96
        %v3206 = vpop.permute.xlu0 %3205
        %3209 = vrot.lane.b32.xlu0 %v3155, 112
        %v3210 = vpop.permute.xlu0 %3209
        %v3212 = vsel %vm870, %v3029, %v3158
        %v3213 = vsel %vm872, %v3212, %v3162
        %v3214 = vsel %vm874, %v3213, %v3166
        %v3215 = vsel %vm876, %v3214, %v3170
        %v3216 = vsel %vm878, %v3215, %v3174
        %v3217 = vsel %vm880, %v3216, %v3178
        %v3218 = vsel %vm882, %v3217, %v3182
        %v3219 = vsel %vm870, %v3141, %v3186
        %v3220 = vsel %vm872, %v3219, %v3190
        %v3221 = vsel %vm874, %v3220, %v3194
        %v3222 = vsel %vm876, %v3221, %v3198
        %v3223 = vsel %vm878, %v3222, %v3202
        %v3224 = vsel %vm880, %v3223, %v3206
        %v3225 = vsel %vm882, %v3224, %v3210
        %s3226 = scalar_lea.vmem %s2, 24
        %v3227 = vld [vmem:[%s3226] sm:$0xf]
        %v3228 = vpack.c.bf16 %v3218, %v3218
        %v3229 = vpack.c.bf16 %v3225, %v3225
        %v3231 = vsel %vm312, %v3227, 0
        %v3234 = vsel %vm319, %v3228, 0
        %v3237 = vsel %vm319, %v3229, 0
        %3239 = vmatpush.bf16.msra.mxu0 0
        %3240 = vmatpush.bf16.msra.mxu0 0
        %3241 = vmatpush.bf16.msra.mxu0 0
        %3242 = vmatpush.bf16.msra.mxu0 0
        %3243 = vmatpush.bf16.msra.mxu0 0
        %3244 = vmatpush.bf16.msra.mxu0 0
        %3245 = vmatpush.bf16.msra.mxu0 0
        %3246 = vmatpush.bf16.msra.mxu0 %v3234
        %3247 = vmatmul.bf16.gmra.mxu0 %v3231
        %v3248 = vpop.f32.mrf.mxu0
        %v3249 = vadd.f32 0.0, %v3248
        %v3250 = vpop.f32.mrf.mxu0
        %3251 = vdwg.mxu0
        %3252 = vmatpush.bf16.msra.mxu0 0
        %3253 = vmatpush.bf16.msra.mxu0 0
        %3254 = vmatpush.bf16.msra.mxu0 0
        %3255 = vmatpush.bf16.msra.mxu0 0
        %3256 = vmatpush.bf16.msra.mxu0 0
        %3257 = vmatpush.bf16.msra.mxu0 0
        %3258 = vmatpush.bf16.msra.mxu0 0
        %3259 = vmatpush.bf16.msra.mxu0 %v3237
        %3260 = vmatmul.bf16.gmra.mxu0 %v3231
        %v3261 = vpop.f32.mrf.mxu0
        %v3262 = vadd.f32 0.0, %v3261
        %v3263 = vpop.f32.mrf.mxu0
        %3264 = vdwg.mxu0
        %v3265 = vadd.f32 %v2873, %v3249
        %v3266 = vadd.f32 %v2874, %v3262
        %3267 = vrot.lane.b32.xlu0 %v2878, 127
        %v3268 = vpop.permute.xlu0 %3267
        %3269 = vrot.lane.b32.xlu0 %v2880, 127
        %v3270 = vpop.permute.xlu0 %3269
        %3271 = vrot.lane.b32.xlu0 %v2883, 127
        %v3272 = vpop.permute.xlu0 %3271
        %3273 = vrot.lane.b32.xlu0 %v2885, 127
        %v3274 = vpop.permute.xlu0 %3273
        %3275 = vrot.lane.b32.xlu0 %v2888, 127
        %v3276 = vpop.permute.xlu0 %3275
        %3277 = vrot.lane.b32.xlu0 %v2890, 127
        %v3278 = vpop.permute.xlu0 %3277
        %3279 = vrot.lane.b32.xlu0 %v2893, 127
        %v3280 = vpop.permute.xlu0 %3279
        %3281 = vrot.lane.b32.xlu0 %v2895, 127
        %v3282 = vpop.permute.xlu0 %3281
        %3283 = vrot.lane.b32.xlu0 %v2898, 127
        %v3284 = vpop.permute.xlu0 %3283
        %3285 = vrot.lane.b32.xlu0 %v2900, 127
        %v3286 = vpop.permute.xlu0 %3285
        %3287 = vrot.lane.b32.xlu0 %v2903, 127
        %v3288 = vpop.permute.xlu0 %3287
        %3289 = vrot.lane.b32.xlu0 %v2905, 127
        %v3290 = vpop.permute.xlu0 %3289
        %3291 = vrot.lane.b32.xlu0 %v2908, 127
        %v3292 = vpop.permute.xlu0 %3291
        %3293 = vrot.lane.b32.xlu0 %v2910, 127
        %v3294 = vpop.permute.xlu0 %3293
        %3295 = vrot.lane.b32.xlu0 %v2913, 127
        %v3296 = vpop.permute.xlu0 %3295
        %3297 = vrot.lane.b32.xlu0 %v2915, 127
        %v3298 = vpop.permute.xlu0 %3297
        %v3315 = vrot.slane %v3276, 4
        %v3316 = vsel %vm590, %v3315, %v3268
        %v3317 = vrot.slane %v3268, 4
        %v3318 = vsel %vm590, %v3276, %v3317
        %v3320 = vunpack.c.l.s4 1983009808
        %v3321 = vunpack.c.0.s8 %v3320
        %v3322 = vperm.slane %v3316, %v3321
        %v3324 = vunpack.c.l.s4 1983009808
        %v3325 = vunpack.c.0.s8 %v3324
        %v3326 = vperm.slane %v3318, %v3325
        %v3327 = vrot.slane %v3280, 4
        %v3328 = vsel %vm590, %v3327, %v3272
        %v3329 = vrot.slane %v3272, 4
        %v3330 = vsel %vm590, %v3280, %v3329
        %v3332 = vunpack.c.l.s4 1983009808
        %v3333 = vunpack.c.0.s8 %v3332
        %v3334 = vperm.slane %v3328, %v3333
        %v3336 = vunpack.c.l.s4 1983009808
        %v3337 = vunpack.c.0.s8 %v3336
        %v3338 = vperm.slane %v3330, %v3337
        %v3339 = vrot.slane %v3292, 4
        %v3340 = vsel %vm590, %v3339, %v3284
        %v3341 = vrot.slane %v3284, 4
        %v3342 = vsel %vm590, %v3292, %v3341
        %v3344 = vunpack.c.l.s4 1983009808
        %v3345 = vunpack.c.0.s8 %v3344
        %v3346 = vperm.slane %v3340, %v3345
        %v3348 = vunpack.c.l.s4 1983009808
        %v3349 = vunpack.c.0.s8 %v3348
        %v3350 = vperm.slane %v3342, %v3349
        %v3351 = vrot.slane %v3296, 4
        %v3352 = vsel %vm590, %v3351, %v3288
        %v3353 = vrot.slane %v3288, 4
        %v3354 = vsel %vm590, %v3296, %v3353
        %v3356 = vunpack.c.l.s4 1983009808
        %v3357 = vunpack.c.0.s8 %v3356
        %v3358 = vperm.slane %v3352, %v3357
        %v3360 = vunpack.c.l.s4 1983009808
        %v3361 = vunpack.c.0.s8 %v3360
        %v3362 = vperm.slane %v3354, %v3361
        %v3363 = vrot.slane %v3334, 4
        %v3364 = vsel %vm590, %v3363, %v3322
        %v3365 = vrot.slane %v3322, 4
        %v3366 = vsel %vm590, %v3334, %v3365
        %v3368 = vunpack.c.l.s4 1934713408
        %v3369 = vunpack.c.0.s8 %v3368
        %v3370 = vperm.slane %v3364, %v3369
        %v3372 = vunpack.c.l.s4 1934713408
        %v3373 = vunpack.c.0.s8 %v3372
        %v3374 = vperm.slane %v3366, %v3373
        %v3375 = vrot.slane %v3338, 4
        %v3376 = vsel %vm590, %v3375, %v3326
        %v3377 = vrot.slane %v3326, 4
        %v3378 = vsel %vm590, %v3338, %v3377
        %v3380 = vunpack.c.l.s4 1934713408
        %v3381 = vunpack.c.0.s8 %v3380
        %v3382 = vperm.slane %v3376, %v3381
        %v3384 = vunpack.c.l.s4 1934713408
        %v3385 = vunpack.c.0.s8 %v3384
        %v3386 = vperm.slane %v3378, %v3385
        %v3387 = vrot.slane %v3358, 4
        %v3388 = vsel %vm590, %v3387, %v3346
        %v3389 = vrot.slane %v3346, 4
        %v3390 = vsel %vm590, %v3358, %v3389
        %v3392 = vunpack.c.l.s4 1934713408
        %v3393 = vunpack.c.0.s8 %v3392
        %v3394 = vperm.slane %v3388, %v3393
        %v3396 = vunpack.c.l.s4 1934713408
        %v3397 = vunpack.c.0.s8 %v3396
        %v3398 = vperm.slane %v3390, %v3397
        %v3399 = vrot.slane %v3362, 4
        %v3400 = vsel %vm590, %v3399, %v3350
        %v3401 = vrot.slane %v3350, 4
        %v3402 = vsel %vm590, %v3362, %v3401
        %v3404 = vunpack.c.l.s4 1934713408
        %v3405 = vunpack.c.0.s8 %v3404
        %v3406 = vperm.slane %v3400, %v3405
        %v3408 = vunpack.c.l.s4 1934713408
        %v3409 = vunpack.c.0.s8 %v3408
        %v3410 = vperm.slane %v3402, %v3409
        %v3411 = vrot.slane %v3394, 4
        %v3412 = vsel %vm590, %v3411, %v3370
        %v3413 = vrot.slane %v3370, 4
        %v3414 = vsel %vm590, %v3394, %v3413
        %v3415 = vrot.slane %v3398, 4
        %v3416 = vsel %vm590, %v3415, %v3374
        %v3417 = vrot.slane %v3374, 4
        %v3418 = vsel %vm590, %v3398, %v3417
        %v3419 = vrot.slane %v3406, 4
        %v3420 = vsel %vm590, %v3419, %v3382
        %v3421 = vrot.slane %v3382, 4
        %v3422 = vsel %vm590, %v3406, %v3421
        %v3423 = vrot.slane %v3410, 4
        %v3424 = vsel %vm590, %v3423, %v3386
        %v3425 = vrot.slane %v3386, 4
        %v3426 = vsel %vm590, %v3410, %v3425
        %v3427 = vrot.slane %v3278, 4
        %v3428 = vsel %vm590, %v3427, %v3270
        %v3429 = vrot.slane %v3270, 4
        %v3430 = vsel %vm590, %v3278, %v3429
        %v3432 = vunpack.c.l.s4 1983009808
        %v3433 = vunpack.c.0.s8 %v3432
        %v3434 = vperm.slane %v3428, %v3433
        %v3436 = vunpack.c.l.s4 1983009808
        %v3437 = vunpack.c.0.s8 %v3436
        %v3438 = vperm.slane %v3430, %v3437
        %v3439 = vrot.slane %v3282, 4
        %v3440 = vsel %vm590, %v3439, %v3274
        %v3441 = vrot.slane %v3274, 4
        %v3442 = vsel %vm590, %v3282, %v3441
        %v3444 = vunpack.c.l.s4 1983009808
        %v3445 = vunpack.c.0.s8 %v3444
        %v3446 = vperm.slane %v3440, %v3445
        %v3448 = vunpack.c.l.s4 1983009808
        %v3449 = vunpack.c.0.s8 %v3448
        %v3450 = vperm.slane %v3442, %v3449
        %v3451 = vrot.slane %v3294, 4
        %v3452 = vsel %vm590, %v3451, %v3286
        %v3453 = vrot.slane %v3286, 4
        %v3454 = vsel %vm590, %v3294, %v3453
        %v3456 = vunpack.c.l.s4 1983009808
        %v3457 = vunpack.c.0.s8 %v3456
        %v3458 = vperm.slane %v3452, %v3457
        %v3460 = vunpack.c.l.s4 1983009808
        %v3461 = vunpack.c.0.s8 %v3460
        %v3462 = vperm.slane %v3454, %v3461
        %v3463 = vrot.slane %v3298, 4
        %v3464 = vsel %vm590, %v3463, %v3290
        %v3465 = vrot.slane %v3290, 4
        %v3466 = vsel %vm590, %v3298, %v3465
        %v3468 = vunpack.c.l.s4 1983009808
        %v3469 = vunpack.c.0.s8 %v3468
        %v3470 = vperm.slane %v3464, %v3469
        %v3472 = vunpack.c.l.s4 1983009808
        %v3473 = vunpack.c.0.s8 %v3472
        %v3474 = vperm.slane %v3466, %v3473
        %v3475 = vrot.slane %v3446, 4
        %v3476 = vsel %vm590, %v3475, %v3434
        %v3477 = vrot.slane %v3434, 4
        %v3478 = vsel %vm590, %v3446, %v3477
        %v3480 = vunpack.c.l.s4 1934713408
        %v3481 = vunpack.c.0.s8 %v3480
        %v3482 = vperm.slane %v3476, %v3481
        %v3484 = vunpack.c.l.s4 1934713408
        %v3485 = vunpack.c.0.s8 %v3484
        %v3486 = vperm.slane %v3478, %v3485
        %v3487 = vrot.slane %v3450, 4
        %v3488 = vsel %vm590, %v3487, %v3438
        %v3489 = vrot.slane %v3438, 4
        %v3490 = vsel %vm590, %v3450, %v3489
        %v3492 = vunpack.c.l.s4 1934713408
        %v3493 = vunpack.c.0.s8 %v3492
        %v3494 = vperm.slane %v3488, %v3493
        %v3496 = vunpack.c.l.s4 1934713408
        %v3497 = vunpack.c.0.s8 %v3496
        %v3498 = vperm.slane %v3490, %v3497
        %v3499 = vrot.slane %v3470, 4
        %v3500 = vsel %vm590, %v3499, %v3458
        %v3501 = vrot.slane %v3458, 4
        %v3502 = vsel %vm590, %v3470, %v3501
        %v3504 = vunpack.c.l.s4 1934713408
        %v3505 = vunpack.c.0.s8 %v3504
        %v3506 = vperm.slane %v3500, %v3505
        %v3508 = vunpack.c.l.s4 1934713408
        %v3509 = vunpack.c.0.s8 %v3508
        %v3510 = vperm.slane %v3502, %v3509
        %v3511 = vrot.slane %v3474, 4
        %v3512 = vsel %vm590, %v3511, %v3462
        %v3513 = vrot.slane %v3462, 4
        %v3514 = vsel %vm590, %v3474, %v3513
        %v3516 = vunpack.c.l.s4 1934713408
        %v3517 = vunpack.c.0.s8 %v3516
        %v3518 = vperm.slane %v3512, %v3517
        %v3520 = vunpack.c.l.s4 1934713408
        %v3521 = vunpack.c.0.s8 %v3520
        %v3522 = vperm.slane %v3514, %v3521
        %v3523 = vrot.slane %v3506, 4
        %v3524 = vsel %vm590, %v3523, %v3482
        %v3525 = vrot.slane %v3482, 4
        %v3526 = vsel %vm590, %v3506, %v3525
        %v3527 = vrot.slane %v3510, 4
        %v3528 = vsel %vm590, %v3527, %v3486
        %v3529 = vrot.slane %v3486, 4
        %v3530 = vsel %vm590, %v3510, %v3529
        %v3531 = vrot.slane %v3518, 4
        %v3532 = vsel %vm590, %v3531, %v3494
        %v3533 = vrot.slane %v3494, 4
        %v3534 = vsel %vm590, %v3518, %v3533
        %v3535 = vrot.slane %v3522, 4
        %v3536 = vsel %vm590, %v3535, %v3498
        %v3537 = vrot.slane %v3498, 4
        %v3538 = vsel %vm590, %v3522, %v3537
        %3540 = vrot.lane.b32.xlu0 %v3414, 16
        %v3541 = vpop.permute.xlu0 %3540
        %3544 = vrot.lane.b32.xlu0 %v3416, 32
        %v3545 = vpop.permute.xlu0 %3544
        %3548 = vrot.lane.b32.xlu0 %v3418, 48
        %v3549 = vpop.permute.xlu0 %3548
        %3552 = vrot.lane.b32.xlu0 %v3420, 64
        %v3553 = vpop.permute.xlu0 %3552
        %3556 = vrot.lane.b32.xlu0 %v3422, 80
        %v3557 = vpop.permute.xlu0 %3556
        %3560 = vrot.lane.b32.xlu0 %v3424, 96
        %v3561 = vpop.permute.xlu0 %3560
        %3564 = vrot.lane.b32.xlu0 %v3426, 112
        %v3565 = vpop.permute.xlu0 %3564
        %3568 = vrot.lane.b32.xlu0 %v3526, 16
        %v3569 = vpop.permute.xlu0 %3568
        %3572 = vrot.lane.b32.xlu0 %v3528, 32
        %v3573 = vpop.permute.xlu0 %3572
        %3576 = vrot.lane.b32.xlu0 %v3530, 48
        %v3577 = vpop.permute.xlu0 %3576
        %3580 = vrot.lane.b32.xlu0 %v3532, 64
        %v3581 = vpop.permute.xlu0 %3580
        %3584 = vrot.lane.b32.xlu0 %v3534, 80
        %v3585 = vpop.permute.xlu0 %3584
        %3588 = vrot.lane.b32.xlu0 %v3536, 96
        %v3589 = vpop.permute.xlu0 %3588
        %3592 = vrot.lane.b32.xlu0 %v3538, 112
        %v3593 = vpop.permute.xlu0 %3592
        %v3595 = vsel %vm870, %v3412, %v3541
        %v3596 = vsel %vm872, %v3595, %v3545
        %v3597 = vsel %vm874, %v3596, %v3549
        %v3598 = vsel %vm876, %v3597, %v3553
        %v3599 = vsel %vm878, %v3598, %v3557
        %v3600 = vsel %vm880, %v3599, %v3561
        %v3601 = vsel %vm882, %v3600, %v3565
        %v3602 = vsel %vm870, %v3524, %v3569
        %v3603 = vsel %vm872, %v3602, %v3573
        %v3604 = vsel %vm874, %v3603, %v3577
        %v3605 = vsel %vm876, %v3604, %v3581
        %v3606 = vsel %vm878, %v3605, %v3585
        %v3607 = vsel %vm880, %v3606, %v3589
        %v3608 = vsel %vm882, %v3607, %v3593
        %s3609 = scalar_lea.vmem %s2, 28
        %v3610 = vld [vmem:[%s3609] sm:$0xf]
        %v3611 = vpack.c.bf16 %v3601, %v3601
        %v3612 = vpack.c.bf16 %v3608, %v3608
        %v3614 = vsel %vm312, %v3610, 0
        %v3617 = vsel %vm319, %v3611, 0
        %v3620 = vsel %vm319, %v3612, 0
        %3622 = vmatpush.bf16.msra.mxu0 0
        %3623 = vmatpush.bf16.msra.mxu0 0
        %3624 = vmatpush.bf16.msra.mxu0 0
        %3625 = vmatpush.bf16.msra.mxu0 0
        %3626 = vmatpush.bf16.msra.mxu0 0
        %3627 = vmatpush.bf16.msra.mxu0 0
        %3628 = vmatpush.bf16.msra.mxu0 0
        %3629 = vmatpush.bf16.msra.mxu0 %v3617
        %3630 = vmatmul.bf16.gmra.mxu0 %v3614
        %v3631 = vpop.f32.mrf.mxu0
        %v3632 = vadd.f32 0.0, %v3631
        %v3633 = vpop.f32.mrf.mxu0
        %3634 = vdwg.mxu0
        %3635 = vmatpush.bf16.msra.mxu0 0
        %3636 = vmatpush.bf16.msra.mxu0 0
        %3637 = vmatpush.bf16.msra.mxu0 0
        %3638 = vmatpush.bf16.msra.mxu0 0
        %3639 = vmatpush.bf16.msra.mxu0 0
        %3640 = vmatpush.bf16.msra.mxu0 0
        %3641 = vmatpush.bf16.msra.mxu0 0
        %3642 = vmatpush.bf16.msra.mxu0 %v3620
        %3643 = vmatmul.bf16.gmra.mxu0 %v3614
        %v3644 = vpop.f32.mrf.mxu0
        %v3645 = vadd.f32 0.0, %v3644
        %v3646 = vpop.f32.mrf.mxu0
        %3647 = vdwg.mxu0
        %v3648 = vadd.f32 %v3265, %v3632
        %v3649 = vadd.f32 %v3266, %v3645
        %3650 = vrot.lane.b32.xlu0 %v2878, 126
        %v3651 = vpop.permute.xlu0 %3650
        %3652 = vrot.lane.b32.xlu0 %v2880, 126
        %v3653 = vpop.permute.xlu0 %3652
        %3654 = vrot.lane.b32.xlu0 %v2883, 126
        %v3655 = vpop.permute.xlu0 %3654
        %3656 = vrot.lane.b32.xlu0 %v2885, 126
        %v3657 = vpop.permute.xlu0 %3656
        %3658 = vrot.lane.b32.xlu0 %v2888, 126
        %v3659 = vpop.permute.xlu0 %3658
        %3660 = vrot.lane.b32.xlu0 %v2890, 126
        %v3661 = vpop.permute.xlu0 %3660
        %3662 = vrot.lane.b32.xlu0 %v2893, 126
        %v3663 = vpop.permute.xlu0 %3662
        %3664 = vrot.lane.b32.xlu0 %v2895, 126
        %v3665 = vpop.permute.xlu0 %3664
        %3666 = vrot.lane.b32.xlu0 %v2898, 126
        %v3667 = vpop.permute.xlu0 %3666
        %3668 = vrot.lane.b32.xlu0 %v2900, 126
        %v3669 = vpop.permute.xlu0 %3668
        %3670 = vrot.lane.b32.xlu0 %v2903, 126
        %v3671 = vpop.permute.xlu0 %3670
        %3672 = vrot.lane.b32.xlu0 %v2905, 126
        %v3673 = vpop.permute.xlu0 %3672
        %3674 = vrot.lane.b32.xlu0 %v2908, 126
        %v3675 = vpop.permute.xlu0 %3674
        %3676 = vrot.lane.b32.xlu0 %v2910, 126
        %v3677 = vpop.permute.xlu0 %3676
        %3678 = vrot.lane.b32.xlu0 %v2913, 126
        %v3679 = vpop.permute.xlu0 %3678
        %3680 = vrot.lane.b32.xlu0 %v2915, 126
        %v3681 = vpop.permute.xlu0 %3680
        %v3698 = vrot.slane %v3659, 4
        %v3699 = vsel %vm590, %v3698, %v3651
        %v3700 = vrot.slane %v3651, 4
        %v3701 = vsel %vm590, %v3659, %v3700
        %v3703 = vunpack.c.l.s4 1983009808
        %v3704 = vunpack.c.0.s8 %v3703
        %v3705 = vperm.slane %v3699, %v3704
        %v3707 = vunpack.c.l.s4 1983009808
        %v3708 = vunpack.c.0.s8 %v3707
        %v3709 = vperm.slane %v3701, %v3708
        %v3710 = vrot.slane %v3663, 4
        %v3711 = vsel %vm590, %v3710, %v3655
        %v3712 = vrot.slane %v3655, 4
        %v3713 = vsel %vm590, %v3663, %v3712
        %v3715 = vunpack.c.l.s4 1983009808
        %v3716 = vunpack.c.0.s8 %v3715
        %v3717 = vperm.slane %v3711, %v3716
        %v3719 = vunpack.c.l.s4 1983009808
        %v3720 = vunpack.c.0.s8 %v3719
        %v3721 = vperm.slane %v3713, %v3720
        %v3722 = vrot.slane %v3675, 4
        %v3723 = vsel %vm590, %v3722, %v3667
        %v3724 = vrot.slane %v3667, 4
        %v3725 = vsel %vm590, %v3675, %v3724
        %v3727 = vunpack.c.l.s4 1983009808
        %v3728 = vunpack.c.0.s8 %v3727
        %v3729 = vperm.slane %v3723, %v3728
        %v3731 = vunpack.c.l.s4 1983009808
        %v3732 = vunpack.c.0.s8 %v3731
        %v3733 = vperm.slane %v3725, %v3732
        %v3734 = vrot.slane %v3679, 4
        %v3735 = vsel %vm590, %v3734, %v3671
        %v3736 = vrot.slane %v3671, 4
        %v3737 = vsel %vm590, %v3679, %v3736
        %v3739 = vunpack.c.l.s4 1983009808
        %v3740 = vunpack.c.0.s8 %v3739
        %v3741 = vperm.slane %v3735, %v3740
        %v3743 = vunpack.c.l.s4 1983009808
        %v3744 = vunpack.c.0.s8 %v3743
        %v3745 = vperm.slane %v3737, %v3744
        %v3746 = vrot.slane %v3717, 4
        %v3747 = vsel %vm590, %v3746, %v3705
        %v3748 = vrot.slane %v3705, 4
        %v3749 = vsel %vm590, %v3717, %v3748
        %v3751 = vunpack.c.l.s4 1934713408
        %v3752 = vunpack.c.0.s8 %v3751
        %v3753 = vperm.slane %v3747, %v3752
        %v3755 = vunpack.c.l.s4 1934713408
        %v3756 = vunpack.c.0.s8 %v3755
        %v3757 = vperm.slane %v3749, %v3756
        %v3758 = vrot.slane %v3721, 4
        %v3759 = vsel %vm590, %v3758, %v3709
        %v3760 = vrot.slane %v3709, 4
        %v3761 = vsel %vm590, %v3721, %v3760
        %v3763 = vunpack.c.l.s4 1934713408
        %v3764 = vunpack.c.0.s8 %v3763
        %v3765 = vperm.slane %v3759, %v3764
        %v3767 = vunpack.c.l.s4 1934713408
        %v3768 = vunpack.c.0.s8 %v3767
        %v3769 = vperm.slane %v3761, %v3768
        %v3770 = vrot.slane %v3741, 4
        %v3771 = vsel %vm590, %v3770, %v3729
        %v3772 = vrot.slane %v3729, 4
        %v3773 = vsel %vm590, %v3741, %v3772
        %v3775 = vunpack.c.l.s4 1934713408
        %v3776 = vunpack.c.0.s8 %v3775
        %v3777 = vperm.slane %v3771, %v3776
        %v3779 = vunpack.c.l.s4 1934713408
        %v3780 = vunpack.c.0.s8 %v3779
        %v3781 = vperm.slane %v3773, %v3780
        %v3782 = vrot.slane %v3745, 4
        %v3783 = vsel %vm590, %v3782, %v3733
        %v3784 = vrot.slane %v3733, 4
        %v3785 = vsel %vm590, %v3745, %v3784
        %v3787 = vunpack.c.l.s4 1934713408
        %v3788 = vunpack.c.0.s8 %v3787
        %v3789 = vperm.slane %v3783, %v3788
        %v3791 = vunpack.c.l.s4 1934713408
        %v3792 = vunpack.c.0.s8 %v3791
        %v3793 = vperm.slane %v3785, %v3792
        %v3794 = vrot.slane %v3777, 4
        %v3795 = vsel %vm590, %v3794, %v3753
        %v3796 = vrot.slane %v3753, 4
        %v3797 = vsel %vm590, %v3777, %v3796
        %v3798 = vrot.slane %v3781, 4
        %v3799 = vsel %vm590, %v3798, %v3757
        %v3800 = vrot.slane %v3757, 4
        %v3801 = vsel %vm590, %v3781, %v3800
        %v3802 = vrot.slane %v3789, 4
        %v3803 = vsel %vm590, %v3802, %v3765
        %v3804 = vrot.slane %v3765, 4
        %v3805 = vsel %vm590, %v3789, %v3804
        %v3806 = vrot.slane %v3793, 4
        %v3807 = vsel %vm590, %v3806, %v3769
        %v3808 = vrot.slane %v3769, 4
        %v3809 = vsel %vm590, %v3793, %v3808
        %v3810 = vrot.slane %v3661, 4
        %v3811 = vsel %vm590, %v3810, %v3653
        %v3812 = vrot.slane %v3653, 4
        %v3813 = vsel %vm590, %v3661, %v3812
        %v3815 = vunpack.c.l.s4 1983009808
        %v3816 = vunpack.c.0.s8 %v3815
        %v3817 = vperm.slane %v3811, %v3816
        %v3819 = vunpack.c.l.s4 1983009808
        %v3820 = vunpack.c.0.s8 %v3819
        %v3821 = vperm.slane %v3813, %v3820
        %v3822 = vrot.slane %v3665, 4
        %v3823 = vsel %vm590, %v3822, %v3657
        %v3824 = vrot.slane %v3657, 4
        %v3825 = vsel %vm590, %v3665, %v3824
        %v3827 = vunpack.c.l.s4 1983009808
        %v3828 = vunpack.c.0.s8 %v3827
        %v3829 = vperm.slane %v3823, %v3828
        %v3831 = vunpack.c.l.s4 1983009808
        %v3832 = vunpack.c.0.s8 %v3831
        %v3833 = vperm.slane %v3825, %v3832
        %v3834 = vrot.slane %v3677, 4
        %v3835 = vsel %vm590, %v3834, %v3669
        %v3836 = vrot.slane %v3669, 4
        %v3837 = vsel %vm590, %v3677, %v3836
        %v3839 = vunpack.c.l.s4 1983009808
        %v3840 = vunpack.c.0.s8 %v3839
        %v3841 = vperm.slane %v3835, %v3840
        %v3843 = vunpack.c.l.s4 1983009808
        %v3844 = vunpack.c.0.s8 %v3843
        %v3845 = vperm.slane %v3837, %v3844
        %v3846 = vrot.slane %v3681, 4
        %v3847 = vsel %vm590, %v3846, %v3673
        %v3848 = vrot.slane %v3673, 4
        %v3849 = vsel %vm590, %v3681, %v3848
        %v3851 = vunpack.c.l.s4 1983009808
        %v3852 = vunpack.c.0.s8 %v3851
        %v3853 = vperm.slane %v3847, %v3852
        %v3855 = vunpack.c.l.s4 1983009808
        %v3856 = vunpack.c.0.s8 %v3855
        %v3857 = vperm.slane %v3849, %v3856
        %v3858 = vrot.slane %v3829, 4
        %v3859 = vsel %vm590, %v3858, %v3817
        %v3860 = vrot.slane %v3817, 4
        %v3861 = vsel %vm590, %v3829, %v3860
        %v3863 = vunpack.c.l.s4 1934713408
        %v3864 = vunpack.c.0.s8 %v3863
        %v3865 = vperm.slane %v3859, %v3864
        %v3867 = vunpack.c.l.s4 1934713408
        %v3868 = vunpack.c.0.s8 %v3867
        %v3869 = vperm.slane %v3861, %v3868
        %v3870 = vrot.slane %v3833, 4
        %v3871 = vsel %vm590, %v3870, %v3821
        %v3872 = vrot.slane %v3821, 4
        %v3873 = vsel %vm590, %v3833, %v3872
        %v3875 = vunpack.c.l.s4 1934713408
        %v3876 = vunpack.c.0.s8 %v3875
        %v3877 = vperm.slane %v3871, %v3876
        %v3879 = vunpack.c.l.s4 1934713408
        %v3880 = vunpack.c.0.s8 %v3879
        %v3881 = vperm.slane %v3873, %v3880
        %v3882 = vrot.slane %v3853, 4
        %v3883 = vsel %vm590, %v3882, %v3841
        %v3884 = vrot.slane %v3841, 4
        %v3885 = vsel %vm590, %v3853, %v3884
        %v3887 = vunpack.c.l.s4 1934713408
        %v3888 = vunpack.c.0.s8 %v3887
        %v3889 = vperm.slane %v3883, %v3888
        %v3891 = vunpack.c.l.s4 1934713408
        %v3892 = vunpack.c.0.s8 %v3891
        %v3893 = vperm.slane %v3885, %v3892
        %v3894 = vrot.slane %v3857, 4
        %v3895 = vsel %vm590, %v3894, %v3845
        %v3896 = vrot.slane %v3845, 4
        %v3897 = vsel %vm590, %v3857, %v3896
        %v3899 = vunpack.c.l.s4 1934713408
        %v3900 = vunpack.c.0.s8 %v3899
        %v3901 = vperm.slane %v3895, %v3900
        %v3903 = vunpack.c.l.s4 1934713408
        %v3904 = vunpack.c.0.s8 %v3903
        %v3905 = vperm.slane %v3897, %v3904
        %v3906 = vrot.slane %v3889, 4
        %v3907 = vsel %vm590, %v3906, %v3865
        %v3908 = vrot.slane %v3865, 4
        %v3909 = vsel %vm590, %v3889, %v3908
        %v3910 = vrot.slane %v3893, 4
        %v3911 = vsel %vm590, %v3910, %v3869
        %v3912 = vrot.slane %v3869, 4
        %v3913 = vsel %vm590, %v3893, %v3912
        %v3914 = vrot.slane %v3901, 4
        %v3915 = vsel %vm590, %v3914, %v3877
        %v3916 = vrot.slane %v3877, 4
        %v3917 = vsel %vm590, %v3901, %v3916
        %v3918 = vrot.slane %v3905, 4
        %v3919 = vsel %vm590, %v3918, %v3881
        %v3920 = vrot.slane %v3881, 4
        %v3921 = vsel %vm590, %v3905, %v3920
        %3923 = vrot.lane.b32.xlu0 %v3797, 16
        %v3924 = vpop.permute.xlu0 %3923
        %3927 = vrot.lane.b32.xlu0 %v3799, 32
        %v3928 = vpop.permute.xlu0 %3927
        %3931 = vrot.lane.b32.xlu0 %v3801, 48
        %v3932 = vpop.permute.xlu0 %3931
        %3935 = vrot.lane.b32.xlu0 %v3803, 64
        %v3936 = vpop.permute.xlu0 %3935
        %3939 = vrot.lane.b32.xlu0 %v3805, 80
        %v3940 = vpop.permute.xlu0 %3939
        %3943 = vrot.lane.b32.xlu0 %v3807, 96
        %v3944 = vpop.permute.xlu0 %3943
        %3947 = vrot.lane.b32.xlu0 %v3809, 112
        %v3948 = vpop.permute.xlu0 %3947
        %3951 = vrot.lane.b32.xlu0 %v3909, 16
        %v3952 = vpop.permute.xlu0 %3951
        %3955 = vrot.lane.b32.xlu0 %v3911, 32
        %v3956 = vpop.permute.xlu0 %3955
        %3959 = vrot.lane.b32.xlu0 %v3913, 48
        %v3960 = vpop.permute.xlu0 %3959
        %3963 = vrot.lane.b32.xlu0 %v3915, 64
        %v3964 = vpop.permute.xlu0 %3963
        %3967 = vrot.lane.b32.xlu0 %v3917, 80
        %v3968 = vpop.permute.xlu0 %3967
        %3971 = vrot.lane.b32.xlu0 %v3919, 96
        %v3972 = vpop.permute.xlu0 %3971
        %3975 = vrot.lane.b32.xlu0 %v3921, 112
        %v3976 = vpop.permute.xlu0 %3975
        %v3978 = vsel %vm870, %v3795, %v3924
        %v3979 = vsel %vm872, %v3978, %v3928
        %v3980 = vsel %vm874, %v3979, %v3932
        %v3981 = vsel %vm876, %v3980, %v3936
        %v3982 = vsel %vm878, %v3981, %v3940
        %v3983 = vsel %vm880, %v3982, %v3944
        %v3984 = vsel %vm882, %v3983, %v3948
        %v3985 = vsel %vm870, %v3907, %v3952
        %v3986 = vsel %vm872, %v3985, %v3956
        %v3987 = vsel %vm874, %v3986, %v3960
        %v3988 = vsel %vm876, %v3987, %v3964
        %v3989 = vsel %vm878, %v3988, %v3968
        %v3990 = vsel %vm880, %v3989, %v3972
        %v3991 = vsel %vm882, %v3990, %v3976
        %s3992 = scalar_lea.vmem %s2, 32
        %v3993 = vld [vmem:[%s3992] sm:$0xf]
        %v3994 = vpack.c.bf16 %v3984, %v3984
        %v3995 = vpack.c.bf16 %v3991, %v3991
        %v3997 = vsel %vm312, %v3993, 0
        %v4000 = vsel %vm319, %v3994, 0
        %v4003 = vsel %vm319, %v3995, 0
        %4005 = vmatpush.bf16.msra.mxu0 0
        %4006 = vmatpush.bf16.msra.mxu0 0
        %4007 = vmatpush.bf16.msra.mxu0 0
        %4008 = vmatpush.bf16.msra.mxu0 0
        %4009 = vmatpush.bf16.msra.mxu0 0
        %4010 = vmatpush.bf16.msra.mxu0 0
        %4011 = vmatpush.bf16.msra.mxu0 0
        %4012 = vmatpush.bf16.msra.mxu0 %v4000
        %4013 = vmatmul.bf16.gmra.mxu0 %v3997
        %v4014 = vpop.f32.mrf.mxu0
        %v4015 = vadd.f32 0.0, %v4014
        %v4016 = vpop.f32.mrf.mxu0
        %4017 = vdwg.mxu0
        %4018 = vmatpush.bf16.msra.mxu0 0
        %4019 = vmatpush.bf16.msra.mxu0 0
        %4020 = vmatpush.bf16.msra.mxu0 0
        %4021 = vmatpush.bf16.msra.mxu0 0
        %4022 = vmatpush.bf16.msra.mxu0 0
        %4023 = vmatpush.bf16.msra.mxu0 0
        %4024 = vmatpush.bf16.msra.mxu0 0
        %4025 = vmatpush.bf16.msra.mxu0 %v4003
        %4026 = vmatmul.bf16.gmra.mxu0 %v3997
        %v4027 = vpop.f32.mrf.mxu0
        %v4028 = vadd.f32 0.0, %v4027
        %v4029 = vpop.f32.mrf.mxu0
        %4030 = vdwg.mxu0
        %v4031 = vadd.f32 %v3648, %v4015
        %v4032 = vadd.f32 %v3649, %v4028
        %v4033 = vld [vmem:[%s3] sm:$0xff]
        %4035 = vset.pattern.permute.xlu0 0
        %4036 = vperm.xlu0 %4035, %v4033
        %v4037 = vpop.permute.xlu0 %4036
        %v4039 = vadd.f32 %v4031, %v4037
        %v4040 = vadd.f32 %v4032, %v4037
        %v4041 = vmax.f32 %v4039, 0.0
        %v4042 = vmax.f32 %v4040, 0.0
        %4043 = vst [vmem:[%s286] sm:$0xff] %v4041
        %4044 = vst [vmem:[%s286 + $0x8] sm:$0xff] %v4042
        %s4045 = sand.u32 %s167, 1
        %s4046 = scalar_lea.sflag [#allocation5], %s4045
        %s4047 = sand.u32 %s167, 1
        %s4048 = smul.addr %s4047, 16
        %s4049 = scalar_lea.vmem [#allocation6], %s4048
        // Predicated region
        $region49: #{tpu_custom_call.1} parent=43 // pred_check
          %p4050 = pneg %p177
        $region50: #{tpu_custom_call.1} parent=43 // pred_check_branch
          %4052 = sbr.rel (%p4050) target = $region52
        $region51: #{tpu_custom_call.1} parent=43 // pred_region
          %4054 = vsyncadd %s4046, 0
          %s4055 = smul.addr %s23, 2
          %s4056 = smul.addr %s4055, 8
          %s4057 = scalar_lea.hbm %s6, %s4056
          %s4059 = sshll.u32 %s4049, 4
          %s4060 = int_to_ptr.vmem [resolvable:$true] %s4059
          %s4061 = sshll.u32 %s4057, 4
          %s4062 = int_to_ptr.hbm [resolvable:$true] %s4061
          %4064 = dma.vmem_to_hbm [thread:$0]  %s4060, 256, %s4062, %s4046
        $region52: #{tpu_custom_call.1} parent=43 // pred_fallthru
          _
      $region44: #{tpu_custom_call.1} parent=5 // pred_fallthru
        _
      %p4065 = scmp.le.s32.totalorder 2, %s18
      // Predicated region
      $region53: #{tpu_custom_call.1} parent=5 // pred_check
        %p4066 = pneg %p4065
      $region54: #{tpu_custom_call.1} parent=5 // pred_check_branch
        %4068 = sbr.rel (%p4066) target = $region56
      $region55: #{tpu_custom_call.1} parent=5 // pred_region
        %s4069 = ssub.s32 %s18, 2
        // Predicated region
        $region57: #{tpu_custom_call.1} parent=55 // pred_check
          %p4070 = pneg %p183
        $region58: #{tpu_custom_call.1} parent=55 // pred_check_branch
          %4072 = sbr.rel (%p4070) target = $region60
        $region59: #{tpu_custom_call.1} parent=55 // pred_region
          %s4073 = sand.u32 %s168, 1
          %s4074 = scalar_lea.sflag [#allocation5], %s4073
          %s4075 = sand.u32 %s168, 1
          %s4076 = smul.addr %s4075, 16
          %s4077 = scalar_lea.vmem [#allocation6], %s4076
          %4079 = dma.done %s4074, 256
        $region60: #{tpu_custom_call.1} parent=55 // pred_fallthru
          _
      $region56: #{tpu_custom_call.1} parent=5 // pred_fallthru
        _
    $region6: #{tpu_custom_call.1} parent=1 // loop_footer
      %s22 = sadd.s32 1, %s18
    $region7: #{tpu_custom_call.1} parent=1 // loop_footer_branch
      %17 = sbr.rel target = $region3
    $region8: #{tpu_custom_call.1} parent=1 // loop_exit
      _
    %4080 = vsyncpa [#allocation4], 1
    %s4081 = scalar_lea.sflag [#allocation4], 1
    %4082 = vsyncpa %s4081, 1
    %4083 = vsyncpa [#allocation5], 1
    %s4084 = scalar_lea.sflag [#allocation5], 1
    %4085 = vsyncpa %s4084, 1

</llo_original>
